<compile_context>
chip_gen: v6e
topology: v6e:2x2x1
jax: 0.10.0
libtpu: 0.0.40
codegen_flags: <defaults>
</compile_context>

<pallas_src>
import numpy as np
import jax
import jax.numpy as jnp
from jax.experimental import pallas as pl
from jax.experimental.pallas import tpu as pltpu


# ----------------------------------------------------------------------------
# Graph construction (numpy, identical to the PyTorch reference code)
# ----------------------------------------------------------------------------
def get_hop_distance(num_node, edge, max_hop=1):
    A = np.zeros((num_node, num_node))
    for i, j in edge:
        A[j, i] = 1
        A[i, j] = 1
    hop_dis = np.zeros((num_node, num_node)) + np.inf
    transfer_mat = [np.linalg.matrix_power(A, d) for d in range(max_hop + 1)]
    arrive_mat = np.stack(transfer_mat) > 0
    for d in range(max_hop, -1, -1):
        hop_dis[arrive_mat[d]] = d
    return hop_dis


def normalize_digraph(A):
    Dl = np.sum(A, 0)
    num_node = A.shape[0]
    Dn = np.zeros((num_node, num_node))
    for i in range(num_node):
        if Dl[i] > 0:
            Dn[i, i] = Dl[i] ** (-1)
    return np.dot(A, Dn)


def build_graph_A():
    # Graph(layout='openpose', strategy='distance', max_hop=1, dilation=1)
    num_node = 17
    self_link = [(i, i) for i in range(num_node)]
    neighbor_link = [(0, 1), (1, 2), (2, 3), (3, 4), (1, 5), (5, 6), (6, 7),
                     (1, 8), (8, 9), (8, 12), (9, 10), (12, 13), (10, 11),
                     (13, 14), (11, 16), (14, 15)]
    edge = self_link + neighbor_link
    hop_dis = get_hop_distance(num_node, edge, max_hop=1)
    valid_hop = range(0, 2, 1)
    adjacency = np.zeros((num_node, num_node))
    for hop in valid_hop:
        adjacency[hop_dis == hop] = 1
    norm_adj = normalize_digraph(adjacency)
    A = np.zeros((len(valid_hop), num_node, num_node))
    for i, hop in enumerate(valid_hop):
        A[i][hop_dis == hop] = norm_adj[hop_dis == hop]
    return A.astype(np.float32)          # (K=2, V=17, V=17)


# ----------------------------------------------------------------------------
# Constants
# ----------------------------------------------------------------------------
TEMPORAL_K = 9
TEMPORAL_PAD = 4
V_PAD = 24          # graph nodes padded to a multiple of 8 (aligned temporal taps)
CPAD = 64           # every layer's channel count padded to the network maximum

LAYER_CFG = [
    (2, 32, 'none'),
    (32, 32, 'identity'), (32, 32, 'identity'), (32, 32, 'identity'),
    (32, 64, 'conv'),
    (64, 64, 'identity'), (64, 64, 'identity'), (64, 64, 'identity'),
    (64, 64, 'identity'), (64, 64, 'identity'),
]


# ----------------------------------------------------------------------------
# Deterministic raw parameters (mirrors the PyTorch module, eval-mode BN stats)
# ----------------------------------------------------------------------------
def fold_bn(gamma, beta, mean, var, eps=1e-5):
    scale = gamma / jnp.sqrt(var + eps)
    shift = beta - mean * scale
    return scale, shift


def init_params(key, A, V=17, Cin0=2):
    K = A.shape[0]
    keys = iter(jax.random.split(key, 256))

    def nrm(shape, scale):
        return (scale * jax.random.normal(next(keys), shape)).astype(jnp.float32)

    def bn_init(c):
        return dict(
            gamma=(1.0 + 0.1 * jax.random.normal(next(keys), (c,))).astype(jnp.float32),
            beta=(0.1 * jax.random.normal(next(keys), (c,))).astype(jnp.float32),
            mean=(0.1 * jax.random.normal(next(keys), (c,))).astype(jnp.float32),
            var=(1.0 + 0.1 * jax.random.uniform(next(keys), (c,))).astype(jnp.float32),
        )

    dbn = bn_init(Cin0 * V)                       # data_bn = BatchNorm1d(C*V)
    layers = []
    for cin, cout, res in LAYER_CFG:
        lay = dict(
            res=res,
            importance=(1.0 + 0.1 * jax.random.normal(next(keys), (K, V, V))
                        ).astype(jnp.float32),
            Wg=nrm((K * cout, cin), 1.0 / np.sqrt(cin)),   # Conv2d(cin, K*cout, (1,1))
            bg=nrm((K * cout,), 0.1),
            bn1=bn_init(cout),
            Wt=nrm((cout, cout, TEMPORAL_K, 1), 1.0 / np.sqrt(cout * TEMPORAL_K)),
            bt=nrm((cout,), 0.1),
            bn2=bn_init(cout),
        )
        if res == 'conv':
            lay['Wr'] = nrm((cout, cin, 1, 1), 1.0 / np.sqrt(cin))
            lay['br'] = nrm((cout,), 0.1)
            lay['bnr'] = bn_init(cout)
        layers.append(lay)
    return dbn, layers


# ----------------------------------------------------------------------------
# One-time parameter folding into the fused-kernel layout (all hoisted out of
# the forward pass).  Channels are padded to CPAD, samples within a block are
# packed on the lane axis via kron(I_Bstep, W).
# ----------------------------------------------------------------------------
def prepare_params(A, dbn, layers_raw, Bstep, Vp=V_PAD, Cpad=CPAD, Cin0=2):
    A = np.asarray(A, np.float32)
    K, V, _ = A.shape
    L = len(layers_raw)
    BC = Bstep * Cpad
    eyeB = np.eye(Bstep, dtype=np.float32)

    def kron_b(w):
        return np.kron(eyeB, w).astype(np.float32)

    wg_all = np.zeros((L, BC, K * BC), np.float32)
    at_all = np.zeros((L * K, Vp, Vp), np.float32)
    b1_all = np.zeros((L, Vp, BC), np.float32)
    wt_all = np.zeros((L * TEMPORAL_K, BC, BC), np.float32)
    b2_all = np.zeros((L, Vp, BC), np.float32)
    wr_all = np.zeros((L, BC, BC), np.float32)
    brr_all = np.zeros((L, Vp, BC), np.float32)

    for l, lay in enumerate(layers_raw):
        Wg = np.asarray(lay['Wg'], np.float32)
        cin = Wg.shape[1]
        cout = Wg.shape[0] // K
        Aimp = A * np.asarray(lay['importance'], np.float32)           # (K,V,V)
        s1, sh1 = (np.asarray(v, np.float32) for v in fold_bn(**lay['bn1']))
        s2, sh2 = (np.asarray(v, np.float32) for v in fold_bn(**lay['bn2']))

        # ---- GCN 1x1 conv per spatial kernel k (BN1 scale folded), A_k^T padded
        Wg3 = Wg.reshape(K, cout, cin)                                  # [k, co, ci]
        for k in range(K):
            w = np.zeros((Cpad, Cpad), np.float32)
            w[:cin, :cout] = Wg3[k].T * s1[None, :]
            wg_all[l, :, k * BC:(k + 1) * BC] = kron_b(w)
            at_all[l * K + k, :V, :V] = Aimp[k].T

        # ---- conv bias propagated through the graph + BN1 shift (real rows only)
        bg = np.asarray(lay['bg'], np.float32).reshape(K, cout)
        colsum = Aimp.sum(axis=1)                                       # [k, w]
        bias_vc = np.einsum('kw,kc->wc', colsum, bg) * s1[None, :] + sh1[None, :]
        for b in range(Bstep):
            b1_all[l, :V, b * Cpad:b * Cpad + cout] = bias_vc

        # ---- 9x1 temporal conv taps (BN2 scale folded), bias + BN2 shift
        Wt = np.asarray(lay['Wt'], np.float32)[:, :, :, 0]              # (co, ci, 9)
        for dt in range(TEMPORAL_K):
            w = np.zeros((Cpad, Cpad), np.float32)
            w[:cout, :cout] = Wt[:, :, dt].T * s2[None, :]
            wt_all[l * TEMPORAL_K + dt] = kron_b(w)
        b2_vec = np.asarray(lay['bt'], np.float32) * s2 + sh2
        for b in range(Bstep):
            b2_all[l, :V, b * Cpad:b * Cpad + cout] = b2_vec[None, :]

        # ---- residual branch as a uniform matmul: zero / identity / 1x1 conv + BN
        if lay['res'] == 'identity':
            wr_all[l] = np.eye(BC, dtype=np.float32)
        elif lay['res'] == 'conv':
            sr, shr = (np.asarray(v, np.float32) for v in fold_bn(**lay['bnr']))
            w = np.zeros((Cpad, Cpad), np.float32)
            w[:cin, :cout] = np.asarray(lay['Wr'], np.float32)[:, :, 0, 0].T * sr[None, :]
            wr_all[l] = kron_b(w)
            br_vec = np.asarray(lay['br'], np.float32) * sr + shr
            for b in range(Bstep):
                brr_all[l, :V, b * Cpad:b * Cpad + cout] = br_vec[None, :]
        # 'none' -> leave zeros

    # ---- data_bn (BatchNorm1d over V*Cin0): per-(node, channel) scale/shift
    ds, dsh = (np.asarray(v, np.float32) for v in fold_bn(**dbn))
    ds2, dsh2 = ds.reshape(V, Cin0), dsh.reshape(V, Cin0)
    dbs = np.zeros((Vp, BC), np.float32)
    dbh = np.zeros((Vp, BC), np.float32)
    for b in range(Bstep):
        dbs[:V, b * Cpad:b * Cpad + Cin0] = ds2
        dbh[:V, b * Cpad:b * Cpad + Cin0] = dsh2

    j = jnp.asarray
    return dict(dbs=j(dbs), dbh=j(dbh), wg=j(wg_all), at=j(at_all), b1=j(b1_all),
                wt=j(wt_all), b2=j(b2_all), wr=j(wr_all), brr=j(brr_all))


# ----------------------------------------------------------------------------
# Fused whole-network Pallas kernel
# ----------------------------------------------------------------------------
def make_fused_kernel(L, K, T, Vp, V, Bstep, Cpad):
    BC = Bstep * Cpad
    TVp = T * Vp
    PAD = TEMPORAL_PAD * Vp
    GROWS = (T + 2 * TEMPORAL_PAD) * Vp

    def kernel(x_ref, dbs_ref, dbh_ref, wg_ref, at_ref, b1_ref, wt_ref,
               b2_ref, wr_ref, brr_ref, o_ref, act_scr, gpad_scr):
        # ---- data_bn (folded): per-(node, sample, channel) scale/shift, bcast over t
        x3 = x_ref[...].reshape(T, Vp, BC)
        act_scr[...] = (x3 * dbs_ref[...][None, :, :]
                        + dbh_ref[...][None, :, :]).reshape(TVp, BC)
        # temporally padded scratch: zero once, the pad rows stay zero for all layers
        gpad_scr[...] = jnp.zeros((GROWS, BC), jnp.float32)

        def layer_body(l, carry):
            cur = act_scr[...]                                          # (TVp, BC)

            # GCN 1x1 conv, all K spatial kernels in one matmul (BN1 scale folded)
            h_all = jnp.dot(cur, wg_ref[l],
                            preferred_element_type=jnp.float32)         # (TVp, K*BC)

            # graph contraction per timestep with (Vp x Vp) A_k^T, +bias, ReLU,
            # written straight into the temporally padded scratch
            for t in range(T):
                g_t = b1_ref[l]                                         # (Vp, BC)
                for k in range(K):
                    h_kt = h_all[t * Vp:(t + 1) * Vp, k * BC:(k + 1) * BC]
                    g_t = g_t + jnp.dot(at_ref[l * K + k], h_kt,
                                        preferred_element_type=jnp.float32)
                gpad_scr[PAD + t * Vp: PAD + (t + 1) * Vp, :] = jnp.maximum(g_t, 0.0)

            # residual branch (zero / identity / folded 1x1 conv+BN) as one matmul
            y = jnp.dot(cur, wr_ref[l], preferred_element_type=jnp.float32)

            # 9-tap temporal conv as shifted-accumulate matmuls (BN2 scale folded)
            for dt in range(TEMPORAL_K):
                y = y + jnp.dot(gpad_scr[dt * Vp: dt * Vp + TVp, :],
                                wt_ref[l * TEMPORAL_K + dt],
                                preferred_element_type=jnp.float32)

            # tcn bias + BN2 shift + residual bias (zero on padded node rows), ReLU
            y3 = y.reshape(T, Vp, BC) + (b2_ref[l] + brr_ref[l])[None, :, :]
            act_scr[...] = jnp.maximum(y3, 0.0).reshape(TVp, BC)
            return carry

        jax.lax.fori_loop(0, L, layer_body, 0)

        # fused mean over the graph nodes (padded node rows are exactly zero)
        o_ref[...] = jnp.sum(act_scr[...].reshape(T, Vp, BC), axis=1) * (1.0 / V)

    return kernel


# ----------------------------------------------------------------------------
# Full Model.forward (cls_head=False) with the single fused pallas_call
# ----------------------------------------------------------------------------
def model_forward_pallas(x_nctvm, params, Vp=V_PAD, Cpad=CPAD):
    N, C, T, V, M = x_nctvm.shape
    NM = N * M
    BC = params['dbs'].shape[1]
    Bstep = BC // Cpad
    assert NM % Bstep == 0, "sample count must be divisible by the lane block"
    G = NM // Bstep
    TVp = T * Vp
    L = params['wg'].shape[0]
    K = params['at'].shape[0] // L

    # one-time layout prep: rows (t, v) padded to Vp, lanes (sample-in-block, ch)
    xt = jnp.transpose(x_nctvm, (0, 4, 2, 3, 1)).astype(jnp.float32)   # (N,M,T,V,C)
    xt = xt.reshape(NM, T, V, C)
    xt = jnp.pad(xt, ((0, 0), (0, 0), (0, Vp - V), (0, Cpad - C)))
    xt = xt.reshape(G, Bstep, T, Vp, Cpad)
    x_in = jnp.transpose(xt, (0, 2, 3, 1, 4)).reshape(G, TVp, BC)

    kernel = make_fused_kernel(L, K, T, Vp, V, Bstep, Cpad)

    def wspec(a):
        # full-array constant block: DMA'd into VMEM once, resident for all steps
        return pl.BlockSpec(a.shape, lambda g, nd=a.ndim: (0,) * nd)

    weight_names = ('dbs', 'dbh', 'wg', 'at', 'b1', 'wt', 'b2', 'wr', 'brr')
    weights = [params[nm] for nm in weight_names]

    out = pl.pallas_call(
        kernel,
        out_shape=jax.ShapeDtypeStruct((G, T, BC), jnp.float32),
        grid=(G,),
        in_specs=[pl.BlockSpec((None, TVp, BC), lambda g: (g, 0, 0))]
                 + [wspec(a) for a in weights],
        out_specs=pl.BlockSpec((None, T, BC), lambda g: (g, 0, 0)),
        scratch_shapes=[
            pltpu.VMEM((TVp, BC), jnp.float32),                          # activation
            pltpu.VMEM(((T + 2 * TEMPORAL_PAD) * Vp, BC), jnp.float32),  # padded TCN buf
        ],
        compiler_params=pltpu.CompilerParams(
            dimension_semantics=("parallel",),
            vmem_limit_bytes=48 * 1024 * 1024),
    )(x_in, *weights)

    # (G, T, Bstep*Cpad) -> (NM, T, Cpad); final feature width is exactly Cpad
    out = out.reshape(G, T, Bstep, Cpad)
    out = jnp.transpose(out, (0, 2, 1, 3)).reshape(NM, T, Cpad)
    return out


# ----------------------------------------------------------------------------
# Pure-JAX reference (mirrors the PyTorch forward, BN in eval mode)
# ----------------------------------------------------------------------------
def model_forward_ref(x_nctvm, A, dbn, layers):
    N, C, T, V, M = x_nctvm.shape
    x = jnp.transpose(x_nctvm, (0, 4, 3, 1, 2)).reshape(N * M, V * C, T)
    ds, dsh = fold_bn(**dbn)
    x = x * ds[None, :, None] + dsh[None, :, None]
    x = x.reshape(N, M, V, C, T)
    x = jnp.transpose(x, (0, 1, 3, 4, 2)).reshape(N * M, C, T, V)

    for lay in layers:
        Aimp = A * lay['importance']
        K = Aimp.shape[0]
        cout = lay['Wg'].shape[0] // K
        if lay['res'] == 'none':
            res = 0.0
        elif lay['res'] == 'identity':
            res = x
        else:
            res = jnp.einsum('oc,nctv->notv', lay['Wr'][:, :, 0, 0], x) \
                + lay['br'][None, :, None, None]
            sr, shr = fold_bn(**lay['bnr'])
            res = res * sr[None, :, None, None] + shr[None, :, None, None]

        y = jnp.einsum('oc,nctv->notv', lay['Wg'], x) + lay['bg'][None, :, None, None]
        y = y.reshape(N * M, K, cout, T, V)
        y = jnp.einsum('nkctv,kvw->nctw', y, Aimp)

        s1, b1 = fold_bn(**lay['bn1'])
        h = jnp.maximum(y * s1[None, :, None, None] + b1[None, :, None, None], 0.0)
        hpad = jnp.pad(h, ((0, 0), (0, 0), (TEMPORAL_PAD, TEMPORAL_PAD), (0, 0)))
        Wt = lay['Wt'][:, :, :, 0]
        out = jnp.zeros((N * M, cout, T, V)) + lay['bt'][None, :, None, None]
        for dt in range(TEMPORAL_K):
            out = out + jnp.einsum('oc,nctv->notv', Wt[:, :, dt],
                                   hpad[:, :, dt:dt + T, :])
        s2, b2 = fold_bn(**lay['bn2'])
        out = out * s2[None, :, None, None] + b2[None, :, None, None]
        x = jnp.maximum(out + res, 0.0)

    x = jnp.mean(x, axis=-1)                 # (N*M, 64, T)
    return jnp.transpose(x, (0, 2, 1))       # (N*M, T, 64)


# ----------------------------------------------------------------------------
if __name__ == "__main__":
    key = jax.random.PRNGKey(0)
    N, Cin, T, V, M = 2, 2, 8, 17, 2          # V=17 fixed by the openpose graph
    kx, kp = jax.random.split(key)
    x = jax.random.normal(kx, (N, Cin, T, V, M), dtype=jnp.float32)

    A = jnp.asarray(build_graph_A())          # (2, 17, 17)
    dbn, layers = init_params(kp, A, V=V, Cin0=Cin)

    NM = N * M
    Bstep = 2 if NM % 2 == 0 else 1           # 2 samples packed on the lane axis
    params = prepare_params(A, dbn, layers, Bstep=Bstep, Vp=V_PAD, Cpad=CPAD,
                            Cin0=Cin)

    fwd = jax.jit(model_forward_pallas)
    out = jax.block_until_ready(fwd(x, params))
    assert out.shape == (NM, T, 64), out.shape

    ref = model_forward_ref(x, A, dbn, layers)
    rel_err = float(jnp.max(jnp.abs(out - ref)) / (jnp.max(jnp.abs(ref)) + 1e-6))
    assert rel_err < 1e-3, f"mismatch vs reference: rel err {rel_err}"

    print("KERNEL_OK")
</pallas_src>

<mosaic_0001>
module attributes {stable_mosaic.version = 11 : i64} {
  func.func @kernel(%arg0: i32, %arg1: memref<1x192x128xf32, #tpu.memory_space<vmem>>, %arg2: memref<24x128xf32, #tpu.memory_space<vmem>>, %arg3: memref<24x128xf32, #tpu.memory_space<vmem>>, %arg4: memref<10x128x256xf32, #tpu.memory_space<vmem>>, %arg5: memref<20x24x24xf32, #tpu.memory_space<vmem>>, %arg6: memref<10x24x128xf32, #tpu.memory_space<vmem>>, %arg7: memref<90x128x128xf32, #tpu.memory_space<vmem>>, %arg8: memref<10x24x128xf32, #tpu.memory_space<vmem>>, %arg9: memref<10x128x128xf32, #tpu.memory_space<vmem>>, %arg10: memref<10x24x128xf32, #tpu.memory_space<vmem>>, %arg11: memref<1x8x128xf32, #tpu.memory_space<vmem>>, %arg12: memref<192x128xf32, #tpu.memory_space<vmem>>, %arg13: memref<384x128xf32, #tpu.memory_space<vmem>>) attributes {dimension_semantics = [#tpu.dimension_semantics<parallel>], iteration_bounds = array<i64: 2>, scalar_prefetch = 0 : i64, scratch_operands = 2 : i64, tpu.core_type = #tpu.core_type<tc>, window_params = [{transform_indices = @transform_0, window_bounds = array<i64: 1, 192, 128>}, {pipeline_mode = #tpu.pipeline_mode<synchronous>, transform_indices = @transform_1, window_bounds = array<i64: 24, 128>}, {pipeline_mode = #tpu.pipeline_mode<synchronous>, transform_indices = @transform_2, window_bounds = array<i64: 24, 128>}, {pipeline_mode = #tpu.pipeline_mode<synchronous>, transform_indices = @transform_3, window_bounds = array<i64: 10, 128, 256>}, {pipeline_mode = #tpu.pipeline_mode<synchronous>, transform_indices = @transform_4, window_bounds = array<i64: 20, 24, 24>}, {pipeline_mode = #tpu.pipeline_mode<synchronous>, transform_indices = @transform_5, window_bounds = array<i64: 10, 24, 128>}, {pipeline_mode = #tpu.pipeline_mode<synchronous>, transform_indices = @transform_6, window_bounds = array<i64: 90, 128, 128>}, {pipeline_mode = #tpu.pipeline_mode<synchronous>, transform_indices = @transform_7, window_bounds = array<i64: 10, 24, 128>}, {pipeline_mode = #tpu.pipeline_mode<synchronous>, transform_indices = @transform_8, window_bounds = array<i64: 10, 128, 128>}, {pipeline_mode = #tpu.pipeline_mode<synchronous>, transform_indices = @transform_9, window_bounds = array<i64: 10, 24, 128>}, {transform_indices = @transform_10, window_bounds = array<i64: 1, 8, 128>}]} {
    %c0 = arith.constant 0 : index
    %c0_0 = arith.constant 0 : index
    %c0_1 = arith.constant 0 : index
    %0 = vector.load %arg1[%c0, %c0_0, %c0_1] : memref<1x192x128xf32, #tpu.memory_space<vmem>>, vector<1x192x128xf32>
    %1 = vector.shape_cast %0 : vector<1x192x128xf32> to vector<192x128xf32>
    %2 = vector.shape_cast %1 : vector<192x128xf32> to vector<8x24x128xf32>
    %c0_2 = arith.constant 0 : index
    %c0_3 = arith.constant 0 : index
    %3 = vector.load %arg2[%c0_2, %c0_3] : memref<24x128xf32, #tpu.memory_space<vmem>>, vector<24x128xf32>
    %4 = vector.shape_cast %3 : vector<24x128xf32> to vector<1x24x128xf32>
    %5 = vector.broadcast %4 : vector<1x24x128xf32> to vector<8x24x128xf32>
    %6 = arith.mulf %2, %5 : vector<8x24x128xf32>
    %c0_4 = arith.constant 0 : index
    %c0_5 = arith.constant 0 : index
    %7 = vector.load %arg3[%c0_4, %c0_5] : memref<24x128xf32, #tpu.memory_space<vmem>>, vector<24x128xf32>
    %8 = vector.shape_cast %7 : vector<24x128xf32> to vector<1x24x128xf32>
    %9 = vector.broadcast %8 : vector<1x24x128xf32> to vector<8x24x128xf32>
    %10 = arith.addf %6, %9 : vector<8x24x128xf32>
    %11 = vector.shape_cast %10 : vector<8x24x128xf32> to vector<192x128xf32>
    %c0_6 = arith.constant 0 : index
    %c0_7 = arith.constant 0 : index
    %12 = vector.load %arg12[%c0_6, %c0_7] : memref<192x128xf32, #tpu.memory_space<vmem>>, vector<192x128xf32>
    tpu.vector_store %arg12[%c0_6, %c0_7], %11 {strides = array<i32>} : memref<192x128xf32, #tpu.memory_space<vmem>>, vector<192x128xf32>,
    %cst = arith.constant 0.000000e+00 : f32
    %13 = vector.broadcast %cst : f32 to vector<384x128xf32>
    %c0_8 = arith.constant 0 : index
    %c0_9 = arith.constant 0 : index
    %14 = vector.load %arg13[%c0_8, %c0_9] : memref<384x128xf32, #tpu.memory_space<vmem>>, vector<384x128xf32>
    tpu.vector_store %arg13[%c0_8, %c0_9], %13 {strides = array<i32>} : memref<384x128xf32, #tpu.memory_space<vmem>>, vector<384x128xf32>,
    %c0_i32 = arith.constant 0 : i32
    %c10_i32 = arith.constant 10 : i32
    %15 = arith.addi %c0_i32, %c10_i32 : i32
    %c1_i32 = arith.constant 1 : i32
    scf.for %arg14 = %c0_i32 to %15 step %c1_i32  : i32 {
      %c0_18 = arith.constant 0 : index
      %c0_19 = arith.constant 0 : index
      %24 = vector.load %arg12[%c0_18, %c0_19] : memref<192x128xf32, #tpu.memory_space<vmem>>, vector<192x128xf32>
      %25 = arith.index_cast %arg14 : i32 to index
      %c0_20 = arith.constant 0 : index
      %c0_21 = arith.constant 0 : index
      %26 = vector.load %arg4[%25, %c0_20, %c0_21] : memref<10x128x256xf32, #tpu.memory_space<vmem>>, vector<1x128x256xf32>
      %27 = vector.shape_cast %26 : vector<1x128x256xf32> to vector<128x256xf32>
      %cst_22 = arith.constant dense<0.000000e+00> : vector<192x256xf32>
      %28 = tpu.matmul %24, %27, %cst_22 {dimension_numbers = #tpu.dot_dimension_numbers<[1], [0], [0], [1], [0, 0, 1, 1], [], []>} : vector<192x128xf32>, vector<128x256xf32>, vector<192x256xf32> -> vector<192x256xf32>
      %29 = arith.index_cast %arg14 : i32 to index
      %c0_23 = arith.constant 0 : index
      %c0_24 = arith.constant 0 : index
      %30 = vector.load %arg6[%29, %c0_23, %c0_24] : memref<10x24x128xf32, #tpu.memory_space<vmem>>, vector<1x24x128xf32>
      %31 = vector.shape_cast %30 : vector<1x24x128xf32> to vector<24x128xf32>
      %32 = vector.extract_strided_slice %28 {offsets = [0, 0], sizes = [24, 128], strides = [1, 1]} : vector<192x256xf32> to vector<24x128xf32>
      %c2_i32 = arith.constant 2 : i32
      %33 = arith.muli %arg14, %c2_i32 : i32
      %c0_i32_25 = arith.constant 0 : i32
      %34 = arith.addi %33, %c0_i32_25 : i32
      %35 = arith.index_cast %34 : i32 to index
      %c0_26 = arith.constant 0 : index
      %c0_27 = arith.constant 0 : index
      %36 = vector.load %arg5[%35, %c0_26, %c0_27] : memref<20x24x24xf32, #tpu.memory_space<vmem>>, vector<1x24x24xf32>
      %37 = vector.shape_cast %36 : vector<1x24x24xf32> to vector<24x24xf32>
      %cst_28 = arith.constant dense<0.000000e+00> : vector<24x128xf32>
      %38 = tpu.matmul %37, %32, %cst_28 {dimension_numbers = #tpu.dot_dimension_numbers<[1], [0], [0], [1], [0, 0, 1, 1], [], []>} : vector<24x24xf32>, vector<24x128xf32>, vector<24x128xf32> -> vector<24x128xf32>
      %39 = arith.addf %31, %38 : vector<24x128xf32>
      %40 = vector.extract_strided_slice %28 {offsets = [0, 128], sizes = [24, 128], strides = [1, 1]} : vector<192x256xf32> to vector<24x128xf32>
      %c2_i32_29 = arith.constant 2 : i32
      %41 = arith.muli %arg14, %c2_i32_29 : i32
      %c1_i32_30 = arith.constant 1 : i32
      %42 = arith.addi %41, %c1_i32_30 : i32
      %43 = arith.index_cast %42 : i32 to index
      %c0_31 = arith.constant 0 : index
      %c0_32 = arith.constant 0 : index
      %44 = vector.load %arg5[%43, %c0_31, %c0_32] : memref<20x24x24xf32, #tpu.memory_space<vmem>>, vector<1x24x24xf32>
      %45 = vector.shape_cast %44 : vector<1x24x24xf32> to vector<24x24xf32>
      %cst_33 = arith.constant dense<0.000000e+00> : vector<24x128xf32>
      %46 = tpu.matmul %45, %40, %cst_33 {dimension_numbers = #tpu.dot_dimension_numbers<[1], [0], [0], [1], [0, 0, 1, 1], [], []>} : vector<24x24xf32>, vector<24x128xf32>, vector<24x128xf32> -> vector<24x128xf32>
      %47 = arith.addf %39, %46 : vector<24x128xf32>
      %cst_34 = arith.constant 0.000000e+00 : f32
      %48 = vector.broadcast %cst_34 : f32 to vector<24x128xf32>
      %49 = arith.maximumf %47, %48 : vector<24x128xf32>
      %c96 = arith.constant 96 : index
      %c0_35 = arith.constant 0 : index
      %50 = vector.load %arg13[%c96, %c0_35] : memref<384x128xf32, #tpu.memory_space<vmem>>, vector<24x128xf32>
      tpu.vector_store %arg13[%c96, %c0_35], %49 {strides = array<i32>} : memref<384x128xf32, #tpu.memory_space<vmem>>, vector<24x128xf32>,
      %51 = arith.index_cast %arg14 : i32 to index
      %c0_36 = arith.constant 0 : index
      %c0_37 = arith.constant 0 : index
      %52 = vector.load %arg6[%51, %c0_36, %c0_37] : memref<10x24x128xf32, #tpu.memory_space<vmem>>, vector<1x24x128xf32>
      %53 = vector.shape_cast %52 : vector<1x24x128xf32> to vector<24x128xf32>
      %54 = vector.extract_strided_slice %28 {offsets = [24, 0], sizes = [24, 128], strides = [1, 1]} : vector<192x256xf32> to vector<24x128xf32>
      %c2_i32_38 = arith.constant 2 : i32
      %55 = arith.muli %arg14, %c2_i32_38 : i32
      %c0_i32_39 = arith.constant 0 : i32
      %56 = arith.addi %55, %c0_i32_39 : i32
      %57 = arith.index_cast %56 : i32 to index
      %c0_40 = arith.constant 0 : index
      %c0_41 = arith.constant 0 : index
      %58 = vector.load %arg5[%57, %c0_40, %c0_41] : memref<20x24x24xf32, #tpu.memory_space<vmem>>, vector<1x24x24xf32>
      %59 = vector.shape_cast %58 : vector<1x24x24xf32> to vector<24x24xf32>
      %cst_42 = arith.constant dense<0.000000e+00> : vector<24x128xf32>
      %60 = tpu.matmul %59, %54, %cst_42 {dimension_numbers = #tpu.dot_dimension_numbers<[1], [0], [0], [1], [0, 0, 1, 1], [], []>} : vector<24x24xf32>, vector<24x128xf32>, vector<24x128xf32> -> vector<24x128xf32>
      %61 = arith.addf %53, %60 : vector<24x128xf32>
      %62 = vector.extract_strided_slice %28 {offsets = [24, 128], sizes = [24, 128], strides = [1, 1]} : vector<192x256xf32> to vector<24x128xf32>
      %c2_i32_43 = arith.constant 2 : i32
      %63 = arith.muli %arg14, %c2_i32_43 : i32
      %c1_i32_44 = arith.constant 1 : i32
      %64 = arith.addi %63, %c1_i32_44 : i32
      %65 = arith.index_cast %64 : i32 to index
      %c0_45 = arith.constant 0 : index
      %c0_46 = arith.constant 0 : index
      %66 = vector.load %arg5[%65, %c0_45, %c0_46] : memref<20x24x24xf32, #tpu.memory_space<vmem>>, vector<1x24x24xf32>
      %67 = vector.shape_cast %66 : vector<1x24x24xf32> to vector<24x24xf32>
      %cst_47 = arith.constant dense<0.000000e+00> : vector<24x128xf32>
      %68 = tpu.matmul %67, %62, %cst_47 {dimension_numbers = #tpu.dot_dimension_numbers<[1], [0], [0], [1], [0, 0, 1, 1], [], []>} : vector<24x24xf32>, vector<24x128xf32>, vector<24x128xf32> -> vector<24x128xf32>
      %69 = arith.addf %61, %68 : vector<24x128xf32>
      %cst_48 = arith.constant 0.000000e+00 : f32
      %70 = vector.broadcast %cst_48 : f32 to vector<24x128xf32>
      %71 = arith.maximumf %69, %70 : vector<24x128xf32>
      %c120 = arith.constant 120 : index
      %c0_49 = arith.constant 0 : index
      %72 = vector.load %arg13[%c120, %c0_49] : memref<384x128xf32, #tpu.memory_space<vmem>>, vector<24x128xf32>
      tpu.vector_store %arg13[%c120, %c0_49], %71 {strides = array<i32>} : memref<384x128xf32, #tpu.memory_space<vmem>>, vector<24x128xf32>,
      %73 = arith.index_cast %arg14 : i32 to index
      %c0_50 = arith.constant 0 : index
      %c0_51 = arith.constant 0 : index
      %74 = vector.load %arg6[%73, %c0_50, %c0_51] : memref<10x24x128xf32, #tpu.memory_space<vmem>>, vector<1x24x128xf32>
      %75 = vector.shape_cast %74 : vector<1x24x128xf32> to vector<24x128xf32>
      %76 = vector.extract_strided_slice %28 {offsets = [48, 0], sizes = [24, 128], strides = [1, 1]} : vector<192x256xf32> to vector<24x128xf32>
      %c2_i32_52 = arith.constant 2 : i32
      %77 = arith.muli %arg14, %c2_i32_52 : i32
      %c0_i32_53 = arith.constant 0 : i32
      %78 = arith.addi %77, %c0_i32_53 : i32
      %79 = arith.index_cast %78 : i32 to index
      %c0_54 = arith.constant 0 : index
      %c0_55 = arith.constant 0 : index
      %80 = vector.load %arg5[%79, %c0_54, %c0_55] : memref<20x24x24xf32, #tpu.memory_space<vmem>>, vector<1x24x24xf32>
      %81 = vector.shape_cast %80 : vector<1x24x24xf32> to vector<24x24xf32>
      %cst_56 = arith.constant dense<0.000000e+00> : vector<24x128xf32>
      %82 = tpu.matmul %81, %76, %cst_56 {dimension_numbers = #tpu.dot_dimension_numbers<[1], [0], [0], [1], [0, 0, 1, 1], [], []>} : vector<24x24xf32>, vector<24x128xf32>, vector<24x128xf32> -> vector<24x128xf32>
      %83 = arith.addf %75, %82 : vector<24x128xf32>
      %84 = vector.extract_strided_slice %28 {offsets = [48, 128], sizes = [24, 128], strides = [1, 1]} : vector<192x256xf32> to vector<24x128xf32>
      %c2_i32_57 = arith.constant 2 : i32
      %85 = arith.muli %arg14, %c2_i32_57 : i32
      %c1_i32_58 = arith.constant 1 : i32
      %86 = arith.addi %85, %c1_i32_58 : i32
      %87 = arith.index_cast %86 : i32 to index
      %c0_59 = arith.constant 0 : index
      %c0_60 = arith.constant 0 : index
      %88 = vector.load %arg5[%87, %c0_59, %c0_60] : memref<20x24x24xf32, #tpu.memory_space<vmem>>, vector<1x24x24xf32>
      %89 = vector.shape_cast %88 : vector<1x24x24xf32> to vector<24x24xf32>
      %cst_61 = arith.constant dense<0.000000e+00> : vector<24x128xf32>
      %90 = tpu.matmul %89, %84, %cst_61 {dimension_numbers = #tpu.dot_dimension_numbers<[1], [0], [0], [1], [0, 0, 1, 1], [], []>} : vector<24x24xf32>, vector<24x128xf32>, vector<24x128xf32> -> vector<24x128xf32>
      %91 = arith.addf %83, %90 : vector<24x128xf32>
      %cst_62 = arith.constant 0.000000e+00 : f32
      %92 = vector.broadcast %cst_62 : f32 to vector<24x128xf32>
      %93 = arith.maximumf %91, %92 : vector<24x128xf32>
      %c144 = arith.constant 144 : index
      %c0_63 = arith.constant 0 : index
      %94 = vector.load %arg13[%c144, %c0_63] : memref<384x128xf32, #tpu.memory_space<vmem>>, vector<24x128xf32>
      tpu.vector_store %arg13[%c144, %c0_63], %93 {strides = array<i32>} : memref<384x128xf32, #tpu.memory_space<vmem>>, vector<24x128xf32>,
      %95 = arith.index_cast %arg14 : i32 to index
      %c0_64 = arith.constant 0 : index
      %c0_65 = arith.constant 0 : index
      %96 = vector.load %arg6[%95, %c0_64, %c0_65] : memref<10x24x128xf32, #tpu.memory_space<vmem>>, vector<1x24x128xf32>
      %97 = vector.shape_cast %96 : vector<1x24x128xf32> to vector<24x128xf32>
      %98 = vector.extract_strided_slice %28 {offsets = [72, 0], sizes = [24, 128], strides = [1, 1]} : vector<192x256xf32> to vector<24x128xf32>
      %c2_i32_66 = arith.constant 2 : i32
      %99 = arith.muli %arg14, %c2_i32_66 : i32
      %c0_i32_67 = arith.constant 0 : i32
      %100 = arith.addi %99, %c0_i32_67 : i32
      %101 = arith.index_cast %100 : i32 to index
      %c0_68 = arith.constant 0 : index
      %c0_69 = arith.constant 0 : index
      %102 = vector.load %arg5[%101, %c0_68, %c0_69] : memref<20x24x24xf32, #tpu.memory_space<vmem>>, vector<1x24x24xf32>
      %103 = vector.shape_cast %102 : vector<1x24x24xf32> to vector<24x24xf32>
      %cst_70 = arith.constant dense<0.000000e+00> : vector<24x128xf32>
      %104 = tpu.matmul %103, %98, %cst_70 {dimension_numbers = #tpu.dot_dimension_numbers<[1], [0], [0], [1], [0, 0, 1, 1], [], []>} : vector<24x24xf32>, vector<24x128xf32>, vector<24x128xf32> -> vector<24x128xf32>
      %105 = arith.addf %97, %104 : vector<24x128xf32>
      %106 = vector.extract_strided_slice %28 {offsets = [72, 128], sizes = [24, 128], strides = [1, 1]} : vector<192x256xf32> to vector<24x128xf32>
      %c2_i32_71 = arith.constant 2 : i32
      %107 = arith.muli %arg14, %c2_i32_71 : i32
      %c1_i32_72 = arith.constant 1 : i32
      %108 = arith.addi %107, %c1_i32_72 : i32
      %109 = arith.index_cast %108 : i32 to index
      %c0_73 = arith.constant 0 : index
      %c0_74 = arith.constant 0 : index
      %110 = vector.load %arg5[%109, %c0_73, %c0_74] : memref<20x24x24xf32, #tpu.memory_space<vmem>>, vector<1x24x24xf32>
      %111 = vector.shape_cast %110 : vector<1x24x24xf32> to vector<24x24xf32>
      %cst_75 = arith.constant dense<0.000000e+00> : vector<24x128xf32>
      %112 = tpu.matmul %111, %106, %cst_75 {dimension_numbers = #tpu.dot_dimension_numbers<[1], [0], [0], [1], [0, 0, 1, 1], [], []>} : vector<24x24xf32>, vector<24x128xf32>, vector<24x128xf32> -> vector<24x128xf32>
      %113 = arith.addf %105, %112 : vector<24x128xf32>
      %cst_76 = arith.constant 0.000000e+00 : f32
      %114 = vector.broadcast %cst_76 : f32 to vector<24x128xf32>
      %115 = arith.maximumf %113, %114 : vector<24x128xf32>
      %c168 = arith.constant 168 : index
      %c0_77 = arith.constant 0 : index
      %116 = vector.load %arg13[%c168, %c0_77] : memref<384x128xf32, #tpu.memory_space<vmem>>, vector<24x128xf32>
      tpu.vector_store %arg13[%c168, %c0_77], %115 {strides = array<i32>} : memref<384x128xf32, #tpu.memory_space<vmem>>, vector<24x128xf32>,
      %117 = arith.index_cast %arg14 : i32 to index
      %c0_78 = arith.constant 0 : index
      %c0_79 = arith.constant 0 : index
      %118 = vector.load %arg6[%117, %c0_78, %c0_79] : memref<10x24x128xf32, #tpu.memory_space<vmem>>, vector<1x24x128xf32>
      %119 = vector.shape_cast %118 : vector<1x24x128xf32> to vector<24x128xf32>
      %120 = vector.extract_strided_slice %28 {offsets = [96, 0], sizes = [24, 128], strides = [1, 1]} : vector<192x256xf32> to vector<24x128xf32>
      %c2_i32_80 = arith.constant 2 : i32
      %121 = arith.muli %arg14, %c2_i32_80 : i32
      %c0_i32_81 = arith.constant 0 : i32
      %122 = arith.addi %121, %c0_i32_81 : i32
      %123 = arith.index_cast %122 : i32 to index
      %c0_82 = arith.constant 0 : index
      %c0_83 = arith.constant 0 : index
      %124 = vector.load %arg5[%123, %c0_82, %c0_83] : memref<20x24x24xf32, #tpu.memory_space<vmem>>, vector<1x24x24xf32>
      %125 = vector.shape_cast %124 : vector<1x24x24xf32> to vector<24x24xf32>
      %cst_84 = arith.constant dense<0.000000e+00> : vector<24x128xf32>
      %126 = tpu.matmul %125, %120, %cst_84 {dimension_numbers = #tpu.dot_dimension_numbers<[1], [0], [0], [1], [0, 0, 1, 1], [], []>} : vector<24x24xf32>, vector<24x128xf32>, vector<24x128xf32> -> vector<24x128xf32>
      %127 = arith.addf %119, %126 : vector<24x128xf32>
      %128 = vector.extract_strided_slice %28 {offsets = [96, 128], sizes = [24, 128], strides = [1, 1]} : vector<192x256xf32> to vector<24x128xf32>
      %c2_i32_85 = arith.constant 2 : i32
      %129 = arith.muli %arg14, %c2_i32_85 : i32
      %c1_i32_86 = arith.constant 1 : i32
      %130 = arith.addi %129, %c1_i32_86 : i32
      %131 = arith.index_cast %130 : i32 to index
      %c0_87 = arith.constant 0 : index
      %c0_88 = arith.constant 0 : index
      %132 = vector.load %arg5[%131, %c0_87, %c0_88] : memref<20x24x24xf32, #tpu.memory_space<vmem>>, vector<1x24x24xf32>
      %133 = vector.shape_cast %132 : vector<1x24x24xf32> to vector<24x24xf32>
      %cst_89 = arith.constant dense<0.000000e+00> : vector<24x128xf32>
      %134 = tpu.matmul %133, %128, %cst_89 {dimension_numbers = #tpu.dot_dimension_numbers<[1], [0], [0], [1], [0, 0, 1, 1], [], []>} : vector<24x24xf32>, vector<24x128xf32>, vector<24x128xf32> -> vector<24x128xf32>
      %135 = arith.addf %127, %134 : vector<24x128xf32>
      %cst_90 = arith.constant 0.000000e+00 : f32
      %136 = vector.broadcast %cst_90 : f32 to vector<24x128xf32>
      %137 = arith.maximumf %135, %136 : vector<24x128xf32>
      %c192 = arith.constant 192 : index
      %c0_91 = arith.constant 0 : index
      %138 = vector.load %arg13[%c192, %c0_91] : memref<384x128xf32, #tpu.memory_space<vmem>>, vector<24x128xf32>
      tpu.vector_store %arg13[%c192, %c0_91], %137 {strides = array<i32>} : memref<384x128xf32, #tpu.memory_space<vmem>>, vector<24x128xf32>,
      %139 = arith.index_cast %arg14 : i32 to index
      %c0_92 = arith.constant 0 : index
      %c0_93 = arith.constant 0 : index
      %140 = vector.load %arg6[%139, %c0_92, %c0_93] : memref<10x24x128xf32, #tpu.memory_space<vmem>>, vector<1x24x128xf32>
      %141 = vector.shape_cast %140 : vector<1x24x128xf32> to vector<24x128xf32>
      %142 = vector.extract_strided_slice %28 {offsets = [120, 0], sizes = [24, 128], strides = [1, 1]} : vector<192x256xf32> to vector<24x128xf32>
      %c2_i32_94 = arith.constant 2 : i32
      %143 = arith.muli %arg14, %c2_i32_94 : i32
      %c0_i32_95 = arith.constant 0 : i32
      %144 = arith.addi %143, %c0_i32_95 : i32
      %145 = arith.index_cast %144 : i32 to index
      %c0_96 = arith.constant 0 : index
      %c0_97 = arith.constant 0 : index
      %146 = vector.load %arg5[%145, %c0_96, %c0_97] : memref<20x24x24xf32, #tpu.memory_space<vmem>>, vector<1x24x24xf32>
      %147 = vector.shape_cast %146 : vector<1x24x24xf32> to vector<24x24xf32>
      %cst_98 = arith.constant dense<0.000000e+00> : vector<24x128xf32>
      %148 = tpu.matmul %147, %142, %cst_98 {dimension_numbers = #tpu.dot_dimension_numbers<[1], [0], [0], [1], [0, 0, 1, 1], [], []>} : vector<24x24xf32>, vector<24x128xf32>, vector<24x128xf32> -> vector<24x128xf32>
      %149 = arith.addf %141, %148 : vector<24x128xf32>
      %150 = vector.extract_strided_slice %28 {offsets = [120, 128], sizes = [24, 128], strides = [1, 1]} : vector<192x256xf32> to vector<24x128xf32>
      %c2_i32_99 = arith.constant 2 : i32
      %151 = arith.muli %arg14, %c2_i32_99 : i32
      %c1_i32_100 = arith.constant 1 : i32
      %152 = arith.addi %151, %c1_i32_100 : i32
      %153 = arith.index_cast %152 : i32 to index
      %c0_101 = arith.constant 0 : index
      %c0_102 = arith.constant 0 : index
      %154 = vector.load %arg5[%153, %c0_101, %c0_102] : memref<20x24x24xf32, #tpu.memory_space<vmem>>, vector<1x24x24xf32>
      %155 = vector.shape_cast %154 : vector<1x24x24xf32> to vector<24x24xf32>
      %cst_103 = arith.constant dense<0.000000e+00> : vector<24x128xf32>
      %156 = tpu.matmul %155, %150, %cst_103 {dimension_numbers = #tpu.dot_dimension_numbers<[1], [0], [0], [1], [0, 0, 1, 1], [], []>} : vector<24x24xf32>, vector<24x128xf32>, vector<24x128xf32> -> vector<24x128xf32>
      %157 = arith.addf %149, %156 : vector<24x128xf32>
      %cst_104 = arith.constant 0.000000e+00 : f32
      %158 = vector.broadcast %cst_104 : f32 to vector<24x128xf32>
      %159 = arith.maximumf %157, %158 : vector<24x128xf32>
      %c216 = arith.constant 216 : index
      %c0_105 = arith.constant 0 : index
      %160 = vector.load %arg13[%c216, %c0_105] : memref<384x128xf32, #tpu.memory_space<vmem>>, vector<24x128xf32>
      tpu.vector_store %arg13[%c216, %c0_105], %159 {strides = array<i32>} : memref<384x128xf32, #tpu.memory_space<vmem>>, vector<24x128xf32>,
      %161 = arith.index_cast %arg14 : i32 to index
      %c0_106 = arith.constant 0 : index
      %c0_107 = arith.constant 0 : index
      %162 = vector.load %arg6[%161, %c0_106, %c0_107] : memref<10x24x128xf32, #tpu.memory_space<vmem>>, vector<1x24x128xf32>
      %163 = vector.shape_cast %162 : vector<1x24x128xf32> to vector<24x128xf32>
      %164 = vector.extract_strided_slice %28 {offsets = [144, 0], sizes = [24, 128], strides = [1, 1]} : vector<192x256xf32> to vector<24x128xf32>
      %c2_i32_108 = arith.constant 2 : i32
      %165 = arith.muli %arg14, %c2_i32_108 : i32
      %c0_i32_109 = arith.constant 0 : i32
      %166 = arith.addi %165, %c0_i32_109 : i32
      %167 = arith.index_cast %166 : i32 to index
      %c0_110 = arith.constant 0 : index
      %c0_111 = arith.constant 0 : index
      %168 = vector.load %arg5[%167, %c0_110, %c0_111] : memref<20x24x24xf32, #tpu.memory_space<vmem>>, vector<1x24x24xf32>
      %169 = vector.shape_cast %168 : vector<1x24x24xf32> to vector<24x24xf32>
      %cst_112 = arith.constant dense<0.000000e+00> : vector<24x128xf32>
      %170 = tpu.matmul %169, %164, %cst_112 {dimension_numbers = #tpu.dot_dimension_numbers<[1], [0], [0], [1], [0, 0, 1, 1], [], []>} : vector<24x24xf32>, vector<24x128xf32>, vector<24x128xf32> -> vector<24x128xf32>
      %171 = arith.addf %163, %170 : vector<24x128xf32>
      %172 = vector.extract_strided_slice %28 {offsets = [144, 128], sizes = [24, 128], strides = [1, 1]} : vector<192x256xf32> to vector<24x128xf32>
      %c2_i32_113 = arith.constant 2 : i32
      %173 = arith.muli %arg14, %c2_i32_113 : i32
      %c1_i32_114 = arith.constant 1 : i32
      %174 = arith.addi %173, %c1_i32_114 : i32
      %175 = arith.index_cast %174 : i32 to index
      %c0_115 = arith.constant 0 : index
      %c0_116 = arith.constant 0 : index
      %176 = vector.load %arg5[%175, %c0_115, %c0_116] : memref<20x24x24xf32, #tpu.memory_space<vmem>>, vector<1x24x24xf32>
      %177 = vector.shape_cast %176 : vector<1x24x24xf32> to vector<24x24xf32>
      %cst_117 = arith.constant dense<0.000000e+00> : vector<24x128xf32>
      %178 = tpu.matmul %177, %172, %cst_117 {dimension_numbers = #tpu.dot_dimension_numbers<[1], [0], [0], [1], [0, 0, 1, 1], [], []>} : vector<24x24xf32>, vector<24x128xf32>, vector<24x128xf32> -> vector<24x128xf32>
      %179 = arith.addf %171, %178 : vector<24x128xf32>
      %cst_118 = arith.constant 0.000000e+00 : f32
      %180 = vector.broadcast %cst_118 : f32 to vector<24x128xf32>
      %181 = arith.maximumf %179, %180 : vector<24x128xf32>
      %c240 = arith.constant 240 : index
      %c0_119 = arith.constant 0 : index
      %182 = vector.load %arg13[%c240, %c0_119] : memref<384x128xf32, #tpu.memory_space<vmem>>, vector<24x128xf32>
      tpu.vector_store %arg13[%c240, %c0_119], %181 {strides = array<i32>} : memref<384x128xf32, #tpu.memory_space<vmem>>, vector<24x128xf32>,
      %183 = arith.index_cast %arg14 : i32 to index
      %c0_120 = arith.constant 0 : index
      %c0_121 = arith.constant 0 : index
      %184 = vector.load %arg6[%183, %c0_120, %c0_121] : memref<10x24x128xf32, #tpu.memory_space<vmem>>, vector<1x24x128xf32>
      %185 = vector.shape_cast %184 : vector<1x24x128xf32> to vector<24x128xf32>
      %186 = vector.extract_strided_slice %28 {offsets = [168, 0], sizes = [24, 128], strides = [1, 1]} : vector<192x256xf32> to vector<24x128xf32>
      %c2_i32_122 = arith.constant 2 : i32
      %187 = arith.muli %arg14, %c2_i32_122 : i32
      %c0_i32_123 = arith.constant 0 : i32
      %188 = arith.addi %187, %c0_i32_123 : i32
      %189 = arith.index_cast %188 : i32 to index
      %c0_124 = arith.constant 0 : index
      %c0_125 = arith.constant 0 : index
      %190 = vector.load %arg5[%189, %c0_124, %c0_125] : memref<20x24x24xf32, #tpu.memory_space<vmem>>, vector<1x24x24xf32>
      %191 = vector.shape_cast %190 : vector<1x24x24xf32> to vector<24x24xf32>
      %cst_126 = arith.constant dense<0.000000e+00> : vector<24x128xf32>
      %192 = tpu.matmul %191, %186, %cst_126 {dimension_numbers = #tpu.dot_dimension_numbers<[1], [0], [0], [1], [0, 0, 1, 1], [], []>} : vector<24x24xf32>, vector<24x128xf32>, vector<24x128xf32> -> vector<24x128xf32>
      %193 = arith.addf %185, %192 : vector<24x128xf32>
      %194 = vector.extract_strided_slice %28 {offsets = [168, 128], sizes = [24, 128], strides = [1, 1]} : vector<192x256xf32> to vector<24x128xf32>
      %c2_i32_127 = arith.constant 2 : i32
      %195 = arith.muli %arg14, %c2_i32_127 : i32
      %c1_i32_128 = arith.constant 1 : i32
      %196 = arith.addi %195, %c1_i32_128 : i32
      %197 = arith.index_cast %196 : i32 to index
      %c0_129 = arith.constant 0 : index
      %c0_130 = arith.constant 0 : index
      %198 = vector.load %arg5[%197, %c0_129, %c0_130] : memref<20x24x24xf32, #tpu.memory_space<vmem>>, vector<1x24x24xf32>
      %199 = vector.shape_cast %198 : vector<1x24x24xf32> to vector<24x24xf32>
      %cst_131 = arith.constant dense<0.000000e+00> : vector<24x128xf32>
      %200 = tpu.matmul %199, %194, %cst_131 {dimension_numbers = #tpu.dot_dimension_numbers<[1], [0], [0], [1], [0, 0, 1, 1], [], []>} : vector<24x24xf32>, vector<24x128xf32>, vector<24x128xf32> -> vector<24x128xf32>
      %201 = arith.addf %193, %200 : vector<24x128xf32>
      %cst_132 = arith.constant 0.000000e+00 : f32
      %202 = vector.broadcast %cst_132 : f32 to vector<24x128xf32>
      %203 = arith.maximumf %201, %202 : vector<24x128xf32>
      %c264 = arith.constant 264 : index
      %c0_133 = arith.constant 0 : index
      %204 = vector.load %arg13[%c264, %c0_133] : memref<384x128xf32, #tpu.memory_space<vmem>>, vector<24x128xf32>
      tpu.vector_store %arg13[%c264, %c0_133], %203 {strides = array<i32>} : memref<384x128xf32, #tpu.memory_space<vmem>>, vector<24x128xf32>,
      %205 = arith.index_cast %arg14 : i32 to index
      %c0_134 = arith.constant 0 : index
      %c0_135 = arith.constant 0 : index
      %206 = vector.load %arg9[%205, %c0_134, %c0_135] : memref<10x128x128xf32, #tpu.memory_space<vmem>>, vector<1x128x128xf32>
      %207 = vector.shape_cast %206 : vector<1x128x128xf32> to vector<128x128xf32>
      %cst_136 = arith.constant dense<0.000000e+00> : vector<192x128xf32>
      %208 = tpu.matmul %24, %207, %cst_136 {dimension_numbers = #tpu.dot_dimension_numbers<[1], [0], [0], [1], [0, 0, 1, 1], [], []>} : vector<192x128xf32>, vector<128x128xf32>, vector<192x128xf32> -> vector<192x128xf32>
      %c0_137 = arith.constant 0 : index
      %c0_138 = arith.constant 0 : index
      %209 = vector.load %arg13[%c0_137, %c0_138] : memref<384x128xf32, #tpu.memory_space<vmem>>, vector<192x128xf32>
      %c9_i32 = arith.constant 9 : i32
      %210 = arith.muli %arg14, %c9_i32 : i32
      %c0_i32_139 = arith.constant 0 : i32
      %211 = arith.addi %210, %c0_i32_139 : i32
      %212 = arith.index_cast %211 : i32 to index
      %c0_140 = arith.constant 0 : index
      %c0_141 = arith.constant 0 : index
      %213 = vector.load %arg7[%212, %c0_140, %c0_141] : memref<90x128x128xf32, #tpu.memory_space<vmem>>, vector<1x128x128xf32>
      %214 = vector.shape_cast %213 : vector<1x128x128xf32> to vector<128x128xf32>
      %cst_142 = arith.constant dense<0.000000e+00> : vector<192x128xf32>
      %215 = tpu.matmul %209, %214, %cst_142 {dimension_numbers = #tpu.dot_dimension_numbers<[1], [0], [0], [1], [0, 0, 1, 1], [], []>} : vector<192x128xf32>, vector<128x128xf32>, vector<192x128xf32> -> vector<192x128xf32>
      %216 = arith.addf %208, %215 : vector<192x128xf32>
      %c24 = arith.constant 24 : index
      %c0_143 = arith.constant 0 : index
      %217 = vector.load %arg13[%c24, %c0_143] : memref<384x128xf32, #tpu.memory_space<vmem>>, vector<192x128xf32>
      %c9_i32_144 = arith.constant 9 : i32
      %218 = arith.muli %arg14, %c9_i32_144 : i32
      %c1_i32_145 = arith.constant 1 : i32
      %219 = arith.addi %218, %c1_i32_145 : i32
      %220 = arith.index_cast %219 : i32 to index
      %c0_146 = arith.constant 0 : index
      %c0_147 = arith.constant 0 : index
      %221 = vector.load %arg7[%220, %c0_146, %c0_147] : memref<90x128x128xf32, #tpu.memory_space<vmem>>, vector<1x128x128xf32>
      %222 = vector.shape_cast %221 : vector<1x128x128xf32> to vector<128x128xf32>
      %cst_148 = arith.constant dense<0.000000e+00> : vector<192x128xf32>
      %223 = tpu.matmul %217, %222, %cst_148 {dimension_numbers = #tpu.dot_dimension_numbers<[1], [0], [0], [1], [0, 0, 1, 1], [], []>} : vector<192x128xf32>, vector<128x128xf32>, vector<192x128xf32> -> vector<192x128xf32>
      %224 = arith.addf %216, %223 : vector<192x128xf32>
      %c48 = arith.constant 48 : index
      %c0_149 = arith.constant 0 : index
      %225 = vector.load %arg13[%c48, %c0_149] : memref<384x128xf32, #tpu.memory_space<vmem>>, vector<192x128xf32>
      %c9_i32_150 = arith.constant 9 : i32
      %226 = arith.muli %arg14, %c9_i32_150 : i32
      %c2_i32_151 = arith.constant 2 : i32
      %227 = arith.addi %226, %c2_i32_151 : i32
      %228 = arith.index_cast %227 : i32 to index
      %c0_152 = arith.constant 0 : index
      %c0_153 = arith.constant 0 : index
      %229 = vector.load %arg7[%228, %c0_152, %c0_153] : memref<90x128x128xf32, #tpu.memory_space<vmem>>, vector<1x128x128xf32>
      %230 = vector.shape_cast %229 : vector<1x128x128xf32> to vector<128x128xf32>
      %cst_154 = arith.constant dense<0.000000e+00> : vector<192x128xf32>
      %231 = tpu.matmul %225, %230, %cst_154 {dimension_numbers = #tpu.dot_dimension_numbers<[1], [0], [0], [1], [0, 0, 1, 1], [], []>} : vector<192x128xf32>, vector<128x128xf32>, vector<192x128xf32> -> vector<192x128xf32>
      %232 = arith.addf %224, %231 : vector<192x128xf32>
      %c72 = arith.constant 72 : index
      %c0_155 = arith.constant 0 : index
      %233 = vector.load %arg13[%c72, %c0_155] : memref<384x128xf32, #tpu.memory_space<vmem>>, vector<192x128xf32>
      %c9_i32_156 = arith.constant 9 : i32
      %234 = arith.muli %arg14, %c9_i32_156 : i32
      %c3_i32 = arith.constant 3 : i32
      %235 = arith.addi %234, %c3_i32 : i32
      %236 = arith.index_cast %235 : i32 to index
      %c0_157 = arith.constant 0 : index
      %c0_158 = arith.constant 0 : index
      %237 = vector.load %arg7[%236, %c0_157, %c0_158] : memref<90x128x128xf32, #tpu.memory_space<vmem>>, vector<1x128x128xf32>
      %238 = vector.shape_cast %237 : vector<1x128x128xf32> to vector<128x128xf32>
      %cst_159 = arith.constant dense<0.000000e+00> : vector<192x128xf32>
      %239 = tpu.matmul %233, %238, %cst_159 {dimension_numbers = #tpu.dot_dimension_numbers<[1], [0], [0], [1], [0, 0, 1, 1], [], []>} : vector<192x128xf32>, vector<128x128xf32>, vector<192x128xf32> -> vector<192x128xf32>
      %240 = arith.addf %232, %239 : vector<192x128xf32>
      %c96_160 = arith.constant 96 : index
      %c0_161 = arith.constant 0 : index
      %241 = vector.load %arg13[%c96_160, %c0_161] : memref<384x128xf32, #tpu.memory_space<vmem>>, vector<192x128xf32>
      %c9_i32_162 = arith.constant 9 : i32
      %242 = arith.muli %arg14, %c9_i32_162 : i32
      %c4_i32 = arith.constant 4 : i32
      %243 = arith.addi %242, %c4_i32 : i32
      %244 = arith.index_cast %243 : i32 to index
      %c0_163 = arith.constant 0 : index
      %c0_164 = arith.constant 0 : index
      %245 = vector.load %arg7[%244, %c0_163, %c0_164] : memref<90x128x128xf32, #tpu.memory_space<vmem>>, vector<1x128x128xf32>
      %246 = vector.shape_cast %245 : vector<1x128x128xf32> to vector<128x128xf32>
      %cst_165 = arith.constant dense<0.000000e+00> : vector<192x128xf32>
      %247 = tpu.matmul %241, %246, %cst_165 {dimension_numbers = #tpu.dot_dimension_numbers<[1], [0], [0], [1], [0, 0, 1, 1], [], []>} : vector<192x128xf32>, vector<128x128xf32>, vector<192x128xf32> -> vector<192x128xf32>
      %248 = arith.addf %240, %247 : vector<192x128xf32>
      %c120_166 = arith.constant 120 : index
      %c0_167 = arith.constant 0 : index
      %249 = vector.load %arg13[%c120_166, %c0_167] : memref<384x128xf32, #tpu.memory_space<vmem>>, vector<192x128xf32>
      %c9_i32_168 = arith.constant 9 : i32
      %250 = arith.muli %arg14, %c9_i32_168 : i32
      %c5_i32 = arith.constant 5 : i32
      %251 = arith.addi %250, %c5_i32 : i32
      %252 = arith.index_cast %251 : i32 to index
      %c0_169 = arith.constant 0 : index
      %c0_170 = arith.constant 0 : index
      %253 = vector.load %arg7[%252, %c0_169, %c0_170] : memref<90x128x128xf32, #tpu.memory_space<vmem>>, vector<1x128x128xf32>
      %254 = vector.shape_cast %253 : vector<1x128x128xf32> to vector<128x128xf32>
      %cst_171 = arith.constant dense<0.000000e+00> : vector<192x128xf32>
      %255 = tpu.matmul %249, %254, %cst_171 {dimension_numbers = #tpu.dot_dimension_numbers<[1], [0], [0], [1], [0, 0, 1, 1], [], []>} : vector<192x128xf32>, vector<128x128xf32>, vector<192x128xf32> -> vector<192x128xf32>
      %256 = arith.addf %248, %255 : vector<192x128xf32>
      %c144_172 = arith.constant 144 : index
      %c0_173 = arith.constant 0 : index
      %257 = vector.load %arg13[%c144_172, %c0_173] : memref<384x128xf32, #tpu.memory_space<vmem>>, vector<192x128xf32>
      %c9_i32_174 = arith.constant 9 : i32
      %258 = arith.muli %arg14, %c9_i32_174 : i32
      %c6_i32 = arith.constant 6 : i32
      %259 = arith.addi %258, %c6_i32 : i32
      %260 = arith.index_cast %259 : i32 to index
      %c0_175 = arith.constant 0 : index
      %c0_176 = arith.constant 0 : index
      %261 = vector.load %arg7[%260, %c0_175, %c0_176] : memref<90x128x128xf32, #tpu.memory_space<vmem>>, vector<1x128x128xf32>
      %262 = vector.shape_cast %261 : vector<1x128x128xf32> to vector<128x128xf32>
      %cst_177 = arith.constant dense<0.000000e+00> : vector<192x128xf32>
      %263 = tpu.matmul %257, %262, %cst_177 {dimension_numbers = #tpu.dot_dimension_numbers<[1], [0], [0], [1], [0, 0, 1, 1], [], []>} : vector<192x128xf32>, vector<128x128xf32>, vector<192x128xf32> -> vector<192x128xf32>
      %264 = arith.addf %256, %263 : vector<192x128xf32>
      %c168_178 = arith.constant 168 : index
      %c0_179 = arith.constant 0 : index
      %265 = vector.load %arg13[%c168_178, %c0_179] : memref<384x128xf32, #tpu.memory_space<vmem>>, vector<192x128xf32>
      %c9_i32_180 = arith.constant 9 : i32
      %266 = arith.muli %arg14, %c9_i32_180 : i32
      %c7_i32 = arith.constant 7 : i32
      %267 = arith.addi %266, %c7_i32 : i32
      %268 = arith.index_cast %267 : i32 to index
      %c0_181 = arith.constant 0 : index
      %c0_182 = arith.constant 0 : index
      %269 = vector.load %arg7[%268, %c0_181, %c0_182] : memref<90x128x128xf32, #tpu.memory_space<vmem>>, vector<1x128x128xf32>
      %270 = vector.shape_cast %269 : vector<1x128x128xf32> to vector<128x128xf32>
      %cst_183 = arith.constant dense<0.000000e+00> : vector<192x128xf32>
      %271 = tpu.matmul %265, %270, %cst_183 {dimension_numbers = #tpu.dot_dimension_numbers<[1], [0], [0], [1], [0, 0, 1, 1], [], []>} : vector<192x128xf32>, vector<128x128xf32>, vector<192x128xf32> -> vector<192x128xf32>
      %272 = arith.addf %264, %271 : vector<192x128xf32>
      %c192_184 = arith.constant 192 : index
      %c0_185 = arith.constant 0 : index
      %273 = vector.load %arg13[%c192_184, %c0_185] : memref<384x128xf32, #tpu.memory_space<vmem>>, vector<192x128xf32>
      %c9_i32_186 = arith.constant 9 : i32
      %274 = arith.muli %arg14, %c9_i32_186 : i32
      %c8_i32 = arith.constant 8 : i32
      %275 = arith.addi %274, %c8_i32 : i32
      %276 = arith.index_cast %275 : i32 to index
      %c0_187 = arith.constant 0 : index
      %c0_188 = arith.constant 0 : index
      %277 = vector.load %arg7[%276, %c0_187, %c0_188] : memref<90x128x128xf32, #tpu.memory_space<vmem>>, vector<1x128x128xf32>
      %278 = vector.shape_cast %277 : vector<1x128x128xf32> to vector<128x128xf32>
      %cst_189 = arith.constant dense<0.000000e+00> : vector<192x128xf32>
      %279 = tpu.matmul %273, %278, %cst_189 {dimension_numbers = #tpu.dot_dimension_numbers<[1], [0], [0], [1], [0, 0, 1, 1], [], []>} : vector<192x128xf32>, vector<128x128xf32>, vector<192x128xf32> -> vector<192x128xf32>
      %280 = arith.addf %272, %279 : vector<192x128xf32>
      %281 = vector.shape_cast %280 : vector<192x128xf32> to vector<8x24x128xf32>
      %282 = arith.index_cast %arg14 : i32 to index
      %c0_190 = arith.constant 0 : index
      %c0_191 = arith.constant 0 : index
      %283 = vector.load %arg8[%282, %c0_190, %c0_191] : memref<10x24x128xf32, #tpu.memory_space<vmem>>, vector<1x24x128xf32>
      %284 = vector.shape_cast %283 : vector<1x24x128xf32> to vector<24x128xf32>
      %285 = arith.index_cast %arg14 : i32 to index
      %c0_192 = arith.constant 0 : index
      %c0_193 = arith.constant 0 : index
      %286 = vector.load %arg10[%285, %c0_192, %c0_193] : memref<10x24x128xf32, #tpu.memory_space<vmem>>, vector<1x24x128xf32>
      %287 = vector.shape_cast %286 : vector<1x24x128xf32> to vector<24x128xf32>
      %288 = arith.addf %284, %287 : vector<24x128xf32>
      %289 = vector.shape_cast %288 : vector<24x128xf32> to vector<1x24x128xf32>
      %290 = vector.broadcast %289 : vector<1x24x128xf32> to vector<8x24x128xf32>
      %291 = arith.addf %281, %290 : vector<8x24x128xf32>
      %cst_194 = arith.constant 0.000000e+00 : f32
      %292 = vector.broadcast %cst_194 : f32 to vector<8x24x128xf32>
      %293 = arith.maximumf %291, %292 : vector<8x24x128xf32>
      %294 = vector.shape_cast %293 : vector<8x24x128xf32> to vector<192x128xf32>
      %c0_195 = arith.constant 0 : index
      %c0_196 = arith.constant 0 : index
      %295 = vector.load %arg12[%c0_195, %c0_196] : memref<192x128xf32, #tpu.memory_space<vmem>>, vector<192x128xf32>
      tpu.vector_store %arg12[%c0_195, %c0_196], %294 {strides = array<i32>} : memref<192x128xf32, #tpu.memory_space<vmem>>, vector<192x128xf32>,
    }
    %c10_i32_10 = arith.constant 10 : i32
    %c0_11 = arith.constant 0 : index
    %c0_12 = arith.constant 0 : index
    %16 = vector.load %arg12[%c0_11, %c0_12] : memref<192x128xf32, #tpu.memory_space<vmem>>, vector<192x128xf32>
    %17 = vector.shape_cast %16 : vector<192x128xf32> to vector<8x24x128xf32>
    %cst_13 = arith.constant dense<0.000000e+00> : vector<8x128xf32>
    %18 = vector.multi_reduction <add>, %17, %cst_13 [1] : vector<8x24x128xf32> to vector<8x128xf32>
    %cst_14 = arith.constant 0.0588235296 : f32
    %19 = vector.broadcast %cst_14 : f32 to vector<8x128xf32>
    %20 = arith.mulf %18, %19 : vector<8x128xf32>
    %c0_15 = arith.constant 0 : index
    %c0_16 = arith.constant 0 : index
    %c0_17 = arith.constant 0 : index
    %21 = vector.load %arg11[%c0_15, %c0_16, %c0_17] : memref<1x8x128xf32, #tpu.memory_space<vmem>>, vector<1x8x128xf32>
    %22 = vector.shape_cast %21 : vector<1x8x128xf32> to vector<8x128xf32>
    %23 = vector.shape_cast %20 : vector<8x128xf32> to vector<1x8x128xf32>
    tpu.vector_store %arg11[%c0_15, %c0_16, %c0_17], %23 {strides = array<i32>} : memref<1x8x128xf32, #tpu.memory_space<vmem>>, vector<1x8x128xf32>,
    return
  }
  func.func @transform_0(%arg0: i32) -> (i32, i32, i32) {
    %c0_i32 = arith.constant 0 : i32
    %c0_i32_0 = arith.constant 0 : i32
    %c0_i32_1 = arith.constant 0 : i32
    return %arg0, %c0_i32, %c0_i32_0 : i32, i32, i32
  }
  func.func @transform_1(%arg0: i32) -> (i32, i32) {
    %c0_i32 = arith.constant 0 : i32
    %c0_i32_0 = arith.constant 0 : i32
    %c0_i32_1 = arith.constant 0 : i32
    return %c0_i32, %c0_i32_0 : i32, i32
  }
  func.func @transform_2(%arg0: i32) -> (i32, i32) {
    %c0_i32 = arith.constant 0 : i32
    %c0_i32_0 = arith.constant 0 : i32
    %c0_i32_1 = arith.constant 0 : i32
    return %c0_i32, %c0_i32_0 : i32, i32
  }
  func.func @transform_3(%arg0: i32) -> (i32, i32, i32) {
    %c0_i32 = arith.constant 0 : i32
    %c0_i32_0 = arith.constant 0 : i32
    %c0_i32_1 = arith.constant 0 : i32
    %c0_i32_2 = arith.constant 0 : i32
    return %c0_i32, %c0_i32_0, %c0_i32_1 : i32, i32, i32
  }
  func.func @transform_4(%arg0: i32) -> (i32, i32, i32) {
    %c0_i32 = arith.constant 0 : i32
    %c0_i32_0 = arith.constant 0 : i32
    %c0_i32_1 = arith.constant 0 : i32
    %c0_i32_2 = arith.constant 0 : i32
    return %c0_i32, %c0_i32_0, %c0_i32_1 : i32, i32, i32
  }
  func.func @transform_5(%arg0: i32) -> (i32, i32, i32) {
    %c0_i32 = arith.constant 0 : i32
    %c0_i32_0 = arith.constant 0 : i32
    %c0_i32_1 = arith.constant 0 : i32
    %c0_i32_2 = arith.constant 0 : i32
    return %c0_i32, %c0_i32_0, %c0_i32_1 : i32, i32, i32
  }
  func.func @transform_6(%arg0: i32) -> (i32, i32, i32) {
    %c0_i32 = arith.constant 0 : i32
    %c0_i32_0 = arith.constant 0 : i32
    %c0_i32_1 = arith.constant 0 : i32
    %c0_i32_2 = arith.constant 0 : i32
    return %c0_i32, %c0_i32_0, %c0_i32_1 : i32, i32, i32
  }
  func.func @transform_7(%arg0: i32) -> (i32, i32, i32) {
    %c0_i32 = arith.constant 0 : i32
    %c0_i32_0 = arith.constant 0 : i32
    %c0_i32_1 = arith.constant 0 : i32
    %c0_i32_2 = arith.constant 0 : i32
    return %c0_i32, %c0_i32_0, %c0_i32_1 : i32, i32, i32
  }
  func.func @transform_8(%arg0: i32) -> (i32, i32, i32) {
    %c0_i32 = arith.constant 0 : i32
    %c0_i32_0 = arith.constant 0 : i32
    %c0_i32_1 = arith.constant 0 : i32
    %c0_i32_2 = arith.constant 0 : i32
    return %c0_i32, %c0_i32_0, %c0_i32_1 : i32, i32, i32
  }
  func.func @transform_9(%arg0: i32) -> (i32, i32, i32) {
    %c0_i32 = arith.constant 0 : i32
    %c0_i32_0 = arith.constant 0 : i32
    %c0_i32_1 = arith.constant 0 : i32
    %c0_i32_2 = arith.constant 0 : i32
    return %c0_i32, %c0_i32_0, %c0_i32_1 : i32, i32, i32
  }
  func.func @transform_10(%arg0: i32) -> (i32, i32, i32) {
    %c0_i32 = arith.constant 0 : i32
    %c0_i32_0 = arith.constant 0 : i32
    %c0_i32_1 = arith.constant 0 : i32
    return %arg0, %c0_i32, %c0_i32_0 : i32, i32, i32
  }
}

</mosaic_0001>

<llo_original>
// kernel: model_forward_pallas.1
$region0: #{model_forward_pallas.1}
  #allocation0 [shape = 'u32[]', space=smem, size = 0x4, offset = 0x4, fixed_abs, tag = 'smem constant byte address 0x4 - core index']
  #allocation1 [shape = 'u32[144,128]{1,0:T(1,128)}', space=vmem, size = 0x12000, scoped, tag = 'internal scratch']
  #allocation2 [shape = 'f32[192,128]{1,0:T(8,128)}', space=vmem, size = 0x18000, scoped, tag = 'scratch operand']
  #allocation3 [shape = 'f32[384,128]{1,0:T(8,128)}', space=vmem, size = 0x30000, scoped, tag = 'scratch operand']
  %s0 = inlined_call_operand.vmem [shape: f32[2,192,128], index: 0, kind: input, shape index: {}]
  %s1 = inlined_call_operand.hbm [shape: f32[24,128], index: 1, kind: input, shape index: {}]
  %s2 = inlined_call_operand.hbm [shape: f32[24,128], index: 2, kind: input, shape index: {}]
  %s3 = inlined_call_operand.hbm [shape: f32[10,128,256], index: 3, kind: input, shape index: {}]
  %s4 = inlined_call_operand.hbm [shape: f32[20,24,24], index: 4, kind: input, shape index: {}]
  %s5 = inlined_call_operand.hbm [shape: f32[10,24,128], index: 5, kind: input, shape index: {}]
  %s6 = inlined_call_operand.hbm [shape: f32[90,128,128], index: 6, kind: input, shape index: {}]
  %s7 = inlined_call_operand.hbm [shape: f32[10,24,128], index: 7, kind: input, shape index: {}]
  %s8 = inlined_call_operand.hbm [shape: f32[10,128,128], index: 8, kind: input, shape index: {}]
  %s9 = inlined_call_operand.hbm [shape: f32[10,24,128], index: 9, kind: input, shape index: {}]
  %s10 = inlined_call_operand.vmem [shape: f32[2,8,128], index: 10, kind: output, shape index: {}]
  %s11 = sld [smem:[#allocation0]]
  $region116: #{model_forward_pallas.1} parent=0
    _
  %s13 = ssub.s32 1, %s11
  %s14 = scalar_select 0, %s13, %s11
  $region1: #{model_forward_pallas.1} parent=0
    #allocation4 [shape = 'u8[12288]{0}', space=vmem, size = 0x3000, scoped, tag = 'input window, operand 1, single buffered']
    #allocation5 [shape = 's32[2]{0}', space=sflag, size = 0x8, scoped, tag = 'scoped memory for model_forward_pallas.1']
    #allocation6 [shape = 'u8[12288]{0}', space=vmem, size = 0x3000, scoped, tag = 'input window, operand 2, single buffered']
    #allocation7 [shape = 's32[1]{0}', space=sflag, size = 0x4, scoped, tag = 'scoped memory for model_forward_pallas.1']
    #allocation8 [shape = 'u8[1310720]{0}', space=vmem, size = 0x140000, scoped, tag = 'input window, operand 3, single buffered']
    #allocation9 [shape = 'u8[245760]{0}', space=vmem, size = 0x3c000, scoped, tag = 'input window, operand 4, single buffered']
    #allocation10 [shape = 's32[1]{0}', space=sflag, size = 0x4, scoped, tag = 'scoped memory for model_forward_pallas.1']
    #allocation11 [shape = 'u8[122880]{0}', space=vmem, size = 0x1e000, scoped, tag = 'input window, operand 5, single buffered']
    #allocation12 [shape = 'u8[5898240]{0}', space=vmem, size = 0x5a0000, scoped, tag = 'input window, operand 6, single buffered']
    #allocation13 [shape = 's32[1]{0}', space=sflag, size = 0x4, scoped, tag = 'scoped memory for model_forward_pallas.1']
    #allocation14 [shape = 'u8[122880]{0}', space=vmem, size = 0x1e000, scoped, tag = 'input window, operand 7, single buffered']
    #allocation15 [shape = 'u8[655360]{0}', space=vmem, size = 0xa0000, scoped, tag = 'input window, operand 8, single buffered']
    #allocation16 [shape = 's32[1]{0}', space=sflag, size = 0x4, scoped, tag = 'scoped memory for model_forward_pallas.1']
    #allocation17 [shape = 'u8[122880]{0}', space=vmem, size = 0x1e000, scoped, tag = 'input window, operand 9, single buffered']
    %15 = vsyncpa [#allocation5], 0
    %16 = vsyncpa [#allocation7], 0
    %17 = vsyncpa [#allocation10], 0
    %18 = vsyncpa [#allocation13], 0
    %19 = vsyncpa [#allocation16], 0
    loop: start=0, step=1, limit=4
    $region2: #{model_forward_pallas.1} parent=1 // loop_pre_header
      _
    $region3: #{model_forward_pallas.1} parent=1 // loop_header
      %s21 = sphi 0, %s25
      %p22 = scmp.ge.s32.totalorder %s21, 4
      %s31 = sphi 0, %s33
      %s34 = sphi 0, %s31
      %s35 = sphi 0, %s34
      %s51 = sphi 0, %s35
      %s55 = sphi 0, %s55
      %s57 = sphi 0, %s55
      %s58 = sphi 0, %s57
      %s72 = sphi 0, %s58
      %s76 = sphi 0, %s76
      %s78 = sphi 0, %s76
      %s79 = sphi 0, %s78
      %s93 = sphi 0, %s79
      %s97 = sphi 0, %s97
      %s99 = sphi 0, %s97
      %s100 = sphi 0, %s99
      %s114 = sphi 0, %s100
      %s118 = sphi 0, %s118
      %s120 = sphi 0, %s118
      %s121 = sphi 0, %s120
      %s135 = sphi 0, %s121
      %s139 = sphi 0, %s139
      %s141 = sphi 0, %s139
      %s142 = sphi 0, %s141
      %s156 = sphi 0, %s142
      %s160 = sphi 0, %s160
      %s162 = sphi 0, %s160
      %s163 = sphi 0, %s162
      %s177 = sphi 0, %s163
      %s181 = sphi 0, %s181
      %s183 = sphi 0, %s181
      %s184 = sphi 0, %s183
      %s198 = sphi 0, %s184
      %s202 = sphi 0, %s202
      %s204 = sphi 0, %s202
      %s205 = sphi 0, %s204
      %s219 = sphi 0, %s205
      %s223 = sphi 0, %s223
      %s225 = sphi 0, %s223
      %s226 = sphi 0, %s225
      %s240 = sphi 0, %s226
      %s246 = sphi 0, %s248
      %s249 = sphi 0, %s246
      %s250 = sphi 0, %s249
      %s266 = sphi 0, %s250
    $region4: #{model_forward_pallas.1} parent=1 // loop_header_branch
      %24 = sbr.rel (%p22) target = $region8
    $region5: #{model_forward_pallas.1} parent=1 // loop_body
      %s26 = ssub.s32 %s21, 1
      %s27 = ssub.s32 %s21, 2
      %s28 = sadd.s32 %s21, 1
      %s29 = ssub.s32 %s21, %s28
      %p30 = scmp.eq.s32.totalorder %s29, 0
      %s32 = sadd.s32 %s31, 1
      %s33 = scalar_select %p30, %s31, %s32
      %p36 = pneg %p30
      %p37 = scmp.eq.s32.totalorder %s21, 1
      %p38 = por %p36, %p37
      %p39 = scmp.ne.s32.totalorder %s31, %s34
      %p40 = scmp.eq.s32.totalorder %s21, 0
      %p41 = por %p39, %p40
      %p42 = scmp.ne.s32.totalorder %s31, %s34
      %p43 = scmp.eq.s32.totalorder %s26, 1
      %p44 = por %p42, %p43
      %p45 = scmp.ne.s32.totalorder %s34, %s35
      %p46 = scmp.eq.s32.totalorder %s26, 0
      %p47 = por %p45, %p46
      %p48 = scmp.ne.s32.totalorder %s34, %s35
      %p49 = scmp.eq.s32.totalorder %s27, 1
      %p50 = por %p48, %p49
      %p52 = scmp.ne.s32.totalorder %s35, %s51
      %p53 = scmp.eq.s32.totalorder %s27, 0
      %p54 = por %p52, %p53
      %s56 = sadd.s32 %s55, 1
      %p59 = scmp.eq.s32.totalorder %s21, 1
      %p60 = scmp.ne.s32.totalorder %s55, %s57
      %p61 = scmp.eq.s32.totalorder %s21, 0
      %p62 = por %p60, %p61
      %p63 = scmp.ne.s32.totalorder %s55, %s57
      %p64 = scmp.eq.s32.totalorder %s26, 1
      %p65 = por %p63, %p64
      %p66 = scmp.ne.s32.totalorder %s57, %s58
      %p67 = scmp.eq.s32.totalorder %s26, 0
      %p68 = por %p66, %p67
      %p69 = scmp.ne.s32.totalorder %s57, %s58
      %p70 = scmp.eq.s32.totalorder %s27, 1
      %p71 = por %p69, %p70
      %p73 = scmp.ne.s32.totalorder %s58, %s72
      %p74 = scmp.eq.s32.totalorder %s27, 0
      %p75 = por %p73, %p74
      %s77 = sadd.s32 %s76, 1
      %p80 = scmp.eq.s32.totalorder %s21, 1
      %p81 = scmp.ne.s32.totalorder %s76, %s78
      %p82 = scmp.eq.s32.totalorder %s21, 0
      %p83 = por %p81, %p82
      %p84 = scmp.ne.s32.totalorder %s76, %s78
      %p85 = scmp.eq.s32.totalorder %s26, 1
      %p86 = por %p84, %p85
      %p87 = scmp.ne.s32.totalorder %s78, %s79
      %p88 = scmp.eq.s32.totalorder %s26, 0
      %p89 = por %p87, %p88
      %p90 = scmp.ne.s32.totalorder %s78, %s79
      %p91 = scmp.eq.s32.totalorder %s27, 1
      %p92 = por %p90, %p91
      %p94 = scmp.ne.s32.totalorder %s79, %s93
      %p95 = scmp.eq.s32.totalorder %s27, 0
      %p96 = por %p94, %p95
      %s98 = sadd.s32 %s97, 1
      %p101 = scmp.eq.s32.totalorder %s21, 1
      %p102 = scmp.ne.s32.totalorder %s97, %s99
      %p103 = scmp.eq.s32.totalorder %s21, 0
      %p104 = por %p102, %p103
      %p105 = scmp.ne.s32.totalorder %s97, %s99
      %p106 = scmp.eq.s32.totalorder %s26, 1
      %p107 = por %p105, %p106
      %p108 = scmp.ne.s32.totalorder %s99, %s100
      %p109 = scmp.eq.s32.totalorder %s26, 0
      %p110 = por %p108, %p109
      %p111 = scmp.ne.s32.totalorder %s99, %s100
      %p112 = scmp.eq.s32.totalorder %s27, 1
      %p113 = por %p111, %p112
      %p115 = scmp.ne.s32.totalorder %s100, %s114
      %p116 = scmp.eq.s32.totalorder %s27, 0
      %p117 = por %p115, %p116
      %s119 = sadd.s32 %s118, 1
      %p122 = scmp.eq.s32.totalorder %s21, 1
      %p123 = scmp.ne.s32.totalorder %s118, %s120
      %p124 = scmp.eq.s32.totalorder %s21, 0
      %p125 = por %p123, %p124
      %p126 = scmp.ne.s32.totalorder %s118, %s120
      %p127 = scmp.eq.s32.totalorder %s26, 1
      %p128 = por %p126, %p127
      %p129 = scmp.ne.s32.totalorder %s120, %s121
      %p130 = scmp.eq.s32.totalorder %s26, 0
      %p131 = por %p129, %p130
      %p132 = scmp.ne.s32.totalorder %s120, %s121
      %p133 = scmp.eq.s32.totalorder %s27, 1
      %p134 = por %p132, %p133
      %p136 = scmp.ne.s32.totalorder %s121, %s135
      %p137 = scmp.eq.s32.totalorder %s27, 0
      %p138 = por %p136, %p137
      %s140 = sadd.s32 %s139, 1
      %p143 = scmp.eq.s32.totalorder %s21, 1
      %p144 = scmp.ne.s32.totalorder %s139, %s141
      %p145 = scmp.eq.s32.totalorder %s21, 0
      %p146 = por %p144, %p145
      %p147 = scmp.ne.s32.totalorder %s139, %s141
      %p148 = scmp.eq.s32.totalorder %s26, 1
      %p149 = por %p147, %p148
      %p150 = scmp.ne.s32.totalorder %s141, %s142
      %p151 = scmp.eq.s32.totalorder %s26, 0
      %p152 = por %p150, %p151
      %p153 = scmp.ne.s32.totalorder %s141, %s142
      %p154 = scmp.eq.s32.totalorder %s27, 1
      %p155 = por %p153, %p154
      %p157 = scmp.ne.s32.totalorder %s142, %s156
      %p158 = scmp.eq.s32.totalorder %s27, 0
      %p159 = por %p157, %p158
      %s161 = sadd.s32 %s160, 1
      %p164 = scmp.eq.s32.totalorder %s21, 1
      %p165 = scmp.ne.s32.totalorder %s160, %s162
      %p166 = scmp.eq.s32.totalorder %s21, 0
      %p167 = por %p165, %p166
      %p168 = scmp.ne.s32.totalorder %s160, %s162
      %p169 = scmp.eq.s32.totalorder %s26, 1
      %p170 = por %p168, %p169
      %p171 = scmp.ne.s32.totalorder %s162, %s163
      %p172 = scmp.eq.s32.totalorder %s26, 0
      %p173 = por %p171, %p172
      %p174 = scmp.ne.s32.totalorder %s162, %s163
      %p175 = scmp.eq.s32.totalorder %s27, 1
      %p176 = por %p174, %p175
      %p178 = scmp.ne.s32.totalorder %s163, %s177
      %p179 = scmp.eq.s32.totalorder %s27, 0
      %p180 = por %p178, %p179
      %s182 = sadd.s32 %s181, 1
      %p185 = scmp.eq.s32.totalorder %s21, 1
      %p186 = scmp.ne.s32.totalorder %s181, %s183
      %p187 = scmp.eq.s32.totalorder %s21, 0
      %p188 = por %p186, %p187
      %p189 = scmp.ne.s32.totalorder %s181, %s183
      %p190 = scmp.eq.s32.totalorder %s26, 1
      %p191 = por %p189, %p190
      %p192 = scmp.ne.s32.totalorder %s183, %s184
      %p193 = scmp.eq.s32.totalorder %s26, 0
      %p194 = por %p192, %p193
      %p195 = scmp.ne.s32.totalorder %s183, %s184
      %p196 = scmp.eq.s32.totalorder %s27, 1
      %p197 = por %p195, %p196
      %p199 = scmp.ne.s32.totalorder %s184, %s198
      %p200 = scmp.eq.s32.totalorder %s27, 0
      %p201 = por %p199, %p200
      %s203 = sadd.s32 %s202, 1
      %p206 = scmp.eq.s32.totalorder %s21, 1
      %p207 = scmp.ne.s32.totalorder %s202, %s204
      %p208 = scmp.eq.s32.totalorder %s21, 0
      %p209 = por %p207, %p208
      %p210 = scmp.ne.s32.totalorder %s202, %s204
      %p211 = scmp.eq.s32.totalorder %s26, 1
      %p212 = por %p210, %p211
      %p213 = scmp.ne.s32.totalorder %s204, %s205
      %p214 = scmp.eq.s32.totalorder %s26, 0
      %p215 = por %p213, %p214
      %p216 = scmp.ne.s32.totalorder %s204, %s205
      %p217 = scmp.eq.s32.totalorder %s27, 1
      %p218 = por %p216, %p217
      %p220 = scmp.ne.s32.totalorder %s205, %s219
      %p221 = scmp.eq.s32.totalorder %s27, 0
      %p222 = por %p220, %p221
      %s224 = sadd.s32 %s223, 1
      %p227 = scmp.eq.s32.totalorder %s21, 1
      %p228 = scmp.ne.s32.totalorder %s223, %s225
      %p229 = scmp.eq.s32.totalorder %s21, 0
      %p230 = por %p228, %p229
      %p231 = scmp.ne.s32.totalorder %s223, %s225
      %p232 = scmp.eq.s32.totalorder %s26, 1
      %p233 = por %p231, %p232
      %p234 = scmp.ne.s32.totalorder %s225, %s226
      %p235 = scmp.eq.s32.totalorder %s26, 0
      %p236 = por %p234, %p235
      %p237 = scmp.ne.s32.totalorder %s225, %s226
      %p238 = scmp.eq.s32.totalorder %s27, 1
      %p239 = por %p237, %p238
      %p241 = scmp.ne.s32.totalorder %s226, %s240
      %p242 = scmp.eq.s32.totalorder %s27, 0
      %p243 = por %p241, %p242
      %s244 = ssub.s32 %s21, %s28
      %p245 = scmp.eq.s32.totalorder %s244, 0
      %s247 = sadd.s32 %s246, 1
      %s248 = scalar_select %p245, %s246, %s247
      %p251 = pneg %p245
      %p252 = scmp.eq.s32.totalorder %s21, 1
      %p253 = por %p251, %p252
      %p254 = scmp.ne.s32.totalorder %s246, %s249
      %p255 = scmp.eq.s32.totalorder %s21, 0
      %p256 = por %p254, %p255
      %p257 = scmp.ne.s32.totalorder %s246, %s249
      %p258 = scmp.eq.s32.totalorder %s26, 1
      %p259 = por %p257, %p258
      %p260 = scmp.ne.s32.totalorder %s249, %s250
      %p261 = scmp.eq.s32.totalorder %s26, 0
      %p262 = por %p260, %p261
      %p263 = scmp.ne.s32.totalorder %s249, %s250
      %p264 = scmp.eq.s32.totalorder %s27, 1
      %p265 = por %p263, %p264
      %p267 = scmp.ne.s32.totalorder %s250, %s266
      %p268 = scmp.eq.s32.totalorder %s27, 0
      %p269 = por %p267, %p268
      %p270 = scmp.le.s32.totalorder 1, %s21
      %p271 = scmp.lt.s32.totalorder %s21, 3
      %p272 = pnand %p270, %p271
      %p273 = pneg %p272
      // Predicated region
      $region9: #{model_forward_pallas.1} parent=5 // pred_check
        _
      $region10: #{model_forward_pallas.1} parent=5 // pred_check_branch
        %275 = sbr.rel (%p272) target = $region12
      $region11: #{model_forward_pallas.1} parent=5 // pred_region
        %s276 = ssub.s32 %s21, 1
        // Predicated region
        $region13: #{model_forward_pallas.1} parent=11 // pred_check
          %p277 = pneg %p68
        $region14: #{model_forward_pallas.1} parent=11 // pred_check_branch
          %279 = sbr.rel (%p277) target = $region16
        $region15: #{model_forward_pallas.1} parent=11 // pred_region
          %s281 = ssub.s32 384, 384
          %282 = vsyncadd [#allocation5], %s281
          %s283 = sshll.u32 [#allocation4], 4
          %s284 = int_to_ptr.vmem [resolvable:$true] %s283
          %289 = dma.hbm_to_vmem [thread:$0]  %s1, 384, %s284, [#allocation5], 128, 128, 8
        $region16: #{model_forward_pallas.1} parent=11 // pred_fallthru
          _
        // Predicated region
        $region17: #{model_forward_pallas.1} parent=11 // pred_check
          %p290 = pneg %p89
        $region18: #{model_forward_pallas.1} parent=11 // pred_check_branch
          %292 = sbr.rel (%p290) target = $region20
        $region19: #{model_forward_pallas.1} parent=11 // pred_region
          %s294 = ssub.s32 384, 384
          %295 = vsyncadd [#allocation7], %s294
          %s296 = sshll.u32 [#allocation6], 4
          %s297 = int_to_ptr.vmem [resolvable:$true] %s296
          %302 = dma.hbm_to_vmem [thread:$0]  %s2, 384, %s297, [#allocation7], 128, 128, 8
        $region20: #{model_forward_pallas.1} parent=11 // pred_fallthru
          _
        // Predicated region
        $region21: #{model_forward_pallas.1} parent=11 // pred_check
          %p303 = pneg %p110
        $region22: #{model_forward_pallas.1} parent=11 // pred_check_branch
          %305 = sbr.rel (%p303) target = $region24
        $region23: #{model_forward_pallas.1} parent=11 // pred_region
          %s307 = ssub.s32 40960, 40960
          %308 = vsyncadd [#allocation7], %s307
          %s309 = sshll.u32 [#allocation8], 4
          %s310 = int_to_ptr.vmem [resolvable:$true] %s309
          %315 = dma.hbm_to_vmem [thread:$0]  %s3, 40960, %s310, [#allocation7], 256, 256, 16
        $region24: #{model_forward_pallas.1} parent=11 // pred_fallthru
          _
        // Predicated region
        $region25: #{model_forward_pallas.1} parent=11 // pred_check
          %p316 = pneg %p131
        $region26: #{model_forward_pallas.1} parent=11 // pred_check_branch
          %318 = sbr.rel (%p316) target = $region28
        $region27: #{model_forward_pallas.1} parent=11 // pred_region
          %s320 = ssub.s32 7680, 7680
          %321 = vsyncadd [#allocation10], %s320
          %s322 = sshll.u32 [#allocation9], 4
          %s323 = int_to_ptr.vmem [resolvable:$true] %s322
          %328 = dma.hbm_to_vmem [thread:$0]  %s4, 7680, %s323, [#allocation10], 128, 128, 8
        $region28: #{model_forward_pallas.1} parent=11 // pred_fallthru
          _
        // Predicated region
        $region29: #{model_forward_pallas.1} parent=11 // pred_check
          %p329 = pneg %p152
        $region30: #{model_forward_pallas.1} parent=11 // pred_check_branch
          %331 = sbr.rel (%p329) target = $region32
        $region31: #{model_forward_pallas.1} parent=11 // pred_region
          %s333 = ssub.s32 3840, 3840
          %334 = vsyncadd [#allocation10], %s333
          %s335 = sshll.u32 [#allocation11], 4
          %s336 = int_to_ptr.vmem [resolvable:$true] %s335
          %341 = dma.hbm_to_vmem [thread:$0]  %s5, 3840, %s336, [#allocation10], 128, 128, 8
        $region32: #{model_forward_pallas.1} parent=11 // pred_fallthru
          _
        // Predicated region
        $region33: #{model_forward_pallas.1} parent=11 // pred_check
          %p342 = pneg %p173
        $region34: #{model_forward_pallas.1} parent=11 // pred_check_branch
          %344 = sbr.rel (%p342) target = $region36
        $region35: #{model_forward_pallas.1} parent=11 // pred_region
          %s346 = ssub.s32 184320, 184320
          %347 = vsyncadd [#allocation13], %s346
          %s348 = sshll.u32 [#allocation12], 4
          %s349 = int_to_ptr.vmem [resolvable:$true] %s348
          %354 = dma.hbm_to_vmem [thread:$0]  %s6, 184320, %s349, [#allocation13], 128, 128, 8
        $region36: #{model_forward_pallas.1} parent=11 // pred_fallthru
          _
        // Predicated region
        $region37: #{model_forward_pallas.1} parent=11 // pred_check
          %p355 = pneg %p194
        $region38: #{model_forward_pallas.1} parent=11 // pred_check_branch
          %357 = sbr.rel (%p355) target = $region40
        $region39: #{model_forward_pallas.1} parent=11 // pred_region
          %s359 = ssub.s32 3840, 3840
          %360 = vsyncadd [#allocation13], %s359
          %s361 = sshll.u32 [#allocation14], 4
          %s362 = int_to_ptr.vmem [resolvable:$true] %s361
          %367 = dma.hbm_to_vmem [thread:$0]  %s7, 3840, %s362, [#allocation13], 128, 128, 8
        $region40: #{model_forward_pallas.1} parent=11 // pred_fallthru
          _
        // Predicated region
        $region41: #{model_forward_pallas.1} parent=11 // pred_check
          %p368 = pneg %p215
        $region42: #{model_forward_pallas.1} parent=11 // pred_check_branch
          %370 = sbr.rel (%p368) target = $region44
        $region43: #{model_forward_pallas.1} parent=11 // pred_region
          %s372 = ssub.s32 20480, 20480
          %373 = vsyncadd [#allocation16], %s372
          %s374 = sshll.u32 [#allocation15], 4
          %s375 = int_to_ptr.vmem [resolvable:$true] %s374
          %380 = dma.hbm_to_vmem [thread:$0]  %s8, 20480, %s375, [#allocation16], 128, 128, 8
        $region44: #{model_forward_pallas.1} parent=11 // pred_fallthru
          _
        // Predicated region
        $region45: #{model_forward_pallas.1} parent=11 // pred_check
          %p381 = pneg %p236
        $region46: #{model_forward_pallas.1} parent=11 // pred_check_branch
          %383 = sbr.rel (%p381) target = $region48
        $region47: #{model_forward_pallas.1} parent=11 // pred_region
          %s385 = ssub.s32 3840, 3840
          %386 = vsyncadd [#allocation16], %s385
          %s387 = sshll.u32 [#allocation17], 4
          %s388 = int_to_ptr.vmem [resolvable:$true] %s387
          %393 = dma.hbm_to_vmem [thread:$0]  %s9, 3840, %s388, [#allocation16], 128, 128, 8
        $region48: #{model_forward_pallas.1} parent=11 // pred_fallthru
          _
      $region12: #{model_forward_pallas.1} parent=5 // pred_fallthru
        _
      %p394 = scmp.lt.s32.totalorder %s21, 2
      // Predicated region
      $region49: #{model_forward_pallas.1} parent=5 // pred_check
        %p395 = pneg %p394
      $region50: #{model_forward_pallas.1} parent=5 // pred_check_branch
        %397 = sbr.rel (%p395) target = $region52
      $region51: #{model_forward_pallas.1} parent=5 // pred_region
        // Predicated region
        $region53: #{model_forward_pallas.1} parent=51 // pred_check
          %p398 = pneg %p41
        $region54: #{model_forward_pallas.1} parent=51 // pred_check_branch
          %400 = sbr.rel (%p398) target = $region56
        $region55: #{model_forward_pallas.1} parent=51 // pred_region
          %p401 = scmp.lt.s32.totalorder %s21, 1
          %s402 = scalar_select %p401, %s21, 1
          %s403 = smul.addr %s402, 24
          %s404 = smul.addr %s403, 8
          %s405 = scalar_lea.vmem %s0, %s404
        $region56: #{model_forward_pallas.1} parent=51 // pred_fallthru
          _
      $region52: #{model_forward_pallas.1} parent=5 // pred_fallthru
        _
      %p406 = scmp.le.s32.totalorder 1, %s21
      %p407 = scmp.lt.s32.totalorder %s21, 3
      %p408 = pnand %p406, %p407
      %p409 = pneg %p408
      // Predicated region
      $region57: #{model_forward_pallas.1} parent=5 // pred_check
        _
      $region58: #{model_forward_pallas.1} parent=5 // pred_check_branch
        %411 = sbr.rel (%p408) target = $region60
      $region59: #{model_forward_pallas.1} parent=5 // pred_region
        %s412 = ssub.s32 %s21, 1
        // Predicated region
        $region61: #{model_forward_pallas.1} parent=59 // pred_check
          %p413 = pneg %p68
        $region62: #{model_forward_pallas.1} parent=59 // pred_check_branch
          %415 = sbr.rel (%p413) target = $region64
        $region63: #{model_forward_pallas.1} parent=59 // pred_region
          %416 = dma.done [#allocation5], 384
        $region64: #{model_forward_pallas.1} parent=59 // pred_fallthru
          _
        // Predicated region
        $region65: #{model_forward_pallas.1} parent=59 // pred_check
          %p417 = pneg %p89
        $region66: #{model_forward_pallas.1} parent=59 // pred_check_branch
          %419 = sbr.rel (%p417) target = $region68
        $region67: #{model_forward_pallas.1} parent=59 // pred_region
          %420 = dma.done [#allocation7], 384
        $region68: #{model_forward_pallas.1} parent=59 // pred_fallthru
          _
        // Predicated region
        $region69: #{model_forward_pallas.1} parent=59 // pred_check
          %p421 = pneg %p110
        $region70: #{model_forward_pallas.1} parent=59 // pred_check_branch
          %423 = sbr.rel (%p421) target = $region72
        $region71: #{model_forward_pallas.1} parent=59 // pred_region
          %424 = dma.done [#allocation7], 40960
        $region72: #{model_forward_pallas.1} parent=59 // pred_fallthru
          _
        // Predicated region
        $region73: #{model_forward_pallas.1} parent=59 // pred_check
          %p425 = pneg %p131
        $region74: #{model_forward_pallas.1} parent=59 // pred_check_branch
          %427 = sbr.rel (%p425) target = $region76
        $region75: #{model_forward_pallas.1} parent=59 // pred_region
          %428 = dma.done [#allocation10], 7680
        $region76: #{model_forward_pallas.1} parent=59 // pred_fallthru
          _
        // Predicated region
        $region77: #{model_forward_pallas.1} parent=59 // pred_check
          %p429 = pneg %p152
        $region78: #{model_forward_pallas.1} parent=59 // pred_check_branch
          %431 = sbr.rel (%p429) target = $region80
        $region79: #{model_forward_pallas.1} parent=59 // pred_region
          %432 = dma.done [#allocation10], 3840
        $region80: #{model_forward_pallas.1} parent=59 // pred_fallthru
          _
        // Predicated region
        $region81: #{model_forward_pallas.1} parent=59 // pred_check
          %p433 = pneg %p173
        $region82: #{model_forward_pallas.1} parent=59 // pred_check_branch
          %435 = sbr.rel (%p433) target = $region84
        $region83: #{model_forward_pallas.1} parent=59 // pred_region
          %436 = dma.done [#allocation13], 184320
        $region84: #{model_forward_pallas.1} parent=59 // pred_fallthru
          _
        // Predicated region
        $region85: #{model_forward_pallas.1} parent=59 // pred_check
          %p437 = pneg %p194
        $region86: #{model_forward_pallas.1} parent=59 // pred_check_branch
          %439 = sbr.rel (%p437) target = $region88
        $region87: #{model_forward_pallas.1} parent=59 // pred_region
          %440 = dma.done [#allocation13], 3840
        $region88: #{model_forward_pallas.1} parent=59 // pred_fallthru
          _
        // Predicated region
        $region89: #{model_forward_pallas.1} parent=59 // pred_check
          %p441 = pneg %p215
        $region90: #{model_forward_pallas.1} parent=59 // pred_check_branch
          %443 = sbr.rel (%p441) target = $region92
        $region91: #{model_forward_pallas.1} parent=59 // pred_region
          %444 = dma.done [#allocation16], 20480
        $region92: #{model_forward_pallas.1} parent=59 // pred_fallthru
          _
        // Predicated region
        $region93: #{model_forward_pallas.1} parent=59 // pred_check
          %p445 = pneg %p236
        $region94: #{model_forward_pallas.1} parent=59 // pred_check_branch
          %447 = sbr.rel (%p445) target = $region96
        $region95: #{model_forward_pallas.1} parent=59 // pred_region
          %448 = dma.done [#allocation16], 3840
        $region96: #{model_forward_pallas.1} parent=59 // pred_fallthru
          _
        %p449 = scmp.lt.s32.totalorder %s26, 1
        %s450 = scalar_select %p449, %s26, 1
        %s451 = smul.addr %s450, 24
        %s452 = smul.addr %s451, 8
        %s453 = scalar_lea.vmem %s0, %s452
        %p454 = pneg %p47
        %p455 = pneg %p44
        %p456 = pneg %p68
        %p457 = pneg %p65
        %p458 = pneg %p89
        %p459 = pneg %p86
        %p460 = pneg %p110
        %p461 = pneg %p107
        %p462 = pneg %p131
        %p463 = pneg %p128
        %p464 = pneg %p152
        %p465 = pneg %p149
        %p466 = pneg %p173
        %p467 = pneg %p170
        %p468 = pneg %p194
        %p469 = pneg %p191
        %p470 = pneg %p215
        %p471 = pneg %p212
        %p472 = pneg %p236
        %p473 = pneg %p233
        %p474 = pneg %p262
        %p475 = pneg %p259
        %p476 = scmp.lt.s32.totalorder %s26, 1
        %s477 = scalar_select %p476, %s26, 1
        %s478 = smul.addr %s477, 8
        %s479 = scalar_lea.vmem %s10, %s478
        %p480 = scmp.lt.s32.totalorder %s26, 1
        %s481 = scalar_select %p480, %s26, 1
        %s482 = smul.addr %s481, 24
        %s483 = smul.addr %s482, 8
        %s484 = scalar_lea.vmem %s0, %s483
        %p485 = scmp.lt.s32.totalorder %s26, 1
        %s486 = scalar_select %p485, %s26, 1
        %s487 = smul.addr %s486, 8
        %s488 = scalar_lea.vmem %s10, %s487
        %v489 = vld [vmem:[%s484] sm:$0xff]
        %v490 = vld [vmem:[%s484 + $0x8] sm:$0xff]
        %v491 = vld [vmem:[%s484 + $0x10] sm:$0xff]
        %v492 = vld [vmem:[%s484 + $0x18] sm:$0xff]
        %v493 = vld [vmem:[%s484 + $0x20] sm:$0xff]
        %v494 = vld [vmem:[%s484 + $0x28] sm:$0xff]
        %v495 = vld [vmem:[%s484 + $0x30] sm:$0xff]
        %v496 = vld [vmem:[%s484 + $0x38] sm:$0xff]
        %v497 = vld [vmem:[%s484 + $0x40] sm:$0xff]
        %v498 = vld [vmem:[%s484 + $0x48] sm:$0xff]
        %v499 = vld [vmem:[%s484 + $0x50] sm:$0xff]
        %v500 = vld [vmem:[%s484 + $0x58] sm:$0xff]
        %v501 = vld [vmem:[%s484 + $0x60] sm:$0xff]
        %v502 = vld [vmem:[%s484 + $0x68] sm:$0xff]
        %v503 = vld [vmem:[%s484 + $0x70] sm:$0xff]
        %v504 = vld [vmem:[%s484 + $0x78] sm:$0xff]
        %v505 = vld [vmem:[%s484 + $0x80] sm:$0xff]
        %v506 = vld [vmem:[%s484 + $0x88] sm:$0xff]
        %v507 = vld [vmem:[%s484 + $0x90] sm:$0xff]
        %v508 = vld [vmem:[%s484 + $0x98] sm:$0xff]
        %v509 = vld [vmem:[%s484 + $0xa0] sm:$0xff]
        %v510 = vld [vmem:[%s484 + $0xa8] sm:$0xff]
        %v511 = vld [vmem:[%s484 + $0xb0] sm:$0xff]
        %v512 = vld [vmem:[%s484 + $0xb8] sm:$0xff]
        %v513 = vld [vmem:[#allocation4] sm:$0xff]
        %v514 = vld [vmem:[#allocation4 + $0x8] sm:$0xff]
        %v515 = vld [vmem:[#allocation4 + $0x10] sm:$0xff]
        %v516 = vmul.f32 %v489, %v513
        %v517 = vmul.f32 %v490, %v514
        %v518 = vmul.f32 %v491, %v515
        %v519 = vmul.f32 %v492, %v513
        %v520 = vmul.f32 %v493, %v514
        %v521 = vmul.f32 %v494, %v515
        %v522 = vmul.f32 %v495, %v513
        %v523 = vmul.f32 %v496, %v514
        %v524 = vmul.f32 %v497, %v515
        %v525 = vmul.f32 %v498, %v513
        %v526 = vmul.f32 %v499, %v514
        %v527 = vmul.f32 %v500, %v515
        %v528 = vmul.f32 %v501, %v513
        %v529 = vmul.f32 %v502, %v514
        %v530 = vmul.f32 %v503, %v515
        %v531 = vmul.f32 %v504, %v513
        %v532 = vmul.f32 %v505, %v514
        %v533 = vmul.f32 %v506, %v515
        %v534 = vmul.f32 %v507, %v513
        %v535 = vmul.f32 %v508, %v514
        %v536 = vmul.f32 %v509, %v515
        %v537 = vmul.f32 %v510, %v513
        %v538 = vmul.f32 %v511, %v514
        %v539 = vmul.f32 %v512, %v515
        %v540 = vld [vmem:[#allocation6] sm:$0xff]
        %v541 = vld [vmem:[#allocation6 + $0x8] sm:$0xff]
        %v542 = vld [vmem:[#allocation6 + $0x10] sm:$0xff]
        %v543 = vadd.f32 %v516, %v540
        %v544 = vadd.f32 %v517, %v541
        %v545 = vadd.f32 %v518, %v542
        %v546 = vadd.f32 %v519, %v540
        %v547 = vadd.f32 %v520, %v541
        %v548 = vadd.f32 %v521, %v542
        %v549 = vadd.f32 %v522, %v540
        %v550 = vadd.f32 %v523, %v541
        %v551 = vadd.f32 %v524, %v542
        %v552 = vadd.f32 %v525, %v540
        %v553 = vadd.f32 %v526, %v541
        %v554 = vadd.f32 %v527, %v542
        %v555 = vadd.f32 %v528, %v540
        %v556 = vadd.f32 %v529, %v541
        %v557 = vadd.f32 %v530, %v542
        %v558 = vadd.f32 %v531, %v540
        %v559 = vadd.f32 %v532, %v541
        %v560 = vadd.f32 %v533, %v542
        %v561 = vadd.f32 %v534, %v540
        %v562 = vadd.f32 %v535, %v541
        %v563 = vadd.f32 %v536, %v542
        %v564 = vadd.f32 %v537, %v540
        %v565 = vadd.f32 %v538, %v541
        %v566 = vadd.f32 %v539, %v542
        %567 = vst [vmem:[#allocation2] sm:$0xff] %v543
        %568 = vst [vmem:[#allocation2 + $0x8] sm:$0xff] %v544
        %569 = vst [vmem:[#allocation2 + $0x10] sm:$0xff] %v545
        %570 = vst [vmem:[#allocation2 + $0x18] sm:$0xff] %v546
        %571 = vst [vmem:[#allocation2 + $0x20] sm:$0xff] %v547
        %572 = vst [vmem:[#allocation2 + $0x28] sm:$0xff] %v548
        %573 = vst [vmem:[#allocation2 + $0x30] sm:$0xff] %v549
        %574 = vst [vmem:[#allocation2 + $0x38] sm:$0xff] %v550
        %575 = vst [vmem:[#allocation2 + $0x40] sm:$0xff] %v551
        %576 = vst [vmem:[#allocation2 + $0x48] sm:$0xff] %v552
        %577 = vst [vmem:[#allocation2 + $0x50] sm:$0xff] %v553
        %578 = vst [vmem:[#allocation2 + $0x58] sm:$0xff] %v554
        %579 = vst [vmem:[#allocation2 + $0x60] sm:$0xff] %v555
        %580 = vst [vmem:[#allocation2 + $0x68] sm:$0xff] %v556
        %581 = vst [vmem:[#allocation2 + $0x70] sm:$0xff] %v557
        %582 = vst [vmem:[#allocation2 + $0x78] sm:$0xff] %v558
        %583 = vst [vmem:[#allocation2 + $0x80] sm:$0xff] %v559
        %584 = vst [vmem:[#allocation2 + $0x88] sm:$0xff] %v560
        %585 = vst [vmem:[#allocation2 + $0x90] sm:$0xff] %v561
        %586 = vst [vmem:[#allocation2 + $0x98] sm:$0xff] %v562
        %587 = vst [vmem:[#allocation2 + $0xa0] sm:$0xff] %v563
        %588 = vst [vmem:[#allocation2 + $0xa8] sm:$0xff] %v564
        %589 = vst [vmem:[#allocation2 + $0xb0] sm:$0xff] %v565
        %590 = vst [vmem:[#allocation2 + $0xb8] sm:$0xff] %v566
        %591 = vst [vmem:[#allocation3] sm:$0xff] 0.0
        %592 = vst [vmem:[#allocation3 + $0x8] sm:$0xff] 0.0
        %593 = vst [vmem:[#allocation3 + $0x10] sm:$0xff] 0.0
        %594 = vst [vmem:[#allocation3 + $0x18] sm:$0xff] 0.0
        %595 = vst [vmem:[#allocation3 + $0x20] sm:$0xff] 0.0
        %596 = vst [vmem:[#allocation3 + $0x28] sm:$0xff] 0.0
        %597 = vst [vmem:[#allocation3 + $0x30] sm:$0xff] 0.0
        %598 = vst [vmem:[#allocation3 + $0x38] sm:$0xff] 0.0
        %599 = vst [vmem:[#allocation3 + $0x40] sm:$0xff] 0.0
        %600 = vst [vmem:[#allocation3 + $0x48] sm:$0xff] 0.0
        %601 = vst [vmem:[#allocation3 + $0x50] sm:$0xff] 0.0
        %602 = vst [vmem:[#allocation3 + $0x58] sm:$0xff] 0.0
        %603 = vst [vmem:[#allocation3 + $0x60] sm:$0xff] 0.0
        %604 = vst [vmem:[#allocation3 + $0x68] sm:$0xff] 0.0
        %605 = vst [vmem:[#allocation3 + $0x70] sm:$0xff] 0.0
        %606 = vst [vmem:[#allocation3 + $0x78] sm:$0xff] 0.0
        %607 = vst [vmem:[#allocation3 + $0x80] sm:$0xff] 0.0
        %608 = vst [vmem:[#allocation3 + $0x88] sm:$0xff] 0.0
        %609 = vst [vmem:[#allocation3 + $0x90] sm:$0xff] 0.0
        %610 = vst [vmem:[#allocation3 + $0x98] sm:$0xff] 0.0
        %611 = vst [vmem:[#allocation3 + $0xa0] sm:$0xff] 0.0
        %612 = vst [vmem:[#allocation3 + $0xa8] sm:$0xff] 0.0
        %613 = vst [vmem:[#allocation3 + $0xb0] sm:$0xff] 0.0
        %614 = vst [vmem:[#allocation3 + $0xb8] sm:$0xff] 0.0
        %615 = vst [vmem:[#allocation3 + $0xc0] sm:$0xff] 0.0
        %616 = vst [vmem:[#allocation3 + $0xc8] sm:$0xff] 0.0
        %617 = vst [vmem:[#allocation3 + $0xd0] sm:$0xff] 0.0
        %618 = vst [vmem:[#allocation3 + $0xd8] sm:$0xff] 0.0
        %619 = vst [vmem:[#allocation3 + $0xe0] sm:$0xff] 0.0
        %620 = vst [vmem:[#allocation3 + $0xe8] sm:$0xff] 0.0
        %621 = vst [vmem:[#allocation3 + $0xf0] sm:$0xff] 0.0
        %622 = vst [vmem:[#allocation3 + $0xf8] sm:$0xff] 0.0
        %623 = vst [vmem:[#allocation3 + $0x100] sm:$0xff] 0.0
        %624 = vst [vmem:[#allocation3 + $0x108] sm:$0xff] 0.0
        %625 = vst [vmem:[#allocation3 + $0x110] sm:$0xff] 0.0
        %626 = vst [vmem:[#allocation3 + $0x118] sm:$0xff] 0.0
        %627 = vst [vmem:[#allocation3 + $0x120] sm:$0xff] 0.0
        %628 = vst [vmem:[#allocation3 + $0x128] sm:$0xff] 0.0
        %629 = vst [vmem:[#allocation3 + $0x130] sm:$0xff] 0.0
        %630 = vst [vmem:[#allocation3 + $0x138] sm:$0xff] 0.0
        %631 = vst [vmem:[#allocation3 + $0x140] sm:$0xff] 0.0
        %632 = vst [vmem:[#allocation3 + $0x148] sm:$0xff] 0.0
        %633 = vst [vmem:[#allocation3 + $0x150] sm:$0xff] 0.0
        %634 = vst [vmem:[#allocation3 + $0x158] sm:$0xff] 0.0
        %635 = vst [vmem:[#allocation3 + $0x160] sm:$0xff] 0.0
        %636 = vst [vmem:[#allocation3 + $0x168] sm:$0xff] 0.0
        %637 = vst [vmem:[#allocation3 + $0x170] sm:$0xff] 0.0
        %638 = vst [vmem:[#allocation3 + $0x178] sm:$0xff] 0.0
        loop: start=0, step=1, limit=10
        $region97: #{model_forward_pallas.1} parent=59 // loop_pre_header
          _
        $region98: #{model_forward_pallas.1} parent=59 // loop_header
          %s640 = sphi 0, %s644
          %p641 = scmp.ge.s32.totalorder %s640, 10
        $region99: #{model_forward_pallas.1} parent=59 // loop_header_branch
          %643 = sbr.rel (%p641) target = $region103
        $region100: #{model_forward_pallas.1} parent=59 // loop_body
          %v645 = vld [vmem:[#allocation2] sm:$0xff]
          %v646 = vld [vmem:[#allocation2 + $0x8] sm:$0xff]
          %v647 = vld [vmem:[#allocation2 + $0x10] sm:$0xff]
          %v648 = vld [vmem:[#allocation2 + $0x18] sm:$0xff]
          %v649 = vld [vmem:[#allocation2 + $0x20] sm:$0xff]
          %v650 = vld [vmem:[#allocation2 + $0x28] sm:$0xff]
          %v651 = vld [vmem:[#allocation2 + $0x30] sm:$0xff]
          %v652 = vld [vmem:[#allocation2 + $0x38] sm:$0xff]
          %v653 = vld [vmem:[#allocation2 + $0x40] sm:$0xff]
          %v654 = vld [vmem:[#allocation2 + $0x48] sm:$0xff]
          %v655 = vld [vmem:[#allocation2 + $0x50] sm:$0xff]
          %v656 = vld [vmem:[#allocation2 + $0x58] sm:$0xff]
          %v657 = vld [vmem:[#allocation2 + $0x60] sm:$0xff]
          %v658 = vld [vmem:[#allocation2 + $0x68] sm:$0xff]
          %v659 = vld [vmem:[#allocation2 + $0x70] sm:$0xff]
          %v660 = vld [vmem:[#allocation2 + $0x78] sm:$0xff]
          %v661 = vld [vmem:[#allocation2 + $0x80] sm:$0xff]
          %v662 = vld [vmem:[#allocation2 + $0x88] sm:$0xff]
          %v663 = vld [vmem:[#allocation2 + $0x90] sm:$0xff]
          %v664 = vld [vmem:[#allocation2 + $0x98] sm:$0xff]
          %v665 = vld [vmem:[#allocation2 + $0xa0] sm:$0xff]
          %v666 = vld [vmem:[#allocation2 + $0xa8] sm:$0xff]
          %v667 = vld [vmem:[#allocation2 + $0xb0] sm:$0xff]
          %v668 = vld [vmem:[#allocation2 + $0xb8] sm:$0xff]
          %s669 = smul.u32 %s640, 32
          %s670 = smul.addr %s669, 8
          %s671 = scalar_lea.vmem [#allocation8], %s670
          %v672 = vld [vmem:[%s671] sm:$0xff]
          %v673 = vld [vmem:[%s671 + $0x8] sm:$0xff]
          %v674 = vld [vmem:[%s671 + $0x10] sm:$0xff]
          %v675 = vld [vmem:[%s671 + $0x18] sm:$0xff]
          %v676 = vld [vmem:[%s671 + $0x20] sm:$0xff]
          %v677 = vld [vmem:[%s671 + $0x28] sm:$0xff]
          %v678 = vld [vmem:[%s671 + $0x30] sm:$0xff]
          %v679 = vld [vmem:[%s671 + $0x38] sm:$0xff]
          %v680 = vld [vmem:[%s671 + $0x40] sm:$0xff]
          %v681 = vld [vmem:[%s671 + $0x48] sm:$0xff]
          %v682 = vld [vmem:[%s671 + $0x50] sm:$0xff]
          %v683 = vld [vmem:[%s671 + $0x58] sm:$0xff]
          %v684 = vld [vmem:[%s671 + $0x60] sm:$0xff]
          %v685 = vld [vmem:[%s671 + $0x68] sm:$0xff]
          %v686 = vld [vmem:[%s671 + $0x70] sm:$0xff]
          %v687 = vld [vmem:[%s671 + $0x78] sm:$0xff]
          %v688 = vld [vmem:[%s671 + $0x80] sm:$0xff]
          %v689 = vld [vmem:[%s671 + $0x88] sm:$0xff]
          %v690 = vld [vmem:[%s671 + $0x90] sm:$0xff]
          %v691 = vld [vmem:[%s671 + $0x98] sm:$0xff]
          %v692 = vld [vmem:[%s671 + $0xa0] sm:$0xff]
          %v693 = vld [vmem:[%s671 + $0xa8] sm:$0xff]
          %v694 = vld [vmem:[%s671 + $0xb0] sm:$0xff]
          %v695 = vld [vmem:[%s671 + $0xb8] sm:$0xff]
          %v696 = vld [vmem:[%s671 + $0xc0] sm:$0xff]
          %v697 = vld [vmem:[%s671 + $0xc8] sm:$0xff]
          %v698 = vld [vmem:[%s671 + $0xd0] sm:$0xff]
          %v699 = vld [vmem:[%s671 + $0xd8] sm:$0xff]
          %v700 = vld [vmem:[%s671 + $0xe0] sm:$0xff]
          %v701 = vld [vmem:[%s671 + $0xe8] sm:$0xff]
          %v702 = vld [vmem:[%s671 + $0xf0] sm:$0xff]
          %v703 = vld [vmem:[%s671 + $0xf8] sm:$0xff]
          %704 = vmatprep.subr.mxu0 %v703
          %705 = vmatpush1.msra.mxu0 %v702
          %706 = vmatprep.subr.mxu0 %v701
          %707 = vmatpush1.msra.mxu0 %v700
          %708 = vmatprep.subr.mxu0 %v699
          %709 = vmatpush1.msra.mxu0 %v698
          %710 = vmatprep.subr.mxu0 %v697
          %711 = vmatpush1.msra.mxu0 %v696
          %712 = vmatprep.subr.mxu0 %v695
          %713 = vmatpush1.msra.mxu0 %v694
          %714 = vmatprep.subr.mxu0 %v693
          %715 = vmatpush1.msra.mxu0 %v692
          %716 = vmatprep.subr.mxu0 %v691
          %717 = vmatpush1.msra.mxu0 %v690
          %718 = vmatprep.subr.mxu0 %v689
          %719 = vmatpush1.msra.mxu0 %v688
          %720 = vmatprep.subr.mxu0 %v687
          %721 = vmatpush1.msra.mxu0 %v686
          %722 = vmatprep.subr.mxu0 %v685
          %723 = vmatpush1.msra.mxu0 %v684
          %724 = vmatprep.subr.mxu0 %v683
          %725 = vmatpush1.msra.mxu0 %v682
          %726 = vmatprep.subr.mxu0 %v681
          %727 = vmatpush1.msra.mxu0 %v680
          %728 = vmatprep.subr.mxu0 %v679
          %729 = vmatpush1.msra.mxu0 %v678
          %730 = vmatprep.subr.mxu0 %v677
          %731 = vmatpush1.msra.mxu0 %v676
          %732 = vmatprep.subr.mxu0 %v675
          %733 = vmatpush1.msra.mxu0 %v674
          %734 = vmatprep.subr.mxu0 %v673
          %735 = vmatpush1.msra.mxu0 %v672
          %736 = vmatprep.subr.mxu0 0.0
          %737 = vmatpush2.msra.mxu0 0.0
          %738 = vmatprep.subr.mxu0 0.0
          %739 = vmatpush2.msra.mxu0 0.0
          %740 = vmatprep.subr.mxu0 0.0
          %741 = vmatpush2.msra.mxu0 0.0
          %742 = vmatprep.subr.mxu0 0.0
          %743 = vmatpush2.msra.mxu0 0.0
          %744 = vmatprep.subr.mxu0 0.0
          %745 = vmatpush2.msra.mxu0 0.0
          %746 = vmatprep.subr.mxu0 0.0
          %747 = vmatpush2.msra.mxu0 0.0
          %748 = vmatprep.subr.mxu0 0.0
          %749 = vmatpush2.msra.mxu0 0.0
          %750 = vmatprep.subr.mxu0 0.0
          %751 = vmatpush2.msra.mxu0 0.0
          %752 = vmatprep.subr.mxu0 0.0
          %753 = vmatpush2.msra.mxu0 0.0
          %754 = vmatprep.subr.mxu0 0.0
          %755 = vmatpush2.msra.mxu0 0.0
          %756 = vmatprep.subr.mxu0 0.0
          %757 = vmatpush2.msra.mxu0 0.0
          %758 = vmatprep.subr.mxu0 0.0
          %759 = vmatpush2.msra.mxu0 0.0
          %760 = vmatprep.subr.mxu0 0.0
          %761 = vmatpush2.msra.mxu0 0.0
          %762 = vmatprep.subr.mxu0 0.0
          %763 = vmatpush2.msra.mxu0 0.0
          %764 = vmatprep.subr.mxu0 0.0
          %765 = vmatpush2.msra.mxu0 0.0
          %766 = vmatprep.subr.mxu0 0.0
          %767 = vmatpush2.msra.mxu0 0.0
          %768 = vmatprep.mubr.f32.mxu0 0.0
          %769 = vmatmul.mubr.f32.gmra.mxu0 %v645
          %v770 = vpop.f32.mrf.mxu0
          %v771 = vadd.f32 0.0, %v770
          %v772 = vpop.f32.mrf.mxu0
          %v773 = vadd.f32 0.0, %v772
          %774 = vmatprep.mubr.f32.mxu0 0.0
          %775 = vmatmul.mubr.f32.gmra.mxu0 %v646
          %v776 = vpop.f32.mrf.mxu0
          %v777 = vadd.f32 0.0, %v776
          %v778 = vpop.f32.mrf.mxu0
          %v779 = vadd.f32 0.0, %v778
          %780 = vmatprep.mubr.f32.mxu0 0.0
          %781 = vmatmul.mubr.f32.gmra.mxu0 %v647
          %v782 = vpop.f32.mrf.mxu0
          %v783 = vadd.f32 0.0, %v782
          %v784 = vpop.f32.mrf.mxu0
          %v785 = vadd.f32 0.0, %v784
          %786 = vmatprep.mubr.f32.mxu0 0.0
          %787 = vmatmul.mubr.f32.gmra.mxu0 %v648
          %v788 = vpop.f32.mrf.mxu0
          %v789 = vadd.f32 0.0, %v788
          %v790 = vpop.f32.mrf.mxu0
          %v791 = vadd.f32 0.0, %v790
          %792 = vmatprep.mubr.f32.mxu0 0.0
          %793 = vmatmul.mubr.f32.gmra.mxu0 %v649
          %v794 = vpop.f32.mrf.mxu0
          %v795 = vadd.f32 0.0, %v794
          %v796 = vpop.f32.mrf.mxu0
          %v797 = vadd.f32 0.0, %v796
          %798 = vmatprep.mubr.f32.mxu0 0.0
          %799 = vmatmul.mubr.f32.gmra.mxu0 %v650
          %v800 = vpop.f32.mrf.mxu0
          %v801 = vadd.f32 0.0, %v800
          %v802 = vpop.f32.mrf.mxu0
          %v803 = vadd.f32 0.0, %v802
          %804 = vmatprep.mubr.f32.mxu0 0.0
          %805 = vmatmul.mubr.f32.gmra.mxu0 %v651
          %v806 = vpop.f32.mrf.mxu0
          %v807 = vadd.f32 0.0, %v806
          %v808 = vpop.f32.mrf.mxu0
          %v809 = vadd.f32 0.0, %v808
          %810 = vmatprep.mubr.f32.mxu0 0.0
          %811 = vmatmul.mubr.f32.gmra.mxu0 %v652
          %v812 = vpop.f32.mrf.mxu0
          %v813 = vadd.f32 0.0, %v812
          %v814 = vpop.f32.mrf.mxu0
          %v815 = vadd.f32 0.0, %v814
          %816 = vmatprep.mubr.f32.mxu0 0.0
          %817 = vmatmul.mubr.f32.gmra.mxu0 %v653
          %v818 = vpop.f32.mrf.mxu0
          %v819 = vadd.f32 0.0, %v818
          %v820 = vpop.f32.mrf.mxu0
          %v821 = vadd.f32 0.0, %v820
          %822 = vmatprep.mubr.f32.mxu0 0.0
          %823 = vmatmul.mubr.f32.gmra.mxu0 %v654
          %v824 = vpop.f32.mrf.mxu0
          %v825 = vadd.f32 0.0, %v824
          %v826 = vpop.f32.mrf.mxu0
          %v827 = vadd.f32 0.0, %v826
          %828 = vmatprep.mubr.f32.mxu0 0.0
          %829 = vmatmul.mubr.f32.gmra.mxu0 %v655
          %v830 = vpop.f32.mrf.mxu0
          %v831 = vadd.f32 0.0, %v830
          %v832 = vpop.f32.mrf.mxu0
          %v833 = vadd.f32 0.0, %v832
          %834 = vmatprep.mubr.f32.mxu0 0.0
          %835 = vmatmul.mubr.f32.gmra.mxu0 %v656
          %v836 = vpop.f32.mrf.mxu0
          %v837 = vadd.f32 0.0, %v836
          %v838 = vpop.f32.mrf.mxu0
          %v839 = vadd.f32 0.0, %v838
          %840 = vmatprep.mubr.f32.mxu0 0.0
          %841 = vmatmul.mubr.f32.gmra.mxu0 %v657
          %v842 = vpop.f32.mrf.mxu0
          %v843 = vadd.f32 0.0, %v842
          %v844 = vpop.f32.mrf.mxu0
          %v845 = vadd.f32 0.0, %v844
          %846 = vmatprep.mubr.f32.mxu0 0.0
          %847 = vmatmul.mubr.f32.gmra.mxu0 %v658
          %v848 = vpop.f32.mrf.mxu0
          %v849 = vadd.f32 0.0, %v848
          %v850 = vpop.f32.mrf.mxu0
          %v851 = vadd.f32 0.0, %v850
          %852 = vmatprep.mubr.f32.mxu0 0.0
          %853 = vmatmul.mubr.f32.gmra.mxu0 %v659
          %v854 = vpop.f32.mrf.mxu0
          %v855 = vadd.f32 0.0, %v854
          %v856 = vpop.f32.mrf.mxu0
          %v857 = vadd.f32 0.0, %v856
          %858 = vmatprep.mubr.f32.mxu0 0.0
          %859 = vmatmul.mubr.f32.gmra.mxu0 %v660
          %v860 = vpop.f32.mrf.mxu0
          %v861 = vadd.f32 0.0, %v860
          %v862 = vpop.f32.mrf.mxu0
          %v863 = vadd.f32 0.0, %v862
          %864 = vmatprep.mubr.f32.mxu0 0.0
          %865 = vmatmul.mubr.f32.gmra.mxu0 %v661
          %v866 = vpop.f32.mrf.mxu0
          %v867 = vadd.f32 0.0, %v866
          %v868 = vpop.f32.mrf.mxu0
          %v869 = vadd.f32 0.0, %v868
          %870 = vmatprep.mubr.f32.mxu0 0.0
          %871 = vmatmul.mubr.f32.gmra.mxu0 %v662
          %v872 = vpop.f32.mrf.mxu0
          %v873 = vadd.f32 0.0, %v872
          %v874 = vpop.f32.mrf.mxu0
          %v875 = vadd.f32 0.0, %v874
          %876 = vmatprep.mubr.f32.mxu0 0.0
          %877 = vmatmul.mubr.f32.gmra.mxu0 %v663
          %v878 = vpop.f32.mrf.mxu0
          %v879 = vadd.f32 0.0, %v878
          %v880 = vpop.f32.mrf.mxu0
          %v881 = vadd.f32 0.0, %v880
          %882 = vmatprep.mubr.f32.mxu0 0.0
          %883 = vmatmul.mubr.f32.gmra.mxu0 %v664
          %v884 = vpop.f32.mrf.mxu0
          %v885 = vadd.f32 0.0, %v884
          %v886 = vpop.f32.mrf.mxu0
          %v887 = vadd.f32 0.0, %v886
          %888 = vmatprep.mubr.f32.mxu0 0.0
          %889 = vmatmul.mubr.f32.gmra.mxu0 %v665
          %v890 = vpop.f32.mrf.mxu0
          %v891 = vadd.f32 0.0, %v890
          %v892 = vpop.f32.mrf.mxu0
          %v893 = vadd.f32 0.0, %v892
          %894 = vmatprep.mubr.f32.mxu0 0.0
          %895 = vmatmul.mubr.f32.gmra.mxu0 %v666
          %v896 = vpop.f32.mrf.mxu0
          %v897 = vadd.f32 0.0, %v896
          %v898 = vpop.f32.mrf.mxu0
          %v899 = vadd.f32 0.0, %v898
          %900 = vmatprep.mubr.f32.mxu0 0.0
          %901 = vmatmul.mubr.f32.gmra.mxu0 %v667
          %v902 = vpop.f32.mrf.mxu0
          %v903 = vadd.f32 0.0, %v902
          %v904 = vpop.f32.mrf.mxu0
          %v905 = vadd.f32 0.0, %v904
          %906 = vmatprep.mubr.f32.mxu0 0.0
          %907 = vmatmul.mubr.f32.gmra.mxu0 %v668
          %v908 = vpop.f32.mrf.mxu0
          %v909 = vadd.f32 0.0, %v908
          %v910 = vpop.f32.mrf.mxu0
          %v911 = vadd.f32 0.0, %v910
          %912 = vdwg.mxu0
          %s913 = smul.u32 %s640, 24
          %s914 = scalar_lea.vmem [#allocation11], %s913
          %v915 = vld [vmem:[%s914] sm:$0xff]
          %v916 = vld [vmem:[%s914 + $0x8] sm:$0xff]
          %v917 = vld [vmem:[%s914 + $0x10] sm:$0xff]
          %s918 = smul.u32 %s640, 2
          %s919 = smul.u32 %s918, 24
          %s920 = scalar_lea.vmem [#allocation9], %s919
          %v921 = vld [vmem:[%s920] sm:$0xff]
          %v922 = vld [vmem:[%s920 + $0x8] sm:$0xff]
          %v923 = vld [vmem:[%s920 + $0x10] sm:$0xff]
          %vm924 = vcmask 195584
          %v926 = vsel %vm924, %v921, 0
          %v929 = vsel %vm924, %v922, 0
          %v932 = vsel %vm924, %v923, 0
          %934 = vmatprep.subr.mxu0 0.0
          %935 = vmatpush1.msra.mxu0 0.0
          %936 = vmatprep.subr.mxu0 0.0
          %937 = vmatpush1.msra.mxu0 0.0
          %938 = vmatprep.subr.mxu0 0.0
          %939 = vmatpush1.msra.mxu0 0.0
          %940 = vmatprep.subr.mxu0 0.0
          %941 = vmatpush1.msra.mxu0 0.0
          %942 = vmatprep.subr.mxu0 0.0
          %943 = vmatpush1.msra.mxu0 0.0
          %944 = vmatprep.subr.mxu0 0.0
          %945 = vmatpush1.msra.mxu0 0.0
          %946 = vmatprep.subr.mxu0 0.0
          %947 = vmatpush1.msra.mxu0 0.0
          %948 = vmatprep.subr.mxu0 0.0
          %949 = vmatpush1.msra.mxu0 0.0
          %950 = vmatprep.subr.mxu0 0.0
          %951 = vmatpush1.msra.mxu0 0.0
          %952 = vmatprep.subr.mxu0 0.0
          %953 = vmatpush1.msra.mxu0 0.0
          %954 = vmatprep.subr.mxu0 0.0
          %955 = vmatpush1.msra.mxu0 0.0
          %956 = vmatprep.subr.mxu0 0.0
          %957 = vmatpush1.msra.mxu0 0.0
          %958 = vmatprep.subr.mxu0 0.0
          %959 = vmatpush1.msra.mxu0 0.0
          %960 = vmatprep.subr.mxu0 0.0
          %961 = vmatpush1.msra.mxu0 %v783
          %962 = vmatprep.subr.mxu0 0.0
          %963 = vmatpush1.msra.mxu0 %v777
          %964 = vmatprep.subr.mxu0 0.0
          %965 = vmatpush1.msra.mxu0 %v771
          %966 = vmatprep.subr.mxu0 0.0
          %967 = vmatpush2.msra.mxu0 0.0
          %968 = vmatprep.subr.mxu0 0.0
          %969 = vmatpush2.msra.mxu0 0.0
          %970 = vmatprep.subr.mxu0 0.0
          %971 = vmatpush2.msra.mxu0 0.0
          %972 = vmatprep.subr.mxu0 0.0
          %973 = vmatpush2.msra.mxu0 0.0
          %974 = vmatprep.subr.mxu0 0.0
          %975 = vmatpush2.msra.mxu0 0.0
          %976 = vmatprep.subr.mxu0 0.0
          %977 = vmatpush2.msra.mxu0 0.0
          %978 = vmatprep.subr.mxu0 0.0
          %979 = vmatpush2.msra.mxu0 0.0
          %980 = vmatprep.subr.mxu0 0.0
          %981 = vmatpush2.msra.mxu0 0.0
          %982 = vmatprep.subr.mxu0 0.0
          %983 = vmatpush2.msra.mxu0 0.0
          %984 = vmatprep.subr.mxu0 0.0
          %985 = vmatpush2.msra.mxu0 0.0
          %986 = vmatprep.subr.mxu0 0.0
          %987 = vmatpush2.msra.mxu0 0.0
          %988 = vmatprep.subr.mxu0 0.0
          %989 = vmatpush2.msra.mxu0 0.0
          %990 = vmatprep.subr.mxu0 0.0
          %991 = vmatpush2.msra.mxu0 0.0
          %992 = vmatprep.subr.mxu0 0.0
          %993 = vmatpush2.msra.mxu0 0.0
          %994 = vmatprep.subr.mxu0 0.0
          %995 = vmatpush2.msra.mxu0 0.0
          %996 = vmatprep.subr.mxu0 0.0
          %997 = vmatpush2.msra.mxu0 0.0
          %998 = vmatprep.mubr.f32.mxu0 0.0
          %999 = vmatmul.mubr.f32.gmra.mxu0 %v926
          %v1000 = vpop.f32.mrf.mxu0
          %v1001 = vadd.f32 0.0, %v1000
          %v1002 = vpop.f32.mrf.mxu0
          %1003 = vmatprep.mubr.f32.mxu0 0.0
          %1004 = vmatmul.mubr.f32.gmra.mxu0 %v929
          %v1005 = vpop.f32.mrf.mxu0
          %v1006 = vadd.f32 0.0, %v1005
          %v1007 = vpop.f32.mrf.mxu0
          %1008 = vmatprep.mubr.f32.mxu0 0.0
          %1009 = vmatmul.mubr.f32.gmra.mxu0 %v932
          %v1010 = vpop.f32.mrf.mxu0
          %v1011 = vadd.f32 0.0, %v1010
          %v1012 = vpop.f32.mrf.mxu0
          %1013 = vdwg.mxu0
          %v1014 = vadd.f32 %v915, %v1001
          %v1015 = vadd.f32 %v916, %v1006
          %v1016 = vadd.f32 %v917, %v1011
          %s1017 = sadd.s32 %s918, 1
          %s1018 = smul.u32 %s1017, 24
          %s1019 = scalar_lea.vmem [#allocation9], %s1018
          %v1020 = vld [vmem:[%s1019] sm:$0xff]
          %v1021 = vld [vmem:[%s1019 + $0x8] sm:$0xff]
          %v1022 = vld [vmem:[%s1019 + $0x10] sm:$0xff]
          %v1024 = vsel %vm924, %v1020, 0
          %v1027 = vsel %vm924, %v1021, 0
          %v1030 = vsel %vm924, %v1022, 0
          %1032 = vmatprep.subr.mxu0 0.0
          %1033 = vmatpush1.msra.mxu0 0.0
          %1034 = vmatprep.subr.mxu0 0.0
          %1035 = vmatpush1.msra.mxu0 0.0
          %1036 = vmatprep.subr.mxu0 0.0
          %1037 = vmatpush1.msra.mxu0 0.0
          %1038 = vmatprep.subr.mxu0 0.0
          %1039 = vmatpush1.msra.mxu0 0.0
          %1040 = vmatprep.subr.mxu0 0.0
          %1041 = vmatpush1.msra.mxu0 0.0
          %1042 = vmatprep.subr.mxu0 0.0
          %1043 = vmatpush1.msra.mxu0 0.0
          %1044 = vmatprep.subr.mxu0 0.0
          %1045 = vmatpush1.msra.mxu0 0.0
          %1046 = vmatprep.subr.mxu0 0.0
          %1047 = vmatpush1.msra.mxu0 0.0
          %1048 = vmatprep.subr.mxu0 0.0
          %1049 = vmatpush1.msra.mxu0 0.0
          %1050 = vmatprep.subr.mxu0 0.0
          %1051 = vmatpush1.msra.mxu0 0.0
          %1052 = vmatprep.subr.mxu0 0.0
          %1053 = vmatpush1.msra.mxu0 0.0
          %1054 = vmatprep.subr.mxu0 0.0
          %1055 = vmatpush1.msra.mxu0 0.0
          %1056 = vmatprep.subr.mxu0 0.0
          %1057 = vmatpush1.msra.mxu0 0.0
          %1058 = vmatprep.subr.mxu0 0.0
          %1059 = vmatpush1.msra.mxu0 %v785
          %1060 = vmatprep.subr.mxu0 0.0
          %1061 = vmatpush1.msra.mxu0 %v779
          %1062 = vmatprep.subr.mxu0 0.0
          %1063 = vmatpush1.msra.mxu0 %v773
          %1064 = vmatprep.subr.mxu0 0.0
          %1065 = vmatpush2.msra.mxu0 0.0
          %1066 = vmatprep.subr.mxu0 0.0
          %1067 = vmatpush2.msra.mxu0 0.0
          %1068 = vmatprep.subr.mxu0 0.0
          %1069 = vmatpush2.msra.mxu0 0.0
          %1070 = vmatprep.subr.mxu0 0.0
          %1071 = vmatpush2.msra.mxu0 0.0
          %1072 = vmatprep.subr.mxu0 0.0
          %1073 = vmatpush2.msra.mxu0 0.0
          %1074 = vmatprep.subr.mxu0 0.0
          %1075 = vmatpush2.msra.mxu0 0.0
          %1076 = vmatprep.subr.mxu0 0.0
          %1077 = vmatpush2.msra.mxu0 0.0
          %1078 = vmatprep.subr.mxu0 0.0
          %1079 = vmatpush2.msra.mxu0 0.0
          %1080 = vmatprep.subr.mxu0 0.0
          %1081 = vmatpush2.msra.mxu0 0.0
          %1082 = vmatprep.subr.mxu0 0.0
          %1083 = vmatpush2.msra.mxu0 0.0
          %1084 = vmatprep.subr.mxu0 0.0
          %1085 = vmatpush2.msra.mxu0 0.0
          %1086 = vmatprep.subr.mxu0 0.0
          %1087 = vmatpush2.msra.mxu0 0.0
          %1088 = vmatprep.subr.mxu0 0.0
          %1089 = vmatpush2.msra.mxu0 0.0
          %1090 = vmatprep.subr.mxu0 0.0
          %1091 = vmatpush2.msra.mxu0 0.0
          %1092 = vmatprep.subr.mxu0 0.0
          %1093 = vmatpush2.msra.mxu0 0.0
          %1094 = vmatprep.subr.mxu0 0.0
          %1095 = vmatpush2.msra.mxu0 0.0
          %1096 = vmatprep.mubr.f32.mxu0 0.0
          %1097 = vmatmul.mubr.f32.gmra.mxu0 %v1024
          %v1098 = vpop.f32.mrf.mxu0
          %v1099 = vadd.f32 0.0, %v1098
          %v1100 = vpop.f32.mrf.mxu0
          %1101 = vmatprep.mubr.f32.mxu0 0.0
          %1102 = vmatmul.mubr.f32.gmra.mxu0 %v1027
          %v1103 = vpop.f32.mrf.mxu0
          %v1104 = vadd.f32 0.0, %v1103
          %v1105 = vpop.f32.mrf.mxu0
          %1106 = vmatprep.mubr.f32.mxu0 0.0
          %1107 = vmatmul.mubr.f32.gmra.mxu0 %v1030
          %v1108 = vpop.f32.mrf.mxu0
          %v1109 = vadd.f32 0.0, %v1108
          %v1110 = vpop.f32.mrf.mxu0
          %1111 = vdwg.mxu0
          %v1112 = vadd.f32 %v1014, %v1099
          %v1113 = vadd.f32 %v1015, %v1104
          %v1114 = vadd.f32 %v1016, %v1109
          %v1115 = vmax.f32 %v1112, 0.0
          %v1116 = vmax.f32 %v1113, 0.0
          %v1117 = vmax.f32 %v1114, 0.0
          %1118 = vst [vmem:[#allocation3 + $0x60] sm:$0xff] %v1115
          %1119 = vst [vmem:[#allocation3 + $0x68] sm:$0xff] %v1116
          %1120 = vst [vmem:[#allocation3 + $0x70] sm:$0xff] %v1117
          %v1121 = vld [vmem:[%s914] sm:$0xff]
          %v1122 = vld [vmem:[%s914 + $0x8] sm:$0xff]
          %v1123 = vld [vmem:[%s914 + $0x10] sm:$0xff]
          %v1124 = vld [vmem:[%s920] sm:$0xff]
          %v1125 = vld [vmem:[%s920 + $0x8] sm:$0xff]
          %v1126 = vld [vmem:[%s920 + $0x10] sm:$0xff]
          %v1128 = vsel %vm924, %v1124, 0
          %v1131 = vsel %vm924, %v1125, 0
          %v1134 = vsel %vm924, %v1126, 0
          %1136 = vmatprep.subr.mxu0 0.0
          %1137 = vmatpush1.msra.mxu0 0.0
          %1138 = vmatprep.subr.mxu0 0.0
          %1139 = vmatpush1.msra.mxu0 0.0
          %1140 = vmatprep.subr.mxu0 0.0
          %1141 = vmatpush1.msra.mxu0 0.0
          %1142 = vmatprep.subr.mxu0 0.0
          %1143 = vmatpush1.msra.mxu0 0.0
          %1144 = vmatprep.subr.mxu0 0.0
          %1145 = vmatpush1.msra.mxu0 0.0
          %1146 = vmatprep.subr.mxu0 0.0
          %1147 = vmatpush1.msra.mxu0 0.0
          %1148 = vmatprep.subr.mxu0 0.0
          %1149 = vmatpush1.msra.mxu0 0.0
          %1150 = vmatprep.subr.mxu0 0.0
          %1151 = vmatpush1.msra.mxu0 0.0
          %1152 = vmatprep.subr.mxu0 0.0
          %1153 = vmatpush1.msra.mxu0 0.0
          %1154 = vmatprep.subr.mxu0 0.0
          %1155 = vmatpush1.msra.mxu0 0.0
          %1156 = vmatprep.subr.mxu0 0.0
          %1157 = vmatpush1.msra.mxu0 0.0
          %1158 = vmatprep.subr.mxu0 0.0
          %1159 = vmatpush1.msra.mxu0 0.0
          %1160 = vmatprep.subr.mxu0 0.0
          %1161 = vmatpush1.msra.mxu0 0.0
          %1162 = vmatprep.subr.mxu0 0.0
          %1163 = vmatpush1.msra.mxu0 %v801
          %1164 = vmatprep.subr.mxu0 0.0
          %1165 = vmatpush1.msra.mxu0 %v795
          %1166 = vmatprep.subr.mxu0 0.0
          %1167 = vmatpush1.msra.mxu0 %v789
          %1168 = vmatprep.subr.mxu0 0.0
          %1169 = vmatpush2.msra.mxu0 0.0
          %1170 = vmatprep.subr.mxu0 0.0
          %1171 = vmatpush2.msra.mxu0 0.0
          %1172 = vmatprep.subr.mxu0 0.0
          %1173 = vmatpush2.msra.mxu0 0.0
          %1174 = vmatprep.subr.mxu0 0.0
          %1175 = vmatpush2.msra.mxu0 0.0
          %1176 = vmatprep.subr.mxu0 0.0
          %1177 = vmatpush2.msra.mxu0 0.0
          %1178 = vmatprep.subr.mxu0 0.0
          %1179 = vmatpush2.msra.mxu0 0.0
          %1180 = vmatprep.subr.mxu0 0.0
          %1181 = vmatpush2.msra.mxu0 0.0
          %1182 = vmatprep.subr.mxu0 0.0
          %1183 = vmatpush2.msra.mxu0 0.0
          %1184 = vmatprep.subr.mxu0 0.0
          %1185 = vmatpush2.msra.mxu0 0.0
          %1186 = vmatprep.subr.mxu0 0.0
          %1187 = vmatpush2.msra.mxu0 0.0
          %1188 = vmatprep.subr.mxu0 0.0
          %1189 = vmatpush2.msra.mxu0 0.0
          %1190 = vmatprep.subr.mxu0 0.0
          %1191 = vmatpush2.msra.mxu0 0.0
          %1192 = vmatprep.subr.mxu0 0.0
          %1193 = vmatpush2.msra.mxu0 0.0
          %1194 = vmatprep.subr.mxu0 0.0
          %1195 = vmatpush2.msra.mxu0 0.0
          %1196 = vmatprep.subr.mxu0 0.0
          %1197 = vmatpush2.msra.mxu0 0.0
          %1198 = vmatprep.subr.mxu0 0.0
          %1199 = vmatpush2.msra.mxu0 0.0
          %1200 = vmatprep.mubr.f32.mxu0 0.0
          %1201 = vmatmul.mubr.f32.gmra.mxu0 %v1128
          %v1202 = vpop.f32.mrf.mxu0
          %v1203 = vadd.f32 0.0, %v1202
          %v1204 = vpop.f32.mrf.mxu0
          %1205 = vmatprep.mubr.f32.mxu0 0.0
          %1206 = vmatmul.mubr.f32.gmra.mxu0 %v1131
          %v1207 = vpop.f32.mrf.mxu0
          %v1208 = vadd.f32 0.0, %v1207
          %v1209 = vpop.f32.mrf.mxu0
          %1210 = vmatprep.mubr.f32.mxu0 0.0
          %1211 = vmatmul.mubr.f32.gmra.mxu0 %v1134
          %v1212 = vpop.f32.mrf.mxu0
          %v1213 = vadd.f32 0.0, %v1212
          %v1214 = vpop.f32.mrf.mxu0
          %1215 = vdwg.mxu0
          %v1216 = vadd.f32 %v1121, %v1203
          %v1217 = vadd.f32 %v1122, %v1208
          %v1218 = vadd.f32 %v1123, %v1213
          %v1219 = vld [vmem:[%s1019] sm:$0xff]
          %v1220 = vld [vmem:[%s1019 + $0x8] sm:$0xff]
          %v1221 = vld [vmem:[%s1019 + $0x10] sm:$0xff]
          %v1223 = vsel %vm924, %v1219, 0
          %v1226 = vsel %vm924, %v1220, 0
          %v1229 = vsel %vm924, %v1221, 0
          %1231 = vmatprep.subr.mxu0 0.0
          %1232 = vmatpush1.msra.mxu0 0.0
          %1233 = vmatprep.subr.mxu0 0.0
          %1234 = vmatpush1.msra.mxu0 0.0
          %1235 = vmatprep.subr.mxu0 0.0
          %1236 = vmatpush1.msra.mxu0 0.0
          %1237 = vmatprep.subr.mxu0 0.0
          %1238 = vmatpush1.msra.mxu0 0.0
          %1239 = vmatprep.subr.mxu0 0.0
          %1240 = vmatpush1.msra.mxu0 0.0
          %1241 = vmatprep.subr.mxu0 0.0
          %1242 = vmatpush1.msra.mxu0 0.0
          %1243 = vmatprep.subr.mxu0 0.0
          %1244 = vmatpush1.msra.mxu0 0.0
          %1245 = vmatprep.subr.mxu0 0.0
          %1246 = vmatpush1.msra.mxu0 0.0
          %1247 = vmatprep.subr.mxu0 0.0
          %1248 = vmatpush1.msra.mxu0 0.0
          %1249 = vmatprep.subr.mxu0 0.0
          %1250 = vmatpush1.msra.mxu0 0.0
          %1251 = vmatprep.subr.mxu0 0.0
          %1252 = vmatpush1.msra.mxu0 0.0
          %1253 = vmatprep.subr.mxu0 0.0
          %1254 = vmatpush1.msra.mxu0 0.0
          %1255 = vmatprep.subr.mxu0 0.0
          %1256 = vmatpush1.msra.mxu0 0.0
          %1257 = vmatprep.subr.mxu0 0.0
          %1258 = vmatpush1.msra.mxu0 %v803
          %1259 = vmatprep.subr.mxu0 0.0
          %1260 = vmatpush1.msra.mxu0 %v797
          %1261 = vmatprep.subr.mxu0 0.0
          %1262 = vmatpush1.msra.mxu0 %v791
          %1263 = vmatprep.subr.mxu0 0.0
          %1264 = vmatpush2.msra.mxu0 0.0
          %1265 = vmatprep.subr.mxu0 0.0
          %1266 = vmatpush2.msra.mxu0 0.0
          %1267 = vmatprep.subr.mxu0 0.0
          %1268 = vmatpush2.msra.mxu0 0.0
          %1269 = vmatprep.subr.mxu0 0.0
          %1270 = vmatpush2.msra.mxu0 0.0
          %1271 = vmatprep.subr.mxu0 0.0
          %1272 = vmatpush2.msra.mxu0 0.0
          %1273 = vmatprep.subr.mxu0 0.0
          %1274 = vmatpush2.msra.mxu0 0.0
          %1275 = vmatprep.subr.mxu0 0.0
          %1276 = vmatpush2.msra.mxu0 0.0
          %1277 = vmatprep.subr.mxu0 0.0
          %1278 = vmatpush2.msra.mxu0 0.0
          %1279 = vmatprep.subr.mxu0 0.0
          %1280 = vmatpush2.msra.mxu0 0.0
          %1281 = vmatprep.subr.mxu0 0.0
          %1282 = vmatpush2.msra.mxu0 0.0
          %1283 = vmatprep.subr.mxu0 0.0
          %1284 = vmatpush2.msra.mxu0 0.0
          %1285 = vmatprep.subr.mxu0 0.0
          %1286 = vmatpush2.msra.mxu0 0.0
          %1287 = vmatprep.subr.mxu0 0.0
          %1288 = vmatpush2.msra.mxu0 0.0
          %1289 = vmatprep.subr.mxu0 0.0
          %1290 = vmatpush2.msra.mxu0 0.0
          %1291 = vmatprep.subr.mxu0 0.0
          %1292 = vmatpush2.msra.mxu0 0.0
          %1293 = vmatprep.subr.mxu0 0.0
          %1294 = vmatpush2.msra.mxu0 0.0
          %1295 = vmatprep.mubr.f32.mxu0 0.0
          %1296 = vmatmul.mubr.f32.gmra.mxu0 %v1223
          %v1297 = vpop.f32.mrf.mxu0
          %v1298 = vadd.f32 0.0, %v1297
          %v1299 = vpop.f32.mrf.mxu0
          %1300 = vmatprep.mubr.f32.mxu0 0.0
          %1301 = vmatmul.mubr.f32.gmra.mxu0 %v1226
          %v1302 = vpop.f32.mrf.mxu0
          %v1303 = vadd.f32 0.0, %v1302
          %v1304 = vpop.f32.mrf.mxu0
          %1305 = vmatprep.mubr.f32.mxu0 0.0
          %1306 = vmatmul.mubr.f32.gmra.mxu0 %v1229
          %v1307 = vpop.f32.mrf.mxu0
          %v1308 = vadd.f32 0.0, %v1307
          %v1309 = vpop.f32.mrf.mxu0
          %1310 = vdwg.mxu0
          %v1311 = vadd.f32 %v1216, %v1298
          %v1312 = vadd.f32 %v1217, %v1303
          %v1313 = vadd.f32 %v1218, %v1308
          %v1314 = vmax.f32 %v1311, 0.0
          %v1315 = vmax.f32 %v1312, 0.0
          %v1316 = vmax.f32 %v1313, 0.0
          %1317 = vst [vmem:[#allocation3 + $0x78] sm:$0xff] %v1314
          %1318 = vst [vmem:[#allocation3 + $0x80] sm:$0xff] %v1315
          %1319 = vst [vmem:[#allocation3 + $0x88] sm:$0xff] %v1316
          %v1320 = vld [vmem:[%s914] sm:$0xff]
          %v1321 = vld [vmem:[%s914 + $0x8] sm:$0xff]
          %v1322 = vld [vmem:[%s914 + $0x10] sm:$0xff]
          %v1323 = vld [vmem:[%s920] sm:$0xff]
          %v1324 = vld [vmem:[%s920 + $0x8] sm:$0xff]
          %v1325 = vld [vmem:[%s920 + $0x10] sm:$0xff]
          %v1327 = vsel %vm924, %v1323, 0
          %v1330 = vsel %vm924, %v1324, 0
          %v1333 = vsel %vm924, %v1325, 0
          %1335 = vmatprep.subr.mxu0 0.0
          %1336 = vmatpush1.msra.mxu0 0.0
          %1337 = vmatprep.subr.mxu0 0.0
          %1338 = vmatpush1.msra.mxu0 0.0
          %1339 = vmatprep.subr.mxu0 0.0
          %1340 = vmatpush1.msra.mxu0 0.0
          %1341 = vmatprep.subr.mxu0 0.0
          %1342 = vmatpush1.msra.mxu0 0.0
          %1343 = vmatprep.subr.mxu0 0.0
          %1344 = vmatpush1.msra.mxu0 0.0
          %1345 = vmatprep.subr.mxu0 0.0
          %1346 = vmatpush1.msra.mxu0 0.0
          %1347 = vmatprep.subr.mxu0 0.0
          %1348 = vmatpush1.msra.mxu0 0.0
          %1349 = vmatprep.subr.mxu0 0.0
          %1350 = vmatpush1.msra.mxu0 0.0
          %1351 = vmatprep.subr.mxu0 0.0
          %1352 = vmatpush1.msra.mxu0 0.0
          %1353 = vmatprep.subr.mxu0 0.0
          %1354 = vmatpush1.msra.mxu0 0.0
          %1355 = vmatprep.subr.mxu0 0.0
          %1356 = vmatpush1.msra.mxu0 0.0
          %1357 = vmatprep.subr.mxu0 0.0
          %1358 = vmatpush1.msra.mxu0 0.0
          %1359 = vmatprep.subr.mxu0 0.0
          %1360 = vmatpush1.msra.mxu0 0.0
          %1361 = vmatprep.subr.mxu0 0.0
          %1362 = vmatpush1.msra.mxu0 %v819
          %1363 = vmatprep.subr.mxu0 0.0
          %1364 = vmatpush1.msra.mxu0 %v813
          %1365 = vmatprep.subr.mxu0 0.0
          %1366 = vmatpush1.msra.mxu0 %v807
          %1367 = vmatprep.subr.mxu0 0.0
          %1368 = vmatpush2.msra.mxu0 0.0
          %1369 = vmatprep.subr.mxu0 0.0
          %1370 = vmatpush2.msra.mxu0 0.0
          %1371 = vmatprep.subr.mxu0 0.0
          %1372 = vmatpush2.msra.mxu0 0.0
          %1373 = vmatprep.subr.mxu0 0.0
          %1374 = vmatpush2.msra.mxu0 0.0
          %1375 = vmatprep.subr.mxu0 0.0
          %1376 = vmatpush2.msra.mxu0 0.0
          %1377 = vmatprep.subr.mxu0 0.0
          %1378 = vmatpush2.msra.mxu0 0.0
          %1379 = vmatprep.subr.mxu0 0.0
          %1380 = vmatpush2.msra.mxu0 0.0
          %1381 = vmatprep.subr.mxu0 0.0
          %1382 = vmatpush2.msra.mxu0 0.0
          %1383 = vmatprep.subr.mxu0 0.0
          %1384 = vmatpush2.msra.mxu0 0.0
          %1385 = vmatprep.subr.mxu0 0.0
          %1386 = vmatpush2.msra.mxu0 0.0
          %1387 = vmatprep.subr.mxu0 0.0
          %1388 = vmatpush2.msra.mxu0 0.0
          %1389 = vmatprep.subr.mxu0 0.0
          %1390 = vmatpush2.msra.mxu0 0.0
          %1391 = vmatprep.subr.mxu0 0.0
          %1392 = vmatpush2.msra.mxu0 0.0
          %1393 = vmatprep.subr.mxu0 0.0
          %1394 = vmatpush2.msra.mxu0 0.0
          %1395 = vmatprep.subr.mxu0 0.0
          %1396 = vmatpush2.msra.mxu0 0.0
          %1397 = vmatprep.subr.mxu0 0.0
          %1398 = vmatpush2.msra.mxu0 0.0
          %1399 = vmatprep.mubr.f32.mxu0 0.0
          %1400 = vmatmul.mubr.f32.gmra.mxu0 %v1327
          %v1401 = vpop.f32.mrf.mxu0
          %v1402 = vadd.f32 0.0, %v1401
          %v1403 = vpop.f32.mrf.mxu0
          %1404 = vmatprep.mubr.f32.mxu0 0.0
          %1405 = vmatmul.mubr.f32.gmra.mxu0 %v1330
          %v1406 = vpop.f32.mrf.mxu0
          %v1407 = vadd.f32 0.0, %v1406
          %v1408 = vpop.f32.mrf.mxu0
          %1409 = vmatprep.mubr.f32.mxu0 0.0
          %1410 = vmatmul.mubr.f32.gmra.mxu0 %v1333
          %v1411 = vpop.f32.mrf.mxu0
          %v1412 = vadd.f32 0.0, %v1411
          %v1413 = vpop.f32.mrf.mxu0
          %1414 = vdwg.mxu0
          %v1415 = vadd.f32 %v1320, %v1402
          %v1416 = vadd.f32 %v1321, %v1407
          %v1417 = vadd.f32 %v1322, %v1412
          %v1418 = vld [vmem:[%s1019] sm:$0xff]
          %v1419 = vld [vmem:[%s1019 + $0x8] sm:$0xff]
          %v1420 = vld [vmem:[%s1019 + $0x10] sm:$0xff]
          %v1422 = vsel %vm924, %v1418, 0
          %v1425 = vsel %vm924, %v1419, 0
          %v1428 = vsel %vm924, %v1420, 0
          %1430 = vmatprep.subr.mxu0 0.0
          %1431 = vmatpush1.msra.mxu0 0.0
          %1432 = vmatprep.subr.mxu0 0.0
          %1433 = vmatpush1.msra.mxu0 0.0
          %1434 = vmatprep.subr.mxu0 0.0
          %1435 = vmatpush1.msra.mxu0 0.0
          %1436 = vmatprep.subr.mxu0 0.0
          %1437 = vmatpush1.msra.mxu0 0.0
          %1438 = vmatprep.subr.mxu0 0.0
          %1439 = vmatpush1.msra.mxu0 0.0
          %1440 = vmatprep.subr.mxu0 0.0
          %1441 = vmatpush1.msra.mxu0 0.0
          %1442 = vmatprep.subr.mxu0 0.0
          %1443 = vmatpush1.msra.mxu0 0.0
          %1444 = vmatprep.subr.mxu0 0.0
          %1445 = vmatpush1.msra.mxu0 0.0
          %1446 = vmatprep.subr.mxu0 0.0
          %1447 = vmatpush1.msra.mxu0 0.0
          %1448 = vmatprep.subr.mxu0 0.0
          %1449 = vmatpush1.msra.mxu0 0.0
          %1450 = vmatprep.subr.mxu0 0.0
          %1451 = vmatpush1.msra.mxu0 0.0
          %1452 = vmatprep.subr.mxu0 0.0
          %1453 = vmatpush1.msra.mxu0 0.0
          %1454 = vmatprep.subr.mxu0 0.0
          %1455 = vmatpush1.msra.mxu0 0.0
          %1456 = vmatprep.subr.mxu0 0.0
          %1457 = vmatpush1.msra.mxu0 %v821
          %1458 = vmatprep.subr.mxu0 0.0
          %1459 = vmatpush1.msra.mxu0 %v815
          %1460 = vmatprep.subr.mxu0 0.0
          %1461 = vmatpush1.msra.mxu0 %v809
          %1462 = vmatprep.subr.mxu0 0.0
          %1463 = vmatpush2.msra.mxu0 0.0
          %1464 = vmatprep.subr.mxu0 0.0
          %1465 = vmatpush2.msra.mxu0 0.0
          %1466 = vmatprep.subr.mxu0 0.0
          %1467 = vmatpush2.msra.mxu0 0.0
          %1468 = vmatprep.subr.mxu0 0.0
          %1469 = vmatpush2.msra.mxu0 0.0
          %1470 = vmatprep.subr.mxu0 0.0
          %1471 = vmatpush2.msra.mxu0 0.0
          %1472 = vmatprep.subr.mxu0 0.0
          %1473 = vmatpush2.msra.mxu0 0.0
          %1474 = vmatprep.subr.mxu0 0.0
          %1475 = vmatpush2.msra.mxu0 0.0
          %1476 = vmatprep.subr.mxu0 0.0
          %1477 = vmatpush2.msra.mxu0 0.0
          %1478 = vmatprep.subr.mxu0 0.0
          %1479 = vmatpush2.msra.mxu0 0.0
          %1480 = vmatprep.subr.mxu0 0.0
          %1481 = vmatpush2.msra.mxu0 0.0
          %1482 = vmatprep.subr.mxu0 0.0
          %1483 = vmatpush2.msra.mxu0 0.0
          %1484 = vmatprep.subr.mxu0 0.0
          %1485 = vmatpush2.msra.mxu0 0.0
          %1486 = vmatprep.subr.mxu0 0.0
          %1487 = vmatpush2.msra.mxu0 0.0
          %1488 = vmatprep.subr.mxu0 0.0
          %1489 = vmatpush2.msra.mxu0 0.0
          %1490 = vmatprep.subr.mxu0 0.0
          %1491 = vmatpush2.msra.mxu0 0.0
          %1492 = vmatprep.subr.mxu0 0.0
          %1493 = vmatpush2.msra.mxu0 0.0
          %1494 = vmatprep.mubr.f32.mxu0 0.0
          %1495 = vmatmul.mubr.f32.gmra.mxu0 %v1422
          %v1496 = vpop.f32.mrf.mxu0
          %v1497 = vadd.f32 0.0, %v1496
          %v1498 = vpop.f32.mrf.mxu0
          %1499 = vmatprep.mubr.f32.mxu0 0.0
          %1500 = vmatmul.mubr.f32.gmra.mxu0 %v1425
          %v1501 = vpop.f32.mrf.mxu0
          %v1502 = vadd.f32 0.0, %v1501
          %v1503 = vpop.f32.mrf.mxu0
          %1504 = vmatprep.mubr.f32.mxu0 0.0
          %1505 = vmatmul.mubr.f32.gmra.mxu0 %v1428
          %v1506 = vpop.f32.mrf.mxu0
          %v1507 = vadd.f32 0.0, %v1506
          %v1508 = vpop.f32.mrf.mxu0
          %1509 = vdwg.mxu0
          %v1510 = vadd.f32 %v1415, %v1497
          %v1511 = vadd.f32 %v1416, %v1502
          %v1512 = vadd.f32 %v1417, %v1507
          %v1513 = vmax.f32 %v1510, 0.0
          %v1514 = vmax.f32 %v1511, 0.0
          %v1515 = vmax.f32 %v1512, 0.0
          %1516 = vst [vmem:[#allocation3 + $0x90] sm:$0xff] %v1513
          %1517 = vst [vmem:[#allocation3 + $0x98] sm:$0xff] %v1514
          %1518 = vst [vmem:[#allocation3 + $0xa0] sm:$0xff] %v1515
          %v1519 = vld [vmem:[%s914] sm:$0xff]
          %v1520 = vld [vmem:[%s914 + $0x8] sm:$0xff]
          %v1521 = vld [vmem:[%s914 + $0x10] sm:$0xff]
          %v1522 = vld [vmem:[%s920] sm:$0xff]
          %v1523 = vld [vmem:[%s920 + $0x8] sm:$0xff]
          %v1524 = vld [vmem:[%s920 + $0x10] sm:$0xff]
          %v1526 = vsel %vm924, %v1522, 0
          %v1529 = vsel %vm924, %v1523, 0
          %v1532 = vsel %vm924, %v1524, 0
          %1534 = vmatprep.subr.mxu0 0.0
          %1535 = vmatpush1.msra.mxu0 0.0
          %1536 = vmatprep.subr.mxu0 0.0
          %1537 = vmatpush1.msra.mxu0 0.0
          %1538 = vmatprep.subr.mxu0 0.0
          %1539 = vmatpush1.msra.mxu0 0.0
          %1540 = vmatprep.subr.mxu0 0.0
          %1541 = vmatpush1.msra.mxu0 0.0
          %1542 = vmatprep.subr.mxu0 0.0
          %1543 = vmatpush1.msra.mxu0 0.0
          %1544 = vmatprep.subr.mxu0 0.0
          %1545 = vmatpush1.msra.mxu0 0.0
          %1546 = vmatprep.subr.mxu0 0.0
          %1547 = vmatpush1.msra.mxu0 0.0
          %1548 = vmatprep.subr.mxu0 0.0
          %1549 = vmatpush1.msra.mxu0 0.0
          %1550 = vmatprep.subr.mxu0 0.0
          %1551 = vmatpush1.msra.mxu0 0.0
          %1552 = vmatprep.subr.mxu0 0.0
          %1553 = vmatpush1.msra.mxu0 0.0
          %1554 = vmatprep.subr.mxu0 0.0
          %1555 = vmatpush1.msra.mxu0 0.0
          %1556 = vmatprep.subr.mxu0 0.0
          %1557 = vmatpush1.msra.mxu0 0.0
          %1558 = vmatprep.subr.mxu0 0.0
          %1559 = vmatpush1.msra.mxu0 0.0
          %1560 = vmatprep.subr.mxu0 0.0
          %1561 = vmatpush1.msra.mxu0 %v837
          %1562 = vmatprep.subr.mxu0 0.0
          %1563 = vmatpush1.msra.mxu0 %v831
          %1564 = vmatprep.subr.mxu0 0.0
          %1565 = vmatpush1.msra.mxu0 %v825
          %1566 = vmatprep.subr.mxu0 0.0
          %1567 = vmatpush2.msra.mxu0 0.0
          %1568 = vmatprep.subr.mxu0 0.0
          %1569 = vmatpush2.msra.mxu0 0.0
          %1570 = vmatprep.subr.mxu0 0.0
          %1571 = vmatpush2.msra.mxu0 0.0
          %1572 = vmatprep.subr.mxu0 0.0
          %1573 = vmatpush2.msra.mxu0 0.0
          %1574 = vmatprep.subr.mxu0 0.0
          %1575 = vmatpush2.msra.mxu0 0.0
          %1576 = vmatprep.subr.mxu0 0.0
          %1577 = vmatpush2.msra.mxu0 0.0
          %1578 = vmatprep.subr.mxu0 0.0
          %1579 = vmatpush2.msra.mxu0 0.0
          %1580 = vmatprep.subr.mxu0 0.0
          %1581 = vmatpush2.msra.mxu0 0.0
          %1582 = vmatprep.subr.mxu0 0.0
          %1583 = vmatpush2.msra.mxu0 0.0
          %1584 = vmatprep.subr.mxu0 0.0
          %1585 = vmatpush2.msra.mxu0 0.0
          %1586 = vmatprep.subr.mxu0 0.0
          %1587 = vmatpush2.msra.mxu0 0.0
          %1588 = vmatprep.subr.mxu0 0.0
          %1589 = vmatpush2.msra.mxu0 0.0
          %1590 = vmatprep.subr.mxu0 0.0
          %1591 = vmatpush2.msra.mxu0 0.0
          %1592 = vmatprep.subr.mxu0 0.0
          %1593 = vmatpush2.msra.mxu0 0.0
          %1594 = vmatprep.subr.mxu0 0.0
          %1595 = vmatpush2.msra.mxu0 0.0
          %1596 = vmatprep.subr.mxu0 0.0
          %1597 = vmatpush2.msra.mxu0 0.0
          %1598 = vmatprep.mubr.f32.mxu0 0.0
          %1599 = vmatmul.mubr.f32.gmra.mxu0 %v1526
          %v1600 = vpop.f32.mrf.mxu0
          %v1601 = vadd.f32 0.0, %v1600
          %v1602 = vpop.f32.mrf.mxu0
          %1603 = vmatprep.mubr.f32.mxu0 0.0
          %1604 = vmatmul.mubr.f32.gmra.mxu0 %v1529
          %v1605 = vpop.f32.mrf.mxu0
          %v1606 = vadd.f32 0.0, %v1605
          %v1607 = vpop.f32.mrf.mxu0
          %1608 = vmatprep.mubr.f32.mxu0 0.0
          %1609 = vmatmul.mubr.f32.gmra.mxu0 %v1532
          %v1610 = vpop.f32.mrf.mxu0
          %v1611 = vadd.f32 0.0, %v1610
          %v1612 = vpop.f32.mrf.mxu0
          %1613 = vdwg.mxu0
          %v1614 = vadd.f32 %v1519, %v1601
          %v1615 = vadd.f32 %v1520, %v1606
          %v1616 = vadd.f32 %v1521, %v1611
          %v1617 = vld [vmem:[%s1019] sm:$0xff]
          %v1618 = vld [vmem:[%s1019 + $0x8] sm:$0xff]
          %v1619 = vld [vmem:[%s1019 + $0x10] sm:$0xff]
          %v1621 = vsel %vm924, %v1617, 0
          %v1624 = vsel %vm924, %v1618, 0
          %v1627 = vsel %vm924, %v1619, 0
          %1629 = vmatprep.subr.mxu0 0.0
          %1630 = vmatpush1.msra.mxu0 0.0
          %1631 = vmatprep.subr.mxu0 0.0
          %1632 = vmatpush1.msra.mxu0 0.0
          %1633 = vmatprep.subr.mxu0 0.0
          %1634 = vmatpush1.msra.mxu0 0.0
          %1635 = vmatprep.subr.mxu0 0.0
          %1636 = vmatpush1.msra.mxu0 0.0
          %1637 = vmatprep.subr.mxu0 0.0
          %1638 = vmatpush1.msra.mxu0 0.0
          %1639 = vmatprep.subr.mxu0 0.0
          %1640 = vmatpush1.msra.mxu0 0.0
          %1641 = vmatprep.subr.mxu0 0.0
          %1642 = vmatpush1.msra.mxu0 0.0
          %1643 = vmatprep.subr.mxu0 0.0
          %1644 = vmatpush1.msra.mxu0 0.0
          %1645 = vmatprep.subr.mxu0 0.0
          %1646 = vmatpush1.msra.mxu0 0.0
          %1647 = vmatprep.subr.mxu0 0.0
          %1648 = vmatpush1.msra.mxu0 0.0
          %1649 = vmatprep.subr.mxu0 0.0
          %1650 = vmatpush1.msra.mxu0 0.0
          %1651 = vmatprep.subr.mxu0 0.0
          %1652 = vmatpush1.msra.mxu0 0.0
          %1653 = vmatprep.subr.mxu0 0.0
          %1654 = vmatpush1.msra.mxu0 0.0
          %1655 = vmatprep.subr.mxu0 0.0
          %1656 = vmatpush1.msra.mxu0 %v839
          %1657 = vmatprep.subr.mxu0 0.0
          %1658 = vmatpush1.msra.mxu0 %v833
          %1659 = vmatprep.subr.mxu0 0.0
          %1660 = vmatpush1.msra.mxu0 %v827
          %1661 = vmatprep.subr.mxu0 0.0
          %1662 = vmatpush2.msra.mxu0 0.0
          %1663 = vmatprep.subr.mxu0 0.0
          %1664 = vmatpush2.msra.mxu0 0.0
          %1665 = vmatprep.subr.mxu0 0.0
          %1666 = vmatpush2.msra.mxu0 0.0
          %1667 = vmatprep.subr.mxu0 0.0
          %1668 = vmatpush2.msra.mxu0 0.0
          %1669 = vmatprep.subr.mxu0 0.0
          %1670 = vmatpush2.msra.mxu0 0.0
          %1671 = vmatprep.subr.mxu0 0.0
          %1672 = vmatpush2.msra.mxu0 0.0
          %1673 = vmatprep.subr.mxu0 0.0
          %1674 = vmatpush2.msra.mxu0 0.0
          %1675 = vmatprep.subr.mxu0 0.0
          %1676 = vmatpush2.msra.mxu0 0.0
          %1677 = vmatprep.subr.mxu0 0.0
          %1678 = vmatpush2.msra.mxu0 0.0
          %1679 = vmatprep.subr.mxu0 0.0
          %1680 = vmatpush2.msra.mxu0 0.0
          %1681 = vmatprep.subr.mxu0 0.0
          %1682 = vmatpush2.msra.mxu0 0.0
          %1683 = vmatprep.subr.mxu0 0.0
          %1684 = vmatpush2.msra.mxu0 0.0
          %1685 = vmatprep.subr.mxu0 0.0
          %1686 = vmatpush2.msra.mxu0 0.0
          %1687 = vmatprep.subr.mxu0 0.0
          %1688 = vmatpush2.msra.mxu0 0.0
          %1689 = vmatprep.subr.mxu0 0.0
          %1690 = vmatpush2.msra.mxu0 0.0
          %1691 = vmatprep.subr.mxu0 0.0
          %1692 = vmatpush2.msra.mxu0 0.0
          %1693 = vmatprep.mubr.f32.mxu0 0.0
          %1694 = vmatmul.mubr.f32.gmra.mxu0 %v1621
          %v1695 = vpop.f32.mrf.mxu0
          %v1696 = vadd.f32 0.0, %v1695
          %v1697 = vpop.f32.mrf.mxu0
          %1698 = vmatprep.mubr.f32.mxu0 0.0
          %1699 = vmatmul.mubr.f32.gmra.mxu0 %v1624
          %v1700 = vpop.f32.mrf.mxu0
          %v1701 = vadd.f32 0.0, %v1700
          %v1702 = vpop.f32.mrf.mxu0
          %1703 = vmatprep.mubr.f32.mxu0 0.0
          %1704 = vmatmul.mubr.f32.gmra.mxu0 %v1627
          %v1705 = vpop.f32.mrf.mxu0
          %v1706 = vadd.f32 0.0, %v1705
          %v1707 = vpop.f32.mrf.mxu0
          %1708 = vdwg.mxu0
          %v1709 = vadd.f32 %v1614, %v1696
          %v1710 = vadd.f32 %v1615, %v1701
          %v1711 = vadd.f32 %v1616, %v1706
          %v1712 = vmax.f32 %v1709, 0.0
          %v1713 = vmax.f32 %v1710, 0.0
          %v1714 = vmax.f32 %v1711, 0.0
          %1715 = vst [vmem:[#allocation3 + $0xa8] sm:$0xff] %v1712
          %1716 = vst [vmem:[#allocation3 + $0xb0] sm:$0xff] %v1713
          %1717 = vst [vmem:[#allocation3 + $0xb8] sm:$0xff] %v1714
          %v1718 = vld [vmem:[%s914] sm:$0xff]
          %v1719 = vld [vmem:[%s914 + $0x8] sm:$0xff]
          %v1720 = vld [vmem:[%s914 + $0x10] sm:$0xff]
          %v1721 = vld [vmem:[%s920] sm:$0xff]
          %v1722 = vld [vmem:[%s920 + $0x8] sm:$0xff]
          %v1723 = vld [vmem:[%s920 + $0x10] sm:$0xff]
          %v1725 = vsel %vm924, %v1721, 0
          %v1728 = vsel %vm924, %v1722, 0
          %v1731 = vsel %vm924, %v1723, 0
          %1733 = vmatprep.subr.mxu0 0.0
          %1734 = vmatpush1.msra.mxu0 0.0
          %1735 = vmatprep.subr.mxu0 0.0
          %1736 = vmatpush1.msra.mxu0 0.0
          %1737 = vmatprep.subr.mxu0 0.0
          %1738 = vmatpush1.msra.mxu0 0.0
          %1739 = vmatprep.subr.mxu0 0.0
          %1740 = vmatpush1.msra.mxu0 0.0
          %1741 = vmatprep.subr.mxu0 0.0
          %1742 = vmatpush1.msra.mxu0 0.0
          %1743 = vmatprep.subr.mxu0 0.0
          %1744 = vmatpush1.msra.mxu0 0.0
          %1745 = vmatprep.subr.mxu0 0.0
          %1746 = vmatpush1.msra.mxu0 0.0
          %1747 = vmatprep.subr.mxu0 0.0
          %1748 = vmatpush1.msra.mxu0 0.0
          %1749 = vmatprep.subr.mxu0 0.0
          %1750 = vmatpush1.msra.mxu0 0.0
          %1751 = vmatprep.subr.mxu0 0.0
          %1752 = vmatpush1.msra.mxu0 0.0
          %1753 = vmatprep.subr.mxu0 0.0
          %1754 = vmatpush1.msra.mxu0 0.0
          %1755 = vmatprep.subr.mxu0 0.0
          %1756 = vmatpush1.msra.mxu0 0.0
          %1757 = vmatprep.subr.mxu0 0.0
          %1758 = vmatpush1.msra.mxu0 0.0
          %1759 = vmatprep.subr.mxu0 0.0
          %1760 = vmatpush1.msra.mxu0 %v855
          %1761 = vmatprep.subr.mxu0 0.0
          %1762 = vmatpush1.msra.mxu0 %v849
          %1763 = vmatprep.subr.mxu0 0.0
          %1764 = vmatpush1.msra.mxu0 %v843
          %1765 = vmatprep.subr.mxu0 0.0
          %1766 = vmatpush2.msra.mxu0 0.0
          %1767 = vmatprep.subr.mxu0 0.0
          %1768 = vmatpush2.msra.mxu0 0.0
          %1769 = vmatprep.subr.mxu0 0.0
          %1770 = vmatpush2.msra.mxu0 0.0
          %1771 = vmatprep.subr.mxu0 0.0
          %1772 = vmatpush2.msra.mxu0 0.0
          %1773 = vmatprep.subr.mxu0 0.0
          %1774 = vmatpush2.msra.mxu0 0.0
          %1775 = vmatprep.subr.mxu0 0.0
          %1776 = vmatpush2.msra.mxu0 0.0
          %1777 = vmatprep.subr.mxu0 0.0
          %1778 = vmatpush2.msra.mxu0 0.0
          %1779 = vmatprep.subr.mxu0 0.0
          %1780 = vmatpush2.msra.mxu0 0.0
          %1781 = vmatprep.subr.mxu0 0.0
          %1782 = vmatpush2.msra.mxu0 0.0
          %1783 = vmatprep.subr.mxu0 0.0
          %1784 = vmatpush2.msra.mxu0 0.0
          %1785 = vmatprep.subr.mxu0 0.0
          %1786 = vmatpush2.msra.mxu0 0.0
          %1787 = vmatprep.subr.mxu0 0.0
          %1788 = vmatpush2.msra.mxu0 0.0
          %1789 = vmatprep.subr.mxu0 0.0
          %1790 = vmatpush2.msra.mxu0 0.0
          %1791 = vmatprep.subr.mxu0 0.0
          %1792 = vmatpush2.msra.mxu0 0.0
          %1793 = vmatprep.subr.mxu0 0.0
          %1794 = vmatpush2.msra.mxu0 0.0
          %1795 = vmatprep.subr.mxu0 0.0
          %1796 = vmatpush2.msra.mxu0 0.0
          %1797 = vmatprep.mubr.f32.mxu0 0.0
          %1798 = vmatmul.mubr.f32.gmra.mxu0 %v1725
          %v1799 = vpop.f32.mrf.mxu0
          %v1800 = vadd.f32 0.0, %v1799
          %v1801 = vpop.f32.mrf.mxu0
          %1802 = vmatprep.mubr.f32.mxu0 0.0
          %1803 = vmatmul.mubr.f32.gmra.mxu0 %v1728
          %v1804 = vpop.f32.mrf.mxu0
          %v1805 = vadd.f32 0.0, %v1804
          %v1806 = vpop.f32.mrf.mxu0
          %1807 = vmatprep.mubr.f32.mxu0 0.0
          %1808 = vmatmul.mubr.f32.gmra.mxu0 %v1731
          %v1809 = vpop.f32.mrf.mxu0
          %v1810 = vadd.f32 0.0, %v1809
          %v1811 = vpop.f32.mrf.mxu0
          %1812 = vdwg.mxu0
          %v1813 = vadd.f32 %v1718, %v1800
          %v1814 = vadd.f32 %v1719, %v1805
          %v1815 = vadd.f32 %v1720, %v1810
          %v1816 = vld [vmem:[%s1019] sm:$0xff]
          %v1817 = vld [vmem:[%s1019 + $0x8] sm:$0xff]
          %v1818 = vld [vmem:[%s1019 + $0x10] sm:$0xff]
          %v1820 = vsel %vm924, %v1816, 0
          %v1823 = vsel %vm924, %v1817, 0
          %v1826 = vsel %vm924, %v1818, 0
          %1828 = vmatprep.subr.mxu0 0.0
          %1829 = vmatpush1.msra.mxu0 0.0
          %1830 = vmatprep.subr.mxu0 0.0
          %1831 = vmatpush1.msra.mxu0 0.0
          %1832 = vmatprep.subr.mxu0 0.0
          %1833 = vmatpush1.msra.mxu0 0.0
          %1834 = vmatprep.subr.mxu0 0.0
          %1835 = vmatpush1.msra.mxu0 0.0
          %1836 = vmatprep.subr.mxu0 0.0
          %1837 = vmatpush1.msra.mxu0 0.0
          %1838 = vmatprep.subr.mxu0 0.0
          %1839 = vmatpush1.msra.mxu0 0.0
          %1840 = vmatprep.subr.mxu0 0.0
          %1841 = vmatpush1.msra.mxu0 0.0
          %1842 = vmatprep.subr.mxu0 0.0
          %1843 = vmatpush1.msra.mxu0 0.0
          %1844 = vmatprep.subr.mxu0 0.0
          %1845 = vmatpush1.msra.mxu0 0.0
          %1846 = vmatprep.subr.mxu0 0.0
          %1847 = vmatpush1.msra.mxu0 0.0
          %1848 = vmatprep.subr.mxu0 0.0
          %1849 = vmatpush1.msra.mxu0 0.0
          %1850 = vmatprep.subr.mxu0 0.0
          %1851 = vmatpush1.msra.mxu0 0.0
          %1852 = vmatprep.subr.mxu0 0.0
          %1853 = vmatpush1.msra.mxu0 0.0
          %1854 = vmatprep.subr.mxu0 0.0
          %1855 = vmatpush1.msra.mxu0 %v857
          %1856 = vmatprep.subr.mxu0 0.0
          %1857 = vmatpush1.msra.mxu0 %v851
          %1858 = vmatprep.subr.mxu0 0.0
          %1859 = vmatpush1.msra.mxu0 %v845
          %1860 = vmatprep.subr.mxu0 0.0
          %1861 = vmatpush2.msra.mxu0 0.0
          %1862 = vmatprep.subr.mxu0 0.0
          %1863 = vmatpush2.msra.mxu0 0.0
          %1864 = vmatprep.subr.mxu0 0.0
          %1865 = vmatpush2.msra.mxu0 0.0
          %1866 = vmatprep.subr.mxu0 0.0
          %1867 = vmatpush2.msra.mxu0 0.0
          %1868 = vmatprep.subr.mxu0 0.0
          %1869 = vmatpush2.msra.mxu0 0.0
          %1870 = vmatprep.subr.mxu0 0.0
          %1871 = vmatpush2.msra.mxu0 0.0
          %1872 = vmatprep.subr.mxu0 0.0
          %1873 = vmatpush2.msra.mxu0 0.0
          %1874 = vmatprep.subr.mxu0 0.0
          %1875 = vmatpush2.msra.mxu0 0.0
          %1876 = vmatprep.subr.mxu0 0.0
          %1877 = vmatpush2.msra.mxu0 0.0
          %1878 = vmatprep.subr.mxu0 0.0
          %1879 = vmatpush2.msra.mxu0 0.0
          %1880 = vmatprep.subr.mxu0 0.0
          %1881 = vmatpush2.msra.mxu0 0.0
          %1882 = vmatprep.subr.mxu0 0.0
          %1883 = vmatpush2.msra.mxu0 0.0
          %1884 = vmatprep.subr.mxu0 0.0
          %1885 = vmatpush2.msra.mxu0 0.0
          %1886 = vmatprep.subr.mxu0 0.0
          %1887 = vmatpush2.msra.mxu0 0.0
          %1888 = vmatprep.subr.mxu0 0.0
          %1889 = vmatpush2.msra.mxu0 0.0
          %1890 = vmatprep.subr.mxu0 0.0
          %1891 = vmatpush2.msra.mxu0 0.0
          %1892 = vmatprep.mubr.f32.mxu0 0.0
          %1893 = vmatmul.mubr.f32.gmra.mxu0 %v1820
          %v1894 = vpop.f32.mrf.mxu0
          %v1895 = vadd.f32 0.0, %v1894
          %v1896 = vpop.f32.mrf.mxu0
          %1897 = vmatprep.mubr.f32.mxu0 0.0
          %1898 = vmatmul.mubr.f32.gmra.mxu0 %v1823
          %v1899 = vpop.f32.mrf.mxu0
          %v1900 = vadd.f32 0.0, %v1899
          %v1901 = vpop.f32.mrf.mxu0
          %1902 = vmatprep.mubr.f32.mxu0 0.0
          %1903 = vmatmul.mubr.f32.gmra.mxu0 %v1826
          %v1904 = vpop.f32.mrf.mxu0
          %v1905 = vadd.f32 0.0, %v1904
          %v1906 = vpop.f32.mrf.mxu0
          %1907 = vdwg.mxu0
          %v1908 = vadd.f32 %v1813, %v1895
          %v1909 = vadd.f32 %v1814, %v1900
          %v1910 = vadd.f32 %v1815, %v1905
          %v1911 = vmax.f32 %v1908, 0.0
          %v1912 = vmax.f32 %v1909, 0.0
          %v1913 = vmax.f32 %v1910, 0.0
          %1914 = vst [vmem:[#allocation3 + $0xc0] sm:$0xff] %v1911
          %1915 = vst [vmem:[#allocation3 + $0xc8] sm:$0xff] %v1912
          %1916 = vst [vmem:[#allocation3 + $0xd0] sm:$0xff] %v1913
          %v1917 = vld [vmem:[%s914] sm:$0xff]
          %v1918 = vld [vmem:[%s914 + $0x8] sm:$0xff]
          %v1919 = vld [vmem:[%s914 + $0x10] sm:$0xff]
          %v1920 = vld [vmem:[%s920] sm:$0xff]
          %v1921 = vld [vmem:[%s920 + $0x8] sm:$0xff]
          %v1922 = vld [vmem:[%s920 + $0x10] sm:$0xff]
          %v1924 = vsel %vm924, %v1920, 0
          %v1927 = vsel %vm924, %v1921, 0
          %v1930 = vsel %vm924, %v1922, 0
          %1932 = vmatprep.subr.mxu0 0.0
          %1933 = vmatpush1.msra.mxu0 0.0
          %1934 = vmatprep.subr.mxu0 0.0
          %1935 = vmatpush1.msra.mxu0 0.0
          %1936 = vmatprep.subr.mxu0 0.0
          %1937 = vmatpush1.msra.mxu0 0.0
          %1938 = vmatprep.subr.mxu0 0.0
          %1939 = vmatpush1.msra.mxu0 0.0
          %1940 = vmatprep.subr.mxu0 0.0
          %1941 = vmatpush1.msra.mxu0 0.0
          %1942 = vmatprep.subr.mxu0 0.0
          %1943 = vmatpush1.msra.mxu0 0.0
          %1944 = vmatprep.subr.mxu0 0.0
          %1945 = vmatpush1.msra.mxu0 0.0
          %1946 = vmatprep.subr.mxu0 0.0
          %1947 = vmatpush1.msra.mxu0 0.0
          %1948 = vmatprep.subr.mxu0 0.0
          %1949 = vmatpush1.msra.mxu0 0.0
          %1950 = vmatprep.subr.mxu0 0.0
          %1951 = vmatpush1.msra.mxu0 0.0
          %1952 = vmatprep.subr.mxu0 0.0
          %1953 = vmatpush1.msra.mxu0 0.0
          %1954 = vmatprep.subr.mxu0 0.0
          %1955 = vmatpush1.msra.mxu0 0.0
          %1956 = vmatprep.subr.mxu0 0.0
          %1957 = vmatpush1.msra.mxu0 0.0
          %1958 = vmatprep.subr.mxu0 0.0
          %1959 = vmatpush1.msra.mxu0 %v873
          %1960 = vmatprep.subr.mxu0 0.0
          %1961 = vmatpush1.msra.mxu0 %v867
          %1962 = vmatprep.subr.mxu0 0.0
          %1963 = vmatpush1.msra.mxu0 %v861
          %1964 = vmatprep.subr.mxu0 0.0
          %1965 = vmatpush2.msra.mxu0 0.0
          %1966 = vmatprep.subr.mxu0 0.0
          %1967 = vmatpush2.msra.mxu0 0.0
          %1968 = vmatprep.subr.mxu0 0.0
          %1969 = vmatpush2.msra.mxu0 0.0
          %1970 = vmatprep.subr.mxu0 0.0
          %1971 = vmatpush2.msra.mxu0 0.0
          %1972 = vmatprep.subr.mxu0 0.0
          %1973 = vmatpush2.msra.mxu0 0.0
          %1974 = vmatprep.subr.mxu0 0.0
          %1975 = vmatpush2.msra.mxu0 0.0
          %1976 = vmatprep.subr.mxu0 0.0
          %1977 = vmatpush2.msra.mxu0 0.0
          %1978 = vmatprep.subr.mxu0 0.0
          %1979 = vmatpush2.msra.mxu0 0.0
          %1980 = vmatprep.subr.mxu0 0.0
          %1981 = vmatpush2.msra.mxu0 0.0
          %1982 = vmatprep.subr.mxu0 0.0
          %1983 = vmatpush2.msra.mxu0 0.0
          %1984 = vmatprep.subr.mxu0 0.0
          %1985 = vmatpush2.msra.mxu0 0.0
          %1986 = vmatprep.subr.mxu0 0.0
          %1987 = vmatpush2.msra.mxu0 0.0
          %1988 = vmatprep.subr.mxu0 0.0
          %1989 = vmatpush2.msra.mxu0 0.0
          %1990 = vmatprep.subr.mxu0 0.0
          %1991 = vmatpush2.msra.mxu0 0.0
          %1992 = vmatprep.subr.mxu0 0.0
          %1993 = vmatpush2.msra.mxu0 0.0
          %1994 = vmatprep.subr.mxu0 0.0
          %1995 = vmatpush2.msra.mxu0 0.0
          %1996 = vmatprep.mubr.f32.mxu0 0.0
          %1997 = vmatmul.mubr.f32.gmra.mxu0 %v1924
          %v1998 = vpop.f32.mrf.mxu0
          %v1999 = vadd.f32 0.0, %v1998
          %v2000 = vpop.f32.mrf.mxu0
          %2001 = vmatprep.mubr.f32.mxu0 0.0
          %2002 = vmatmul.mubr.f32.gmra.mxu0 %v1927
          %v2003 = vpop.f32.mrf.mxu0
          %v2004 = vadd.f32 0.0, %v2003
          %v2005 = vpop.f32.mrf.mxu0
          %2006 = vmatprep.mubr.f32.mxu0 0.0
          %2007 = vmatmul.mubr.f32.gmra.mxu0 %v1930
          %v2008 = vpop.f32.mrf.mxu0
          %v2009 = vadd.f32 0.0, %v2008
          %v2010 = vpop.f32.mrf.mxu0
          %2011 = vdwg.mxu0
          %v2012 = vadd.f32 %v1917, %v1999
          %v2013 = vadd.f32 %v1918, %v2004
          %v2014 = vadd.f32 %v1919, %v2009
          %v2015 = vld [vmem:[%s1019] sm:$0xff]
          %v2016 = vld [vmem:[%s1019 + $0x8] sm:$0xff]
          %v2017 = vld [vmem:[%s1019 + $0x10] sm:$0xff]
          %v2019 = vsel %vm924, %v2015, 0
          %v2022 = vsel %vm924, %v2016, 0
          %v2025 = vsel %vm924, %v2017, 0
          %2027 = vmatprep.subr.mxu0 0.0
          %2028 = vmatpush1.msra.mxu0 0.0
          %2029 = vmatprep.subr.mxu0 0.0
          %2030 = vmatpush1.msra.mxu0 0.0
          %2031 = vmatprep.subr.mxu0 0.0
          %2032 = vmatpush1.msra.mxu0 0.0
          %2033 = vmatprep.subr.mxu0 0.0
          %2034 = vmatpush1.msra.mxu0 0.0
          %2035 = vmatprep.subr.mxu0 0.0
          %2036 = vmatpush1.msra.mxu0 0.0
          %2037 = vmatprep.subr.mxu0 0.0
          %2038 = vmatpush1.msra.mxu0 0.0
          %2039 = vmatprep.subr.mxu0 0.0
          %2040 = vmatpush1.msra.mxu0 0.0
          %2041 = vmatprep.subr.mxu0 0.0
          %2042 = vmatpush1.msra.mxu0 0.0
          %2043 = vmatprep.subr.mxu0 0.0
          %2044 = vmatpush1.msra.mxu0 0.0
          %2045 = vmatprep.subr.mxu0 0.0
          %2046 = vmatpush1.msra.mxu0 0.0
          %2047 = vmatprep.subr.mxu0 0.0
          %2048 = vmatpush1.msra.mxu0 0.0
          %2049 = vmatprep.subr.mxu0 0.0
          %2050 = vmatpush1.msra.mxu0 0.0
          %2051 = vmatprep.subr.mxu0 0.0
          %2052 = vmatpush1.msra.mxu0 0.0
          %2053 = vmatprep.subr.mxu0 0.0
          %2054 = vmatpush1.msra.mxu0 %v875
          %2055 = vmatprep.subr.mxu0 0.0
          %2056 = vmatpush1.msra.mxu0 %v869
          %2057 = vmatprep.subr.mxu0 0.0
          %2058 = vmatpush1.msra.mxu0 %v863
          %2059 = vmatprep.subr.mxu0 0.0
          %2060 = vmatpush2.msra.mxu0 0.0
          %2061 = vmatprep.subr.mxu0 0.0
          %2062 = vmatpush2.msra.mxu0 0.0
          %2063 = vmatprep.subr.mxu0 0.0
          %2064 = vmatpush2.msra.mxu0 0.0
          %2065 = vmatprep.subr.mxu0 0.0
          %2066 = vmatpush2.msra.mxu0 0.0
          %2067 = vmatprep.subr.mxu0 0.0
          %2068 = vmatpush2.msra.mxu0 0.0
          %2069 = vmatprep.subr.mxu0 0.0
          %2070 = vmatpush2.msra.mxu0 0.0
          %2071 = vmatprep.subr.mxu0 0.0
          %2072 = vmatpush2.msra.mxu0 0.0
          %2073 = vmatprep.subr.mxu0 0.0
          %2074 = vmatpush2.msra.mxu0 0.0
          %2075 = vmatprep.subr.mxu0 0.0
          %2076 = vmatpush2.msra.mxu0 0.0
          %2077 = vmatprep.subr.mxu0 0.0
          %2078 = vmatpush2.msra.mxu0 0.0
          %2079 = vmatprep.subr.mxu0 0.0
          %2080 = vmatpush2.msra.mxu0 0.0
          %2081 = vmatprep.subr.mxu0 0.0
          %2082 = vmatpush2.msra.mxu0 0.0
          %2083 = vmatprep.subr.mxu0 0.0
          %2084 = vmatpush2.msra.mxu0 0.0
          %2085 = vmatprep.subr.mxu0 0.0
          %2086 = vmatpush2.msra.mxu0 0.0
          %2087 = vmatprep.subr.mxu0 0.0
          %2088 = vmatpush2.msra.mxu0 0.0
          %2089 = vmatprep.subr.mxu0 0.0
          %2090 = vmatpush2.msra.mxu0 0.0
          %2091 = vmatprep.mubr.f32.mxu0 0.0
          %2092 = vmatmul.mubr.f32.gmra.mxu0 %v2019
          %v2093 = vpop.f32.mrf.mxu0
          %v2094 = vadd.f32 0.0, %v2093
          %v2095 = vpop.f32.mrf.mxu0
          %2096 = vmatprep.mubr.f32.mxu0 0.0
          %2097 = vmatmul.mubr.f32.gmra.mxu0 %v2022
          %v2098 = vpop.f32.mrf.mxu0
          %v2099 = vadd.f32 0.0, %v2098
          %v2100 = vpop.f32.mrf.mxu0
          %2101 = vmatprep.mubr.f32.mxu0 0.0
          %2102 = vmatmul.mubr.f32.gmra.mxu0 %v2025
          %v2103 = vpop.f32.mrf.mxu0
          %v2104 = vadd.f32 0.0, %v2103
          %v2105 = vpop.f32.mrf.mxu0
          %2106 = vdwg.mxu0
          %v2107 = vadd.f32 %v2012, %v2094
          %v2108 = vadd.f32 %v2013, %v2099
          %v2109 = vadd.f32 %v2014, %v2104
          %v2110 = vmax.f32 %v2107, 0.0
          %v2111 = vmax.f32 %v2108, 0.0
          %v2112 = vmax.f32 %v2109, 0.0
          %2113 = vst [vmem:[#allocation3 + $0xd8] sm:$0xff] %v2110
          %2114 = vst [vmem:[#allocation3 + $0xe0] sm:$0xff] %v2111
          %2115 = vst [vmem:[#allocation3 + $0xe8] sm:$0xff] %v2112
          %v2116 = vld [vmem:[%s914] sm:$0xff]
          %v2117 = vld [vmem:[%s914 + $0x8] sm:$0xff]
          %v2118 = vld [vmem:[%s914 + $0x10] sm:$0xff]
          %v2119 = vld [vmem:[%s920] sm:$0xff]
          %v2120 = vld [vmem:[%s920 + $0x8] sm:$0xff]
          %v2121 = vld [vmem:[%s920 + $0x10] sm:$0xff]
          %v2123 = vsel %vm924, %v2119, 0
          %v2126 = vsel %vm924, %v2120, 0
          %v2129 = vsel %vm924, %v2121, 0
          %2131 = vmatprep.subr.mxu0 0.0
          %2132 = vmatpush1.msra.mxu0 0.0
          %2133 = vmatprep.subr.mxu0 0.0
          %2134 = vmatpush1.msra.mxu0 0.0
          %2135 = vmatprep.subr.mxu0 0.0
          %2136 = vmatpush1.msra.mxu0 0.0
          %2137 = vmatprep.subr.mxu0 0.0
          %2138 = vmatpush1.msra.mxu0 0.0
          %2139 = vmatprep.subr.mxu0 0.0
          %2140 = vmatpush1.msra.mxu0 0.0
          %2141 = vmatprep.subr.mxu0 0.0
          %2142 = vmatpush1.msra.mxu0 0.0
          %2143 = vmatprep.subr.mxu0 0.0
          %2144 = vmatpush1.msra.mxu0 0.0
          %2145 = vmatprep.subr.mxu0 0.0
          %2146 = vmatpush1.msra.mxu0 0.0
          %2147 = vmatprep.subr.mxu0 0.0
          %2148 = vmatpush1.msra.mxu0 0.0
          %2149 = vmatprep.subr.mxu0 0.0
          %2150 = vmatpush1.msra.mxu0 0.0
          %2151 = vmatprep.subr.mxu0 0.0
          %2152 = vmatpush1.msra.mxu0 0.0
          %2153 = vmatprep.subr.mxu0 0.0
          %2154 = vmatpush1.msra.mxu0 0.0
          %2155 = vmatprep.subr.mxu0 0.0
          %2156 = vmatpush1.msra.mxu0 0.0
          %2157 = vmatprep.subr.mxu0 0.0
          %2158 = vmatpush1.msra.mxu0 %v891
          %2159 = vmatprep.subr.mxu0 0.0
          %2160 = vmatpush1.msra.mxu0 %v885
          %2161 = vmatprep.subr.mxu0 0.0
          %2162 = vmatpush1.msra.mxu0 %v879
          %2163 = vmatprep.subr.mxu0 0.0
          %2164 = vmatpush2.msra.mxu0 0.0
          %2165 = vmatprep.subr.mxu0 0.0
          %2166 = vmatpush2.msra.mxu0 0.0
          %2167 = vmatprep.subr.mxu0 0.0
          %2168 = vmatpush2.msra.mxu0 0.0
          %2169 = vmatprep.subr.mxu0 0.0
          %2170 = vmatpush2.msra.mxu0 0.0
          %2171 = vmatprep.subr.mxu0 0.0
          %2172 = vmatpush2.msra.mxu0 0.0
          %2173 = vmatprep.subr.mxu0 0.0
          %2174 = vmatpush2.msra.mxu0 0.0
          %2175 = vmatprep.subr.mxu0 0.0
          %2176 = vmatpush2.msra.mxu0 0.0
          %2177 = vmatprep.subr.mxu0 0.0
          %2178 = vmatpush2.msra.mxu0 0.0
          %2179 = vmatprep.subr.mxu0 0.0
          %2180 = vmatpush2.msra.mxu0 0.0
          %2181 = vmatprep.subr.mxu0 0.0
          %2182 = vmatpush2.msra.mxu0 0.0
          %2183 = vmatprep.subr.mxu0 0.0
          %2184 = vmatpush2.msra.mxu0 0.0
          %2185 = vmatprep.subr.mxu0 0.0
          %2186 = vmatpush2.msra.mxu0 0.0
          %2187 = vmatprep.subr.mxu0 0.0
          %2188 = vmatpush2.msra.mxu0 0.0
          %2189 = vmatprep.subr.mxu0 0.0
          %2190 = vmatpush2.msra.mxu0 0.0
          %2191 = vmatprep.subr.mxu0 0.0
          %2192 = vmatpush2.msra.mxu0 0.0
          %2193 = vmatprep.subr.mxu0 0.0
          %2194 = vmatpush2.msra.mxu0 0.0
          %2195 = vmatprep.mubr.f32.mxu0 0.0
          %2196 = vmatmul.mubr.f32.gmra.mxu0 %v2123
          %v2197 = vpop.f32.mrf.mxu0
          %v2198 = vadd.f32 0.0, %v2197
          %v2199 = vpop.f32.mrf.mxu0
          %2200 = vmatprep.mubr.f32.mxu0 0.0
          %2201 = vmatmul.mubr.f32.gmra.mxu0 %v2126
          %v2202 = vpop.f32.mrf.mxu0
          %v2203 = vadd.f32 0.0, %v2202
          %v2204 = vpop.f32.mrf.mxu0
          %2205 = vmatprep.mubr.f32.mxu0 0.0
          %2206 = vmatmul.mubr.f32.gmra.mxu0 %v2129
          %v2207 = vpop.f32.mrf.mxu0
          %v2208 = vadd.f32 0.0, %v2207
          %v2209 = vpop.f32.mrf.mxu0
          %2210 = vdwg.mxu0
          %v2211 = vadd.f32 %v2116, %v2198
          %v2212 = vadd.f32 %v2117, %v2203
          %v2213 = vadd.f32 %v2118, %v2208
          %v2214 = vld [vmem:[%s1019] sm:$0xff]
          %v2215 = vld [vmem:[%s1019 + $0x8] sm:$0xff]
          %v2216 = vld [vmem:[%s1019 + $0x10] sm:$0xff]
          %v2218 = vsel %vm924, %v2214, 0
          %v2221 = vsel %vm924, %v2215, 0
          %v2224 = vsel %vm924, %v2216, 0
          %2226 = vmatprep.subr.mxu0 0.0
          %2227 = vmatpush1.msra.mxu0 0.0
          %2228 = vmatprep.subr.mxu0 0.0
          %2229 = vmatpush1.msra.mxu0 0.0
          %2230 = vmatprep.subr.mxu0 0.0
          %2231 = vmatpush1.msra.mxu0 0.0
          %2232 = vmatprep.subr.mxu0 0.0
          %2233 = vmatpush1.msra.mxu0 0.0
          %2234 = vmatprep.subr.mxu0 0.0
          %2235 = vmatpush1.msra.mxu0 0.0
          %2236 = vmatprep.subr.mxu0 0.0
          %2237 = vmatpush1.msra.mxu0 0.0
          %2238 = vmatprep.subr.mxu0 0.0
          %2239 = vmatpush1.msra.mxu0 0.0
          %2240 = vmatprep.subr.mxu0 0.0
          %2241 = vmatpush1.msra.mxu0 0.0
          %2242 = vmatprep.subr.mxu0 0.0
          %2243 = vmatpush1.msra.mxu0 0.0
          %2244 = vmatprep.subr.mxu0 0.0
          %2245 = vmatpush1.msra.mxu0 0.0
          %2246 = vmatprep.subr.mxu0 0.0
          %2247 = vmatpush1.msra.mxu0 0.0
          %2248 = vmatprep.subr.mxu0 0.0
          %2249 = vmatpush1.msra.mxu0 0.0
          %2250 = vmatprep.subr.mxu0 0.0
          %2251 = vmatpush1.msra.mxu0 0.0
          %2252 = vmatprep.subr.mxu0 0.0
          %2253 = vmatpush1.msra.mxu0 %v893
          %2254 = vmatprep.subr.mxu0 0.0
          %2255 = vmatpush1.msra.mxu0 %v887
          %2256 = vmatprep.subr.mxu0 0.0
          %2257 = vmatpush1.msra.mxu0 %v881
          %2258 = vmatprep.subr.mxu0 0.0
          %2259 = vmatpush2.msra.mxu0 0.0
          %2260 = vmatprep.subr.mxu0 0.0
          %2261 = vmatpush2.msra.mxu0 0.0
          %2262 = vmatprep.subr.mxu0 0.0
          %2263 = vmatpush2.msra.mxu0 0.0
          %2264 = vmatprep.subr.mxu0 0.0
          %2265 = vmatpush2.msra.mxu0 0.0
          %2266 = vmatprep.subr.mxu0 0.0
          %2267 = vmatpush2.msra.mxu0 0.0
          %2268 = vmatprep.subr.mxu0 0.0
          %2269 = vmatpush2.msra.mxu0 0.0
          %2270 = vmatprep.subr.mxu0 0.0
          %2271 = vmatpush2.msra.mxu0 0.0
          %2272 = vmatprep.subr.mxu0 0.0
          %2273 = vmatpush2.msra.mxu0 0.0
          %2274 = vmatprep.subr.mxu0 0.0
          %2275 = vmatpush2.msra.mxu0 0.0
          %2276 = vmatprep.subr.mxu0 0.0
          %2277 = vmatpush2.msra.mxu0 0.0
          %2278 = vmatprep.subr.mxu0 0.0
          %2279 = vmatpush2.msra.mxu0 0.0
          %2280 = vmatprep.subr.mxu0 0.0
          %2281 = vmatpush2.msra.mxu0 0.0
          %2282 = vmatprep.subr.mxu0 0.0
          %2283 = vmatpush2.msra.mxu0 0.0
          %2284 = vmatprep.subr.mxu0 0.0
          %2285 = vmatpush2.msra.mxu0 0.0
          %2286 = vmatprep.subr.mxu0 0.0
          %2287 = vmatpush2.msra.mxu0 0.0
          %2288 = vmatprep.subr.mxu0 0.0
          %2289 = vmatpush2.msra.mxu0 0.0
          %2290 = vmatprep.mubr.f32.mxu0 0.0
          %2291 = vmatmul.mubr.f32.gmra.mxu0 %v2218
          %v2292 = vpop.f32.mrf.mxu0
          %v2293 = vadd.f32 0.0, %v2292
          %v2294 = vpop.f32.mrf.mxu0
          %2295 = vmatprep.mubr.f32.mxu0 0.0
          %2296 = vmatmul.mubr.f32.gmra.mxu0 %v2221
          %v2297 = vpop.f32.mrf.mxu0
          %v2298 = vadd.f32 0.0, %v2297
          %v2299 = vpop.f32.mrf.mxu0
          %2300 = vmatprep.mubr.f32.mxu0 0.0
          %2301 = vmatmul.mubr.f32.gmra.mxu0 %v2224
          %v2302 = vpop.f32.mrf.mxu0
          %v2303 = vadd.f32 0.0, %v2302
          %v2304 = vpop.f32.mrf.mxu0
          %2305 = vdwg.mxu0
          %v2306 = vadd.f32 %v2211, %v2293
          %v2307 = vadd.f32 %v2212, %v2298
          %v2308 = vadd.f32 %v2213, %v2303
          %v2309 = vmax.f32 %v2306, 0.0
          %v2310 = vmax.f32 %v2307, 0.0
          %v2311 = vmax.f32 %v2308, 0.0
          %2312 = vst [vmem:[#allocation3 + $0xf0] sm:$0xff] %v2309
          %2313 = vst [vmem:[#allocation3 + $0xf8] sm:$0xff] %v2310
          %2314 = vst [vmem:[#allocation3 + $0x100] sm:$0xff] %v2311
          %v2315 = vld [vmem:[%s914] sm:$0xff]
          %v2316 = vld [vmem:[%s914 + $0x8] sm:$0xff]
          %v2317 = vld [vmem:[%s914 + $0x10] sm:$0xff]
          %v2318 = vld [vmem:[%s920] sm:$0xff]
          %v2319 = vld [vmem:[%s920 + $0x8] sm:$0xff]
          %v2320 = vld [vmem:[%s920 + $0x10] sm:$0xff]
          %v2322 = vsel %vm924, %v2318, 0
          %v2325 = vsel %vm924, %v2319, 0
          %v2328 = vsel %vm924, %v2320, 0
          %2330 = vmatprep.subr.mxu0 0.0
          %2331 = vmatpush1.msra.mxu0 0.0
          %2332 = vmatprep.subr.mxu0 0.0
          %2333 = vmatpush1.msra.mxu0 0.0
          %2334 = vmatprep.subr.mxu0 0.0
          %2335 = vmatpush1.msra.mxu0 0.0
          %2336 = vmatprep.subr.mxu0 0.0
          %2337 = vmatpush1.msra.mxu0 0.0
          %2338 = vmatprep.subr.mxu0 0.0
          %2339 = vmatpush1.msra.mxu0 0.0
          %2340 = vmatprep.subr.mxu0 0.0
          %2341 = vmatpush1.msra.mxu0 0.0
          %2342 = vmatprep.subr.mxu0 0.0
          %2343 = vmatpush1.msra.mxu0 0.0
          %2344 = vmatprep.subr.mxu0 0.0
          %2345 = vmatpush1.msra.mxu0 0.0
          %2346 = vmatprep.subr.mxu0 0.0
          %2347 = vmatpush1.msra.mxu0 0.0
          %2348 = vmatprep.subr.mxu0 0.0
          %2349 = vmatpush1.msra.mxu0 0.0
          %2350 = vmatprep.subr.mxu0 0.0
          %2351 = vmatpush1.msra.mxu0 0.0
          %2352 = vmatprep.subr.mxu0 0.0
          %2353 = vmatpush1.msra.mxu0 0.0
          %2354 = vmatprep.subr.mxu0 0.0
          %2355 = vmatpush1.msra.mxu0 0.0
          %2356 = vmatprep.subr.mxu0 0.0
          %2357 = vmatpush1.msra.mxu0 %v909
          %2358 = vmatprep.subr.mxu0 0.0
          %2359 = vmatpush1.msra.mxu0 %v903
          %2360 = vmatprep.subr.mxu0 0.0
          %2361 = vmatpush1.msra.mxu0 %v897
          %2362 = vmatprep.subr.mxu0 0.0
          %2363 = vmatpush2.msra.mxu0 0.0
          %2364 = vmatprep.subr.mxu0 0.0
          %2365 = vmatpush2.msra.mxu0 0.0
          %2366 = vmatprep.subr.mxu0 0.0
          %2367 = vmatpush2.msra.mxu0 0.0
          %2368 = vmatprep.subr.mxu0 0.0
          %2369 = vmatpush2.msra.mxu0 0.0
          %2370 = vmatprep.subr.mxu0 0.0
          %2371 = vmatpush2.msra.mxu0 0.0
          %2372 = vmatprep.subr.mxu0 0.0
          %2373 = vmatpush2.msra.mxu0 0.0
          %2374 = vmatprep.subr.mxu0 0.0
          %2375 = vmatpush2.msra.mxu0 0.0
          %2376 = vmatprep.subr.mxu0 0.0
          %2377 = vmatpush2.msra.mxu0 0.0
          %2378 = vmatprep.subr.mxu0 0.0
          %2379 = vmatpush2.msra.mxu0 0.0
          %2380 = vmatprep.subr.mxu0 0.0
          %2381 = vmatpush2.msra.mxu0 0.0
          %2382 = vmatprep.subr.mxu0 0.0
          %2383 = vmatpush2.msra.mxu0 0.0
          %2384 = vmatprep.subr.mxu0 0.0
          %2385 = vmatpush2.msra.mxu0 0.0
          %2386 = vmatprep.subr.mxu0 0.0
          %2387 = vmatpush2.msra.mxu0 0.0
          %2388 = vmatprep.subr.mxu0 0.0
          %2389 = vmatpush2.msra.mxu0 0.0
          %2390 = vmatprep.subr.mxu0 0.0
          %2391 = vmatpush2.msra.mxu0 0.0
          %2392 = vmatprep.subr.mxu0 0.0
          %2393 = vmatpush2.msra.mxu0 0.0
          %2394 = vmatprep.mubr.f32.mxu0 0.0
          %2395 = vmatmul.mubr.f32.gmra.mxu0 %v2322
          %v2396 = vpop.f32.mrf.mxu0
          %v2397 = vadd.f32 0.0, %v2396
          %v2398 = vpop.f32.mrf.mxu0
          %2399 = vmatprep.mubr.f32.mxu0 0.0
          %2400 = vmatmul.mubr.f32.gmra.mxu0 %v2325
          %v2401 = vpop.f32.mrf.mxu0
          %v2402 = vadd.f32 0.0, %v2401
          %v2403 = vpop.f32.mrf.mxu0
          %2404 = vmatprep.mubr.f32.mxu0 0.0
          %2405 = vmatmul.mubr.f32.gmra.mxu0 %v2328
          %v2406 = vpop.f32.mrf.mxu0
          %v2407 = vadd.f32 0.0, %v2406
          %v2408 = vpop.f32.mrf.mxu0
          %2409 = vdwg.mxu0
          %v2410 = vadd.f32 %v2315, %v2397
          %v2411 = vadd.f32 %v2316, %v2402
          %v2412 = vadd.f32 %v2317, %v2407
          %v2413 = vld [vmem:[%s1019] sm:$0xff]
          %v2414 = vld [vmem:[%s1019 + $0x8] sm:$0xff]
          %v2415 = vld [vmem:[%s1019 + $0x10] sm:$0xff]
          %v2417 = vsel %vm924, %v2413, 0
          %v2420 = vsel %vm924, %v2414, 0
          %v2423 = vsel %vm924, %v2415, 0
          %2425 = vmatprep.subr.mxu0 0.0
          %2426 = vmatpush1.msra.mxu0 0.0
          %2427 = vmatprep.subr.mxu0 0.0
          %2428 = vmatpush1.msra.mxu0 0.0
          %2429 = vmatprep.subr.mxu0 0.0
          %2430 = vmatpush1.msra.mxu0 0.0
          %2431 = vmatprep.subr.mxu0 0.0
          %2432 = vmatpush1.msra.mxu0 0.0
          %2433 = vmatprep.subr.mxu0 0.0
          %2434 = vmatpush1.msra.mxu0 0.0
          %2435 = vmatprep.subr.mxu0 0.0
          %2436 = vmatpush1.msra.mxu0 0.0
          %2437 = vmatprep.subr.mxu0 0.0
          %2438 = vmatpush1.msra.mxu0 0.0
          %2439 = vmatprep.subr.mxu0 0.0
          %2440 = vmatpush1.msra.mxu0 0.0
          %2441 = vmatprep.subr.mxu0 0.0
          %2442 = vmatpush1.msra.mxu0 0.0
          %2443 = vmatprep.subr.mxu0 0.0
          %2444 = vmatpush1.msra.mxu0 0.0
          %2445 = vmatprep.subr.mxu0 0.0
          %2446 = vmatpush1.msra.mxu0 0.0
          %2447 = vmatprep.subr.mxu0 0.0
          %2448 = vmatpush1.msra.mxu0 0.0
          %2449 = vmatprep.subr.mxu0 0.0
          %2450 = vmatpush1.msra.mxu0 0.0
          %2451 = vmatprep.subr.mxu0 0.0
          %2452 = vmatpush1.msra.mxu0 %v911
          %2453 = vmatprep.subr.mxu0 0.0
          %2454 = vmatpush1.msra.mxu0 %v905
          %2455 = vmatprep.subr.mxu0 0.0
          %2456 = vmatpush1.msra.mxu0 %v899
          %2457 = vmatprep.subr.mxu0 0.0
          %2458 = vmatpush2.msra.mxu0 0.0
          %2459 = vmatprep.subr.mxu0 0.0
          %2460 = vmatpush2.msra.mxu0 0.0
          %2461 = vmatprep.subr.mxu0 0.0
          %2462 = vmatpush2.msra.mxu0 0.0
          %2463 = vmatprep.subr.mxu0 0.0
          %2464 = vmatpush2.msra.mxu0 0.0
          %2465 = vmatprep.subr.mxu0 0.0
          %2466 = vmatpush2.msra.mxu0 0.0
          %2467 = vmatprep.subr.mxu0 0.0
          %2468 = vmatpush2.msra.mxu0 0.0
          %2469 = vmatprep.subr.mxu0 0.0
          %2470 = vmatpush2.msra.mxu0 0.0
          %2471 = vmatprep.subr.mxu0 0.0
          %2472 = vmatpush2.msra.mxu0 0.0
          %2473 = vmatprep.subr.mxu0 0.0
          %2474 = vmatpush2.msra.mxu0 0.0
          %2475 = vmatprep.subr.mxu0 0.0
          %2476 = vmatpush2.msra.mxu0 0.0
          %2477 = vmatprep.subr.mxu0 0.0
          %2478 = vmatpush2.msra.mxu0 0.0
          %2479 = vmatprep.subr.mxu0 0.0
          %2480 = vmatpush2.msra.mxu0 0.0
          %2481 = vmatprep.subr.mxu0 0.0
          %2482 = vmatpush2.msra.mxu0 0.0
          %2483 = vmatprep.subr.mxu0 0.0
          %2484 = vmatpush2.msra.mxu0 0.0
          %2485 = vmatprep.subr.mxu0 0.0
          %2486 = vmatpush2.msra.mxu0 0.0
          %2487 = vmatprep.subr.mxu0 0.0
          %2488 = vmatpush2.msra.mxu0 0.0
          %2489 = vmatprep.mubr.f32.mxu0 0.0
          %2490 = vmatmul.mubr.f32.gmra.mxu0 %v2417
          %v2491 = vpop.f32.mrf.mxu0
          %v2492 = vadd.f32 0.0, %v2491
          %v2493 = vpop.f32.mrf.mxu0
          %2494 = vmatprep.mubr.f32.mxu0 0.0
          %2495 = vmatmul.mubr.f32.gmra.mxu0 %v2420
          %v2496 = vpop.f32.mrf.mxu0
          %v2497 = vadd.f32 0.0, %v2496
          %v2498 = vpop.f32.mrf.mxu0
          %2499 = vmatprep.mubr.f32.mxu0 0.0
          %2500 = vmatmul.mubr.f32.gmra.mxu0 %v2423
          %v2501 = vpop.f32.mrf.mxu0
          %v2502 = vadd.f32 0.0, %v2501
          %v2503 = vpop.f32.mrf.mxu0
          %2504 = vdwg.mxu0
          %v2505 = vadd.f32 %v2410, %v2492
          %v2506 = vadd.f32 %v2411, %v2497
          %v2507 = vadd.f32 %v2412, %v2502
          %v2508 = vmax.f32 %v2505, 0.0
          %v2509 = vmax.f32 %v2506, 0.0
          %v2510 = vmax.f32 %v2507, 0.0
          %2511 = vst [vmem:[#allocation3 + $0x108] sm:$0xff] %v2508
          %2512 = vst [vmem:[#allocation3 + $0x110] sm:$0xff] %v2509
          %2513 = vst [vmem:[#allocation3 + $0x118] sm:$0xff] %v2510
          %s2514 = smul.u32 %s640, 128
          %s2515 = scalar_lea.vmem [#allocation15], %s2514
          %v2516 = vld [vmem:[%s2515] sm:$0xff]
          %v2517 = vld [vmem:[%s2515 + $0x8] sm:$0xff]
          %v2518 = vld [vmem:[%s2515 + $0x10] sm:$0xff]
          %v2519 = vld [vmem:[%s2515 + $0x18] sm:$0xff]
          %v2520 = vld [vmem:[%s2515 + $0x20] sm:$0xff]
          %v2521 = vld [vmem:[%s2515 + $0x28] sm:$0xff]
          %v2522 = vld [vmem:[%s2515 + $0x30] sm:$0xff]
          %v2523 = vld [vmem:[%s2515 + $0x38] sm:$0xff]
          %v2524 = vld [vmem:[%s2515 + $0x40] sm:$0xff]
          %v2525 = vld [vmem:[%s2515 + $0x48] sm:$0xff]
          %v2526 = vld [vmem:[%s2515 + $0x50] sm:$0xff]
          %v2527 = vld [vmem:[%s2515 + $0x58] sm:$0xff]
          %v2528 = vld [vmem:[%s2515 + $0x60] sm:$0xff]
          %v2529 = vld [vmem:[%s2515 + $0x68] sm:$0xff]
          %v2530 = vld [vmem:[%s2515 + $0x70] sm:$0xff]
          %v2531 = vld [vmem:[%s2515 + $0x78] sm:$0xff]
          %v2532 = vld [vmem:[#allocation3] sm:$0xff]
          %v2533 = vld [vmem:[#allocation3 + $0x8] sm:$0xff]
          %v2534 = vld [vmem:[#allocation3 + $0x10] sm:$0xff]
          %v2535 = vld [vmem:[#allocation3 + $0x18] sm:$0xff]
          %v2536 = vld [vmem:[#allocation3 + $0x20] sm:$0xff]
          %v2537 = vld [vmem:[#allocation3 + $0x28] sm:$0xff]
          %v2538 = vld [vmem:[#allocation3 + $0x30] sm:$0xff]
          %v2539 = vld [vmem:[#allocation3 + $0x38] sm:$0xff]
          %v2540 = vld [vmem:[#allocation3 + $0x40] sm:$0xff]
          %v2541 = vld [vmem:[#allocation3 + $0x48] sm:$0xff]
          %v2542 = vld [vmem:[#allocation3 + $0x50] sm:$0xff]
          %v2543 = vld [vmem:[#allocation3 + $0x58] sm:$0xff]
          %v2544 = vld [vmem:[#allocation3 + $0x60] sm:$0xff]
          %v2545 = vld [vmem:[#allocation3 + $0x68] sm:$0xff]
          %v2546 = vld [vmem:[#allocation3 + $0x70] sm:$0xff]
          %v2547 = vld [vmem:[#allocation3 + $0x78] sm:$0xff]
          %v2548 = vld [vmem:[#allocation3 + $0x80] sm:$0xff]
          %v2549 = vld [vmem:[#allocation3 + $0x88] sm:$0xff]
          %v2550 = vld [vmem:[#allocation3 + $0x90] sm:$0xff]
          %v2551 = vld [vmem:[#allocation3 + $0x98] sm:$0xff]
          %v2552 = vld [vmem:[#allocation3 + $0xa0] sm:$0xff]
          %v2553 = vld [vmem:[#allocation3 + $0xa8] sm:$0xff]
          %v2554 = vld [vmem:[#allocation3 + $0xb0] sm:$0xff]
          %v2555 = vld [vmem:[#allocation3 + $0xb8] sm:$0xff]
          %s2556 = smul.u32 %s640, 9
          %s2557 = smul.u32 %s2556, 128
          %s2558 = scalar_lea.vmem [#allocation12], %s2557
          %v2559 = vld [vmem:[%s2558] sm:$0xff]
          %v2560 = vld [vmem:[%s2558 + $0x8] sm:$0xff]
          %v2561 = vld [vmem:[%s2558 + $0x10] sm:$0xff]
          %v2562 = vld [vmem:[%s2558 + $0x18] sm:$0xff]
          %v2563 = vld [vmem:[%s2558 + $0x20] sm:$0xff]
          %v2564 = vld [vmem:[%s2558 + $0x28] sm:$0xff]
          %v2565 = vld [vmem:[%s2558 + $0x30] sm:$0xff]
          %v2566 = vld [vmem:[%s2558 + $0x38] sm:$0xff]
          %v2567 = vld [vmem:[%s2558 + $0x40] sm:$0xff]
          %v2568 = vld [vmem:[%s2558 + $0x48] sm:$0xff]
          %v2569 = vld [vmem:[%s2558 + $0x50] sm:$0xff]
          %v2570 = vld [vmem:[%s2558 + $0x58] sm:$0xff]
          %v2571 = vld [vmem:[%s2558 + $0x60] sm:$0xff]
          %v2572 = vld [vmem:[%s2558 + $0x68] sm:$0xff]
          %v2573 = vld [vmem:[%s2558 + $0x70] sm:$0xff]
          %v2574 = vld [vmem:[%s2558 + $0x78] sm:$0xff]
          %2575 = vmatprep.subr.mxu0 0.0
          %2576 = vmatpush1.msra.mxu0 %v2574
          %2577 = vmatprep.subr.mxu0 0.0
          %2578 = vmatpush1.msra.mxu0 %v2573
          %2579 = vmatprep.subr.mxu0 0.0
          %2580 = vmatpush1.msra.mxu0 %v2572
          %2581 = vmatprep.subr.mxu0 0.0
          %2582 = vmatpush1.msra.mxu0 %v2571
          %2583 = vmatprep.subr.mxu0 0.0
          %2584 = vmatpush1.msra.mxu0 %v2570
          %2585 = vmatprep.subr.mxu0 0.0
          %2586 = vmatpush1.msra.mxu0 %v2569
          %2587 = vmatprep.subr.mxu0 0.0
          %2588 = vmatpush1.msra.mxu0 %v2568
          %2589 = vmatprep.subr.mxu0 0.0
          %2590 = vmatpush1.msra.mxu0 %v2567
          %2591 = vmatprep.subr.mxu0 0.0
          %2592 = vmatpush1.msra.mxu0 %v2566
          %2593 = vmatprep.subr.mxu0 0.0
          %2594 = vmatpush1.msra.mxu0 %v2565
          %2595 = vmatprep.subr.mxu0 0.0
          %2596 = vmatpush1.msra.mxu0 %v2564
          %2597 = vmatprep.subr.mxu0 0.0
          %2598 = vmatpush1.msra.mxu0 %v2563
          %2599 = vmatprep.subr.mxu0 0.0
          %2600 = vmatpush1.msra.mxu0 %v2562
          %2601 = vmatprep.subr.mxu0 0.0
          %2602 = vmatpush1.msra.mxu0 %v2561
          %2603 = vmatprep.subr.mxu0 0.0
          %2604 = vmatpush1.msra.mxu0 %v2560
          %2605 = vmatprep.subr.mxu0 0.0
          %2606 = vmatpush1.msra.mxu0 %v2559
          %2607 = vmatprep.subr.mxu0 0.0
          %2608 = vmatpush2.msra.mxu0 0.0
          %2609 = vmatprep.subr.mxu0 0.0
          %2610 = vmatpush2.msra.mxu0 0.0
          %2611 = vmatprep.subr.mxu0 0.0
          %2612 = vmatpush2.msra.mxu0 0.0
          %2613 = vmatprep.subr.mxu0 0.0
          %2614 = vmatpush2.msra.mxu0 0.0
          %2615 = vmatprep.subr.mxu0 0.0
          %2616 = vmatpush2.msra.mxu0 0.0
          %2617 = vmatprep.subr.mxu0 0.0
          %2618 = vmatpush2.msra.mxu0 0.0
          %2619 = vmatprep.subr.mxu0 0.0
          %2620 = vmatpush2.msra.mxu0 0.0
          %2621 = vmatprep.subr.mxu0 0.0
          %2622 = vmatpush2.msra.mxu0 0.0
          %2623 = vmatprep.subr.mxu0 0.0
          %2624 = vmatpush2.msra.mxu0 0.0
          %2625 = vmatprep.subr.mxu0 0.0
          %2626 = vmatpush2.msra.mxu0 0.0
          %2627 = vmatprep.subr.mxu0 0.0
          %2628 = vmatpush2.msra.mxu0 0.0
          %2629 = vmatprep.subr.mxu0 0.0
          %2630 = vmatpush2.msra.mxu0 0.0
          %2631 = vmatprep.subr.mxu0 0.0
          %2632 = vmatpush2.msra.mxu0 0.0
          %2633 = vmatprep.subr.mxu0 0.0
          %2634 = vmatpush2.msra.mxu0 0.0
          %2635 = vmatprep.subr.mxu0 0.0
          %2636 = vmatpush2.msra.mxu0 0.0
          %2637 = vmatprep.subr.mxu0 0.0
          %2638 = vmatpush2.msra.mxu0 0.0
          %2639 = vmatprep.mubr.f32.mxu0 0.0
          %2640 = vmatmul.mubr.f32.gmra.mxu0 %v2532
          %v2641 = vpop.f32.mrf.mxu0
          %v2642 = vadd.f32 0.0, %v2641
          %v2643 = vpop.f32.mrf.mxu0
          %2644 = vmatprep.mubr.f32.mxu0 0.0
          %2645 = vmatmul.mubr.f32.gmra.mxu0 %v2533
          %v2646 = vpop.f32.mrf.mxu0
          %v2647 = vadd.f32 0.0, %v2646
          %v2648 = vpop.f32.mrf.mxu0
          %2649 = vmatprep.mubr.f32.mxu0 0.0
          %2650 = vmatmul.mubr.f32.gmra.mxu0 %v2534
          %v2651 = vpop.f32.mrf.mxu0
          %v2652 = vadd.f32 0.0, %v2651
          %v2653 = vpop.f32.mrf.mxu0
          %2654 = vmatprep.mubr.f32.mxu0 0.0
          %2655 = vmatmul.mubr.f32.gmra.mxu0 %v2535
          %v2656 = vpop.f32.mrf.mxu0
          %v2657 = vadd.f32 0.0, %v2656
          %v2658 = vpop.f32.mrf.mxu0
          %2659 = vmatprep.mubr.f32.mxu0 0.0
          %2660 = vmatmul.mubr.f32.gmra.mxu0 %v2536
          %v2661 = vpop.f32.mrf.mxu0
          %v2662 = vadd.f32 0.0, %v2661
          %v2663 = vpop.f32.mrf.mxu0
          %2664 = vmatprep.mubr.f32.mxu0 0.0
          %2665 = vmatmul.mubr.f32.gmra.mxu0 %v2537
          %v2666 = vpop.f32.mrf.mxu0
          %v2667 = vadd.f32 0.0, %v2666
          %v2668 = vpop.f32.mrf.mxu0
          %2669 = vmatprep.mubr.f32.mxu0 0.0
          %2670 = vmatmul.mubr.f32.gmra.mxu0 %v2538
          %v2671 = vpop.f32.mrf.mxu0
          %v2672 = vadd.f32 0.0, %v2671
          %v2673 = vpop.f32.mrf.mxu0
          %2674 = vmatprep.mubr.f32.mxu0 0.0
          %2675 = vmatmul.mubr.f32.gmra.mxu0 %v2539
          %v2676 = vpop.f32.mrf.mxu0
          %v2677 = vadd.f32 0.0, %v2676
          %v2678 = vpop.f32.mrf.mxu0
          %2679 = vmatprep.mubr.f32.mxu0 0.0
          %2680 = vmatmul.mubr.f32.gmra.mxu0 %v2540
          %v2681 = vpop.f32.mrf.mxu0
          %v2682 = vadd.f32 0.0, %v2681
          %v2683 = vpop.f32.mrf.mxu0
          %2684 = vmatprep.mubr.f32.mxu0 0.0
          %2685 = vmatmul.mubr.f32.gmra.mxu0 %v2541
          %v2686 = vpop.f32.mrf.mxu0
          %v2687 = vadd.f32 0.0, %v2686
          %v2688 = vpop.f32.mrf.mxu0
          %2689 = vmatprep.mubr.f32.mxu0 0.0
          %2690 = vmatmul.mubr.f32.gmra.mxu0 %v2542
          %v2691 = vpop.f32.mrf.mxu0
          %v2692 = vadd.f32 0.0, %v2691
          %v2693 = vpop.f32.mrf.mxu0
          %2694 = vmatprep.mubr.f32.mxu0 0.0
          %2695 = vmatmul.mubr.f32.gmra.mxu0 %v2543
          %v2696 = vpop.f32.mrf.mxu0
          %v2697 = vadd.f32 0.0, %v2696
          %v2698 = vpop.f32.mrf.mxu0
          %2699 = vmatprep.mubr.f32.mxu0 0.0
          %2700 = vmatmul.mubr.f32.gmra.mxu0 %v2544
          %v2701 = vpop.f32.mrf.mxu0
          %v2702 = vadd.f32 0.0, %v2701
          %v2703 = vpop.f32.mrf.mxu0
          %2704 = vmatprep.mubr.f32.mxu0 0.0
          %2705 = vmatmul.mubr.f32.gmra.mxu0 %v2545
          %v2706 = vpop.f32.mrf.mxu0
          %v2707 = vadd.f32 0.0, %v2706
          %v2708 = vpop.f32.mrf.mxu0
          %2709 = vmatprep.mubr.f32.mxu0 0.0
          %2710 = vmatmul.mubr.f32.gmra.mxu0 %v2546
          %v2711 = vpop.f32.mrf.mxu0
          %v2712 = vadd.f32 0.0, %v2711
          %v2713 = vpop.f32.mrf.mxu0
          %2714 = vmatprep.mubr.f32.mxu0 0.0
          %2715 = vmatmul.mubr.f32.gmra.mxu0 %v2547
          %v2716 = vpop.f32.mrf.mxu0
          %v2717 = vadd.f32 0.0, %v2716
          %v2718 = vpop.f32.mrf.mxu0
          %2719 = vmatprep.mubr.f32.mxu0 0.0
          %2720 = vmatmul.mubr.f32.gmra.mxu0 %v2548
          %v2721 = vpop.f32.mrf.mxu0
          %v2722 = vadd.f32 0.0, %v2721
          %v2723 = vpop.f32.mrf.mxu0
          %2724 = vmatprep.mubr.f32.mxu0 0.0
          %2725 = vmatmul.mubr.f32.gmra.mxu0 %v2549
          %v2726 = vpop.f32.mrf.mxu0
          %v2727 = vadd.f32 0.0, %v2726
          %v2728 = vpop.f32.mrf.mxu0
          %2729 = vmatprep.mubr.f32.mxu0 0.0
          %2730 = vmatmul.mubr.f32.gmra.mxu0 %v2550
          %v2731 = vpop.f32.mrf.mxu0
          %v2732 = vadd.f32 0.0, %v2731
          %v2733 = vpop.f32.mrf.mxu0
          %2734 = vmatprep.mubr.f32.mxu0 0.0
          %2735 = vmatmul.mubr.f32.gmra.mxu0 %v2551
          %v2736 = vpop.f32.mrf.mxu0
          %v2737 = vadd.f32 0.0, %v2736
          %v2738 = vpop.f32.mrf.mxu0
          %2739 = vmatprep.mubr.f32.mxu0 0.0
          %2740 = vmatmul.mubr.f32.gmra.mxu0 %v2552
          %v2741 = vpop.f32.mrf.mxu0
          %v2742 = vadd.f32 0.0, %v2741
          %v2743 = vpop.f32.mrf.mxu0
          %2744 = vmatprep.mubr.f32.mxu0 0.0
          %2745 = vmatmul.mubr.f32.gmra.mxu0 %v2553
          %v2746 = vpop.f32.mrf.mxu0
          %v2747 = vadd.f32 0.0, %v2746
          %v2748 = vpop.f32.mrf.mxu0
          %2749 = vmatprep.mubr.f32.mxu0 0.0
          %2750 = vmatmul.mubr.f32.gmra.mxu0 %v2554
          %v2751 = vpop.f32.mrf.mxu0
          %v2752 = vadd.f32 0.0, %v2751
          %v2753 = vpop.f32.mrf.mxu0
          %2754 = vmatprep.mubr.f32.mxu0 0.0
          %2755 = vmatmul.mubr.f32.gmra.mxu0 %v2555
          %v2756 = vpop.f32.mrf.mxu0
          %v2757 = vadd.f32 0.0, %v2756
          %v2758 = vpop.f32.mrf.mxu0
          %2759 = vdwg.mxu0
          %2760 = vmatprep.subr.mxu0 0.0
          %2761 = vmatpush1.msra.mxu0 %v2531
          %2762 = vmatprep.subr.mxu0 0.0
          %2763 = vmatpush1.msra.mxu0 %v2530
          %2764 = vmatprep.subr.mxu0 0.0
          %2765 = vmatpush1.msra.mxu0 %v2529
          %2766 = vmatprep.subr.mxu0 0.0
          %2767 = vmatpush1.msra.mxu0 %v2528
          %2768 = vmatprep.subr.mxu0 0.0
          %2769 = vmatpush1.msra.mxu0 %v2527
          %2770 = vmatprep.subr.mxu0 0.0
          %2771 = vmatpush1.msra.mxu0 %v2526
          %2772 = vmatprep.subr.mxu0 0.0
          %2773 = vmatpush1.msra.mxu0 %v2525
          %2774 = vmatprep.subr.mxu0 0.0
          %2775 = vmatpush1.msra.mxu0 %v2524
          %2776 = vmatprep.subr.mxu0 0.0
          %2777 = vmatpush1.msra.mxu0 %v2523
          %2778 = vmatprep.subr.mxu0 0.0
          %2779 = vmatpush1.msra.mxu0 %v2522
          %2780 = vmatprep.subr.mxu0 0.0
          %2781 = vmatpush1.msra.mxu0 %v2521
          %2782 = vmatprep.subr.mxu0 0.0
          %2783 = vmatpush1.msra.mxu0 %v2520
          %2784 = vmatprep.subr.mxu0 0.0
          %2785 = vmatpush1.msra.mxu0 %v2519
          %2786 = vmatprep.subr.mxu0 0.0
          %2787 = vmatpush1.msra.mxu0 %v2518
          %2788 = vmatprep.subr.mxu0 0.0
          %2789 = vmatpush1.msra.mxu0 %v2517
          %2790 = vmatprep.subr.mxu0 0.0
          %2791 = vmatpush1.msra.mxu0 %v2516
          %2792 = vmatprep.subr.mxu0 0.0
          %2793 = vmatpush2.msra.mxu0 0.0
          %2794 = vmatprep.subr.mxu0 0.0
          %2795 = vmatpush2.msra.mxu0 0.0
          %2796 = vmatprep.subr.mxu0 0.0
          %2797 = vmatpush2.msra.mxu0 0.0
          %2798 = vmatprep.subr.mxu0 0.0
          %2799 = vmatpush2.msra.mxu0 0.0
          %2800 = vmatprep.subr.mxu0 0.0
          %2801 = vmatpush2.msra.mxu0 0.0
          %2802 = vmatprep.subr.mxu0 0.0
          %2803 = vmatpush2.msra.mxu0 0.0
          %2804 = vmatprep.subr.mxu0 0.0
          %2805 = vmatpush2.msra.mxu0 0.0
          %2806 = vmatprep.subr.mxu0 0.0
          %2807 = vmatpush2.msra.mxu0 0.0
          %2808 = vmatprep.subr.mxu0 0.0
          %2809 = vmatpush2.msra.mxu0 0.0
          %2810 = vmatprep.subr.mxu0 0.0
          %2811 = vmatpush2.msra.mxu0 0.0
          %2812 = vmatprep.subr.mxu0 0.0
          %2813 = vmatpush2.msra.mxu0 0.0
          %2814 = vmatprep.subr.mxu0 0.0
          %2815 = vmatpush2.msra.mxu0 0.0
          %2816 = vmatprep.subr.mxu0 0.0
          %2817 = vmatpush2.msra.mxu0 0.0
          %2818 = vmatprep.subr.mxu0 0.0
          %2819 = vmatpush2.msra.mxu0 0.0
          %2820 = vmatprep.subr.mxu0 0.0
          %2821 = vmatpush2.msra.mxu0 0.0
          %2822 = vmatprep.subr.mxu0 0.0
          %2823 = vmatpush2.msra.mxu0 0.0
          %2824 = vmatprep.mubr.f32.mxu0 0.0
          %2825 = vmatmul.mubr.f32.gmra.mxu0 %v645
          %v2826 = vpop.f32.mrf.mxu0
          %v2827 = vadd.f32 %v2642, %v2826
          %v2828 = vpop.f32.mrf.mxu0
          %2829 = vmatprep.mubr.f32.mxu0 0.0
          %2830 = vmatmul.mubr.f32.gmra.mxu0 %v646
          %v2831 = vpop.f32.mrf.mxu0
          %v2832 = vadd.f32 %v2647, %v2831
          %v2833 = vpop.f32.mrf.mxu0
          %2834 = vmatprep.mubr.f32.mxu0 0.0
          %2835 = vmatmul.mubr.f32.gmra.mxu0 %v647
          %v2836 = vpop.f32.mrf.mxu0
          %v2837 = vadd.f32 %v2652, %v2836
          %v2838 = vpop.f32.mrf.mxu0
          %2839 = vmatprep.mubr.f32.mxu0 0.0
          %2840 = vmatmul.mubr.f32.gmra.mxu0 %v648
          %v2841 = vpop.f32.mrf.mxu0
          %v2842 = vadd.f32 %v2657, %v2841
          %v2843 = vpop.f32.mrf.mxu0
          %2844 = vmatprep.mubr.f32.mxu0 0.0
          %2845 = vmatmul.mubr.f32.gmra.mxu0 %v649
          %v2846 = vpop.f32.mrf.mxu0
          %v2847 = vadd.f32 %v2662, %v2846
          %v2848 = vpop.f32.mrf.mxu0
          %2849 = vmatprep.mubr.f32.mxu0 0.0
          %2850 = vmatmul.mubr.f32.gmra.mxu0 %v650
          %v2851 = vpop.f32.mrf.mxu0
          %v2852 = vadd.f32 %v2667, %v2851
          %v2853 = vpop.f32.mrf.mxu0
          %2854 = vmatprep.mubr.f32.mxu0 0.0
          %2855 = vmatmul.mubr.f32.gmra.mxu0 %v651
          %v2856 = vpop.f32.mrf.mxu0
          %v2857 = vadd.f32 %v2672, %v2856
          %v2858 = vpop.f32.mrf.mxu0
          %2859 = vmatprep.mubr.f32.mxu0 0.0
          %2860 = vmatmul.mubr.f32.gmra.mxu0 %v652
          %v2861 = vpop.f32.mrf.mxu0
          %v2862 = vadd.f32 %v2677, %v2861
          %v2863 = vpop.f32.mrf.mxu0
          %2864 = vmatprep.mubr.f32.mxu0 0.0
          %2865 = vmatmul.mubr.f32.gmra.mxu0 %v653
          %v2866 = vpop.f32.mrf.mxu0
          %v2867 = vadd.f32 %v2682, %v2866
          %v2868 = vpop.f32.mrf.mxu0
          %2869 = vmatprep.mubr.f32.mxu0 0.0
          %2870 = vmatmul.mubr.f32.gmra.mxu0 %v654
          %v2871 = vpop.f32.mrf.mxu0
          %v2872 = vadd.f32 %v2687, %v2871
          %v2873 = vpop.f32.mrf.mxu0
          %2874 = vmatprep.mubr.f32.mxu0 0.0
          %2875 = vmatmul.mubr.f32.gmra.mxu0 %v655
          %v2876 = vpop.f32.mrf.mxu0
          %v2877 = vadd.f32 %v2692, %v2876
          %v2878 = vpop.f32.mrf.mxu0
          %2879 = vmatprep.mubr.f32.mxu0 0.0
          %2880 = vmatmul.mubr.f32.gmra.mxu0 %v656
          %v2881 = vpop.f32.mrf.mxu0
          %v2882 = vadd.f32 %v2697, %v2881
          %v2883 = vpop.f32.mrf.mxu0
          %2884 = vmatprep.mubr.f32.mxu0 0.0
          %2885 = vmatmul.mubr.f32.gmra.mxu0 %v657
          %v2886 = vpop.f32.mrf.mxu0
          %v2887 = vadd.f32 %v2702, %v2886
          %v2888 = vpop.f32.mrf.mxu0
          %2889 = vmatprep.mubr.f32.mxu0 0.0
          %2890 = vmatmul.mubr.f32.gmra.mxu0 %v658
          %v2891 = vpop.f32.mrf.mxu0
          %v2892 = vadd.f32 %v2707, %v2891
          %v2893 = vpop.f32.mrf.mxu0
          %2894 = vmatprep.mubr.f32.mxu0 0.0
          %2895 = vmatmul.mubr.f32.gmra.mxu0 %v659
          %v2896 = vpop.f32.mrf.mxu0
          %v2897 = vadd.f32 %v2712, %v2896
          %v2898 = vpop.f32.mrf.mxu0
          %2899 = vmatprep.mubr.f32.mxu0 0.0
          %2900 = vmatmul.mubr.f32.gmra.mxu0 %v660
          %v2901 = vpop.f32.mrf.mxu0
          %v2902 = vadd.f32 %v2717, %v2901
          %v2903 = vpop.f32.mrf.mxu0
          %2904 = vmatprep.mubr.f32.mxu0 0.0
          %2905 = vmatmul.mubr.f32.gmra.mxu0 %v661
          %v2906 = vpop.f32.mrf.mxu0
          %v2907 = vadd.f32 %v2722, %v2906
          %v2908 = vpop.f32.mrf.mxu0
          %2909 = vmatprep.mubr.f32.mxu0 0.0
          %2910 = vmatmul.mubr.f32.gmra.mxu0 %v662
          %v2911 = vpop.f32.mrf.mxu0
          %v2912 = vadd.f32 %v2727, %v2911
          %v2913 = vpop.f32.mrf.mxu0
          %2914 = vmatprep.mubr.f32.mxu0 0.0
          %2915 = vmatmul.mubr.f32.gmra.mxu0 %v663
          %v2916 = vpop.f32.mrf.mxu0
          %v2917 = vadd.f32 %v2732, %v2916
          %v2918 = vpop.f32.mrf.mxu0
          %2919 = vmatprep.mubr.f32.mxu0 0.0
          %2920 = vmatmul.mubr.f32.gmra.mxu0 %v664
          %v2921 = vpop.f32.mrf.mxu0
          %v2922 = vadd.f32 %v2737, %v2921
          %v2923 = vpop.f32.mrf.mxu0
          %2924 = vmatprep.mubr.f32.mxu0 0.0
          %2925 = vmatmul.mubr.f32.gmra.mxu0 %v665
          %v2926 = vpop.f32.mrf.mxu0
          %v2927 = vadd.f32 %v2742, %v2926
          %v2928 = vpop.f32.mrf.mxu0
          %2929 = vmatprep.mubr.f32.mxu0 0.0
          %2930 = vmatmul.mubr.f32.gmra.mxu0 %v666
          %v2931 = vpop.f32.mrf.mxu0
          %v2932 = vadd.f32 %v2747, %v2931
          %v2933 = vpop.f32.mrf.mxu0
          %2934 = vmatprep.mubr.f32.mxu0 0.0
          %2935 = vmatmul.mubr.f32.gmra.mxu0 %v667
          %v2936 = vpop.f32.mrf.mxu0
          %v2937 = vadd.f32 %v2752, %v2936
          %v2938 = vpop.f32.mrf.mxu0
          %2939 = vmatprep.mubr.f32.mxu0 0.0
          %2940 = vmatmul.mubr.f32.gmra.mxu0 %v668
          %v2941 = vpop.f32.mrf.mxu0
          %v2942 = vadd.f32 %v2757, %v2941
          %v2943 = vpop.f32.mrf.mxu0
          %2944 = vdwg.mxu0
          %v2945 = vld [vmem:[#allocation3 + $0x18] sm:$0xff]
          %v2946 = vld [vmem:[#allocation3 + $0x20] sm:$0xff]
          %v2947 = vld [vmem:[#allocation3 + $0x28] sm:$0xff]
          %v2948 = vld [vmem:[#allocation3 + $0x30] sm:$0xff]
          %v2949 = vld [vmem:[#allocation3 + $0x38] sm:$0xff]
          %v2950 = vld [vmem:[#allocation3 + $0x40] sm:$0xff]
          %v2951 = vld [vmem:[#allocation3 + $0x48] sm:$0xff]
          %v2952 = vld [vmem:[#allocation3 + $0x50] sm:$0xff]
          %v2953 = vld [vmem:[#allocation3 + $0x58] sm:$0xff]
          %v2954 = vld [vmem:[#allocation3 + $0x60] sm:$0xff]
          %v2955 = vld [vmem:[#allocation3 + $0x68] sm:$0xff]
          %v2956 = vld [vmem:[#allocation3 + $0x70] sm:$0xff]
          %v2957 = vld [vmem:[#allocation3 + $0x78] sm:$0xff]
          %v2958 = vld [vmem:[#allocation3 + $0x80] sm:$0xff]
          %v2959 = vld [vmem:[#allocation3 + $0x88] sm:$0xff]
          %v2960 = vld [vmem:[#allocation3 + $0x90] sm:$0xff]
          %v2961 = vld [vmem:[#allocation3 + $0x98] sm:$0xff]
          %v2962 = vld [vmem:[#allocation3 + $0xa0] sm:$0xff]
          %v2963 = vld [vmem:[#allocation3 + $0xa8] sm:$0xff]
          %v2964 = vld [vmem:[#allocation3 + $0xb0] sm:$0xff]
          %v2965 = vld [vmem:[#allocation3 + $0xb8] sm:$0xff]
          %v2966 = vld [vmem:[#allocation3 + $0xc0] sm:$0xff]
          %v2967 = vld [vmem:[#allocation3 + $0xc8] sm:$0xff]
          %v2968 = vld [vmem:[#allocation3 + $0xd0] sm:$0xff]
          %s2969 = sadd.s32 %s2556, 1
          %s2970 = smul.u32 %s2969, 128
          %s2971 = scalar_lea.vmem [#allocation12], %s2970
          %v2972 = vld [vmem:[%s2971] sm:$0xff]
          %v2973 = vld [vmem:[%s2971 + $0x8] sm:$0xff]
          %v2974 = vld [vmem:[%s2971 + $0x10] sm:$0xff]
          %v2975 = vld [vmem:[%s2971 + $0x18] sm:$0xff]
          %v2976 = vld [vmem:[%s2971 + $0x20] sm:$0xff]
          %v2977 = vld [vmem:[%s2971 + $0x28] sm:$0xff]
          %v2978 = vld [vmem:[%s2971 + $0x30] sm:$0xff]
          %v2979 = vld [vmem:[%s2971 + $0x38] sm:$0xff]
          %v2980 = vld [vmem:[%s2971 + $0x40] sm:$0xff]
          %v2981 = vld [vmem:[%s2971 + $0x48] sm:$0xff]
          %v2982 = vld [vmem:[%s2971 + $0x50] sm:$0xff]
          %v2983 = vld [vmem:[%s2971 + $0x58] sm:$0xff]
          %v2984 = vld [vmem:[%s2971 + $0x60] sm:$0xff]
          %v2985 = vld [vmem:[%s2971 + $0x68] sm:$0xff]
          %v2986 = vld [vmem:[%s2971 + $0x70] sm:$0xff]
          %v2987 = vld [vmem:[%s2971 + $0x78] sm:$0xff]
          %2988 = vmatprep.subr.mxu0 0.0
          %2989 = vmatpush1.msra.mxu0 %v2987
          %2990 = vmatprep.subr.mxu0 0.0
          %2991 = vmatpush1.msra.mxu0 %v2986
          %2992 = vmatprep.subr.mxu0 0.0
          %2993 = vmatpush1.msra.mxu0 %v2985
          %2994 = vmatprep.subr.mxu0 0.0
          %2995 = vmatpush1.msra.mxu0 %v2984
          %2996 = vmatprep.subr.mxu0 0.0
          %2997 = vmatpush1.msra.mxu0 %v2983
          %2998 = vmatprep.subr.mxu0 0.0
          %2999 = vmatpush1.msra.mxu0 %v2982
          %3000 = vmatprep.subr.mxu0 0.0
          %3001 = vmatpush1.msra.mxu0 %v2981
          %3002 = vmatprep.subr.mxu0 0.0
          %3003 = vmatpush1.msra.mxu0 %v2980
          %3004 = vmatprep.subr.mxu0 0.0
          %3005 = vmatpush1.msra.mxu0 %v2979
          %3006 = vmatprep.subr.mxu0 0.0
          %3007 = vmatpush1.msra.mxu0 %v2978
          %3008 = vmatprep.subr.mxu0 0.0
          %3009 = vmatpush1.msra.mxu0 %v2977
          %3010 = vmatprep.subr.mxu0 0.0
          %3011 = vmatpush1.msra.mxu0 %v2976
          %3012 = vmatprep.subr.mxu0 0.0
          %3013 = vmatpush1.msra.mxu0 %v2975
          %3014 = vmatprep.subr.mxu0 0.0
          %3015 = vmatpush1.msra.mxu0 %v2974
          %3016 = vmatprep.subr.mxu0 0.0
          %3017 = vmatpush1.msra.mxu0 %v2973
          %3018 = vmatprep.subr.mxu0 0.0
          %3019 = vmatpush1.msra.mxu0 %v2972
          %3020 = vmatprep.subr.mxu0 0.0
          %3021 = vmatpush2.msra.mxu0 0.0
          %3022 = vmatprep.subr.mxu0 0.0
          %3023 = vmatpush2.msra.mxu0 0.0
          %3024 = vmatprep.subr.mxu0 0.0
          %3025 = vmatpush2.msra.mxu0 0.0
          %3026 = vmatprep.subr.mxu0 0.0
          %3027 = vmatpush2.msra.mxu0 0.0
          %3028 = vmatprep.subr.mxu0 0.0
          %3029 = vmatpush2.msra.mxu0 0.0
          %3030 = vmatprep.subr.mxu0 0.0
          %3031 = vmatpush2.msra.mxu0 0.0
          %3032 = vmatprep.subr.mxu0 0.0
          %3033 = vmatpush2.msra.mxu0 0.0
          %3034 = vmatprep.subr.mxu0 0.0
          %3035 = vmatpush2.msra.mxu0 0.0
          %3036 = vmatprep.subr.mxu0 0.0
          %3037 = vmatpush2.msra.mxu0 0.0
          %3038 = vmatprep.subr.mxu0 0.0
          %3039 = vmatpush2.msra.mxu0 0.0
          %3040 = vmatprep.subr.mxu0 0.0
          %3041 = vmatpush2.msra.mxu0 0.0
          %3042 = vmatprep.subr.mxu0 0.0
          %3043 = vmatpush2.msra.mxu0 0.0
          %3044 = vmatprep.subr.mxu0 0.0
          %3045 = vmatpush2.msra.mxu0 0.0
          %3046 = vmatprep.subr.mxu0 0.0
          %3047 = vmatpush2.msra.mxu0 0.0
          %3048 = vmatprep.subr.mxu0 0.0
          %3049 = vmatpush2.msra.mxu0 0.0
          %3050 = vmatprep.subr.mxu0 0.0
          %3051 = vmatpush2.msra.mxu0 0.0
          %3052 = vmatprep.mubr.f32.mxu0 0.0
          %3053 = vmatmul.mubr.f32.gmra.mxu0 %v2945
          %v3054 = vpop.f32.mrf.mxu0
          %v3055 = vadd.f32 0.0, %v3054
          %v3056 = vpop.f32.mrf.mxu0
          %3057 = vmatprep.mubr.f32.mxu0 0.0
          %3058 = vmatmul.mubr.f32.gmra.mxu0 %v2946
          %v3059 = vpop.f32.mrf.mxu0
          %v3060 = vadd.f32 0.0, %v3059
          %v3061 = vpop.f32.mrf.mxu0
          %3062 = vmatprep.mubr.f32.mxu0 0.0
          %3063 = vmatmul.mubr.f32.gmra.mxu0 %v2947
          %v3064 = vpop.f32.mrf.mxu0
          %v3065 = vadd.f32 0.0, %v3064
          %v3066 = vpop.f32.mrf.mxu0
          %3067 = vmatprep.mubr.f32.mxu0 0.0
          %3068 = vmatmul.mubr.f32.gmra.mxu0 %v2948
          %v3069 = vpop.f32.mrf.mxu0
          %v3070 = vadd.f32 0.0, %v3069
          %v3071 = vpop.f32.mrf.mxu0
          %3072 = vmatprep.mubr.f32.mxu0 0.0
          %3073 = vmatmul.mubr.f32.gmra.mxu0 %v2949
          %v3074 = vpop.f32.mrf.mxu0
          %v3075 = vadd.f32 0.0, %v3074
          %v3076 = vpop.f32.mrf.mxu0
          %3077 = vmatprep.mubr.f32.mxu0 0.0
          %3078 = vmatmul.mubr.f32.gmra.mxu0 %v2950
          %v3079 = vpop.f32.mrf.mxu0
          %v3080 = vadd.f32 0.0, %v3079
          %v3081 = vpop.f32.mrf.mxu0
          %3082 = vmatprep.mubr.f32.mxu0 0.0
          %3083 = vmatmul.mubr.f32.gmra.mxu0 %v2951
          %v3084 = vpop.f32.mrf.mxu0
          %v3085 = vadd.f32 0.0, %v3084
          %v3086 = vpop.f32.mrf.mxu0
          %3087 = vmatprep.mubr.f32.mxu0 0.0
          %3088 = vmatmul.mubr.f32.gmra.mxu0 %v2952
          %v3089 = vpop.f32.mrf.mxu0
          %v3090 = vadd.f32 0.0, %v3089
          %v3091 = vpop.f32.mrf.mxu0
          %3092 = vmatprep.mubr.f32.mxu0 0.0
          %3093 = vmatmul.mubr.f32.gmra.mxu0 %v2953
          %v3094 = vpop.f32.mrf.mxu0
          %v3095 = vadd.f32 0.0, %v3094
          %v3096 = vpop.f32.mrf.mxu0
          %3097 = vmatprep.mubr.f32.mxu0 0.0
          %3098 = vmatmul.mubr.f32.gmra.mxu0 %v2954
          %v3099 = vpop.f32.mrf.mxu0
          %v3100 = vadd.f32 0.0, %v3099
          %v3101 = vpop.f32.mrf.mxu0
          %3102 = vmatprep.mubr.f32.mxu0 0.0
          %3103 = vmatmul.mubr.f32.gmra.mxu0 %v2955
          %v3104 = vpop.f32.mrf.mxu0
          %v3105 = vadd.f32 0.0, %v3104
          %v3106 = vpop.f32.mrf.mxu0
          %3107 = vmatprep.mubr.f32.mxu0 0.0
          %3108 = vmatmul.mubr.f32.gmra.mxu0 %v2956
          %v3109 = vpop.f32.mrf.mxu0
          %v3110 = vadd.f32 0.0, %v3109
          %v3111 = vpop.f32.mrf.mxu0
          %3112 = vmatprep.mubr.f32.mxu0 0.0
          %3113 = vmatmul.mubr.f32.gmra.mxu0 %v2957
          %v3114 = vpop.f32.mrf.mxu0
          %v3115 = vadd.f32 0.0, %v3114
          %v3116 = vpop.f32.mrf.mxu0
          %3117 = vmatprep.mubr.f32.mxu0 0.0
          %3118 = vmatmul.mubr.f32.gmra.mxu0 %v2958
          %v3119 = vpop.f32.mrf.mxu0
          %v3120 = vadd.f32 0.0, %v3119
          %v3121 = vpop.f32.mrf.mxu0
          %3122 = vmatprep.mubr.f32.mxu0 0.0
          %3123 = vmatmul.mubr.f32.gmra.mxu0 %v2959
          %v3124 = vpop.f32.mrf.mxu0
          %v3125 = vadd.f32 0.0, %v3124
          %v3126 = vpop.f32.mrf.mxu0
          %3127 = vmatprep.mubr.f32.mxu0 0.0
          %3128 = vmatmul.mubr.f32.gmra.mxu0 %v2960
          %v3129 = vpop.f32.mrf.mxu0
          %v3130 = vadd.f32 0.0, %v3129
          %v3131 = vpop.f32.mrf.mxu0
          %3132 = vmatprep.mubr.f32.mxu0 0.0
          %3133 = vmatmul.mubr.f32.gmra.mxu0 %v2961
          %v3134 = vpop.f32.mrf.mxu0
          %v3135 = vadd.f32 0.0, %v3134
          %v3136 = vpop.f32.mrf.mxu0
          %3137 = vmatprep.mubr.f32.mxu0 0.0
          %3138 = vmatmul.mubr.f32.gmra.mxu0 %v2962
          %v3139 = vpop.f32.mrf.mxu0
          %v3140 = vadd.f32 0.0, %v3139
          %v3141 = vpop.f32.mrf.mxu0
          %3142 = vmatprep.mubr.f32.mxu0 0.0
          %3143 = vmatmul.mubr.f32.gmra.mxu0 %v2963
          %v3144 = vpop.f32.mrf.mxu0
          %v3145 = vadd.f32 0.0, %v3144
          %v3146 = vpop.f32.mrf.mxu0
          %3147 = vmatprep.mubr.f32.mxu0 0.0
          %3148 = vmatmul.mubr.f32.gmra.mxu0 %v2964
          %v3149 = vpop.f32.mrf.mxu0
          %v3150 = vadd.f32 0.0, %v3149
          %v3151 = vpop.f32.mrf.mxu0
          %3152 = vmatprep.mubr.f32.mxu0 0.0
          %3153 = vmatmul.mubr.f32.gmra.mxu0 %v2965
          %v3154 = vpop.f32.mrf.mxu0
          %v3155 = vadd.f32 0.0, %v3154
          %v3156 = vpop.f32.mrf.mxu0
          %3157 = vmatprep.mubr.f32.mxu0 0.0
          %3158 = vmatmul.mubr.f32.gmra.mxu0 %v2966
          %v3159 = vpop.f32.mrf.mxu0
          %v3160 = vadd.f32 0.0, %v3159
          %v3161 = vpop.f32.mrf.mxu0
          %3162 = vmatprep.mubr.f32.mxu0 0.0
          %3163 = vmatmul.mubr.f32.gmra.mxu0 %v2967
          %v3164 = vpop.f32.mrf.mxu0
          %v3165 = vadd.f32 0.0, %v3164
          %v3166 = vpop.f32.mrf.mxu0
          %3167 = vmatprep.mubr.f32.mxu0 0.0
          %3168 = vmatmul.mubr.f32.gmra.mxu0 %v2968
          %v3169 = vpop.f32.mrf.mxu0
          %v3170 = vadd.f32 0.0, %v3169
          %v3171 = vpop.f32.mrf.mxu0
          %3172 = vdwg.mxu0
          %v3173 = vadd.f32 %v2827, %v3055
          %v3174 = vadd.f32 %v2832, %v3060
          %v3175 = vadd.f32 %v2837, %v3065
          %v3176 = vadd.f32 %v2842, %v3070
          %v3177 = vadd.f32 %v2847, %v3075
          %v3178 = vadd.f32 %v2852, %v3080
          %v3179 = vadd.f32 %v2857, %v3085
          %v3180 = vadd.f32 %v2862, %v3090
          %v3181 = vadd.f32 %v2867, %v3095
          %v3182 = vadd.f32 %v2872, %v3100
          %v3183 = vadd.f32 %v2877, %v3105
          %v3184 = vadd.f32 %v2882, %v3110
          %v3185 = vadd.f32 %v2887, %v3115
          %v3186 = vadd.f32 %v2892, %v3120
          %v3187 = vadd.f32 %v2897, %v3125
          %v3188 = vadd.f32 %v2902, %v3130
          %v3189 = vadd.f32 %v2907, %v3135
          %v3190 = vadd.f32 %v2912, %v3140
          %v3191 = vadd.f32 %v2917, %v3145
          %v3192 = vadd.f32 %v2922, %v3150
          %v3193 = vadd.f32 %v2927, %v3155
          %v3194 = vadd.f32 %v2932, %v3160
          %v3195 = vadd.f32 %v2937, %v3165
          %v3196 = vadd.f32 %v2942, %v3170
          %v3197 = vld [vmem:[#allocation3 + $0x30] sm:$0xff]
          %v3198 = vld [vmem:[#allocation3 + $0x38] sm:$0xff]
          %v3199 = vld [vmem:[#allocation3 + $0x40] sm:$0xff]
          %v3200 = vld [vmem:[#allocation3 + $0x48] sm:$0xff]
          %v3201 = vld [vmem:[#allocation3 + $0x50] sm:$0xff]
          %v3202 = vld [vmem:[#allocation3 + $0x58] sm:$0xff]
          %v3203 = vld [vmem:[#allocation3 + $0x60] sm:$0xff]
          %v3204 = vld [vmem:[#allocation3 + $0x68] sm:$0xff]
          %v3205 = vld [vmem:[#allocation3 + $0x70] sm:$0xff]
          %v3206 = vld [vmem:[#allocation3 + $0x78] sm:$0xff]
          %v3207 = vld [vmem:[#allocation3 + $0x80] sm:$0xff]
          %v3208 = vld [vmem:[#allocation3 + $0x88] sm:$0xff]
          %v3209 = vld [vmem:[#allocation3 + $0x90] sm:$0xff]
          %v3210 = vld [vmem:[#allocation3 + $0x98] sm:$0xff]
          %v3211 = vld [vmem:[#allocation3 + $0xa0] sm:$0xff]
          %v3212 = vld [vmem:[#allocation3 + $0xa8] sm:$0xff]
          %v3213 = vld [vmem:[#allocation3 + $0xb0] sm:$0xff]
          %v3214 = vld [vmem:[#allocation3 + $0xb8] sm:$0xff]
          %v3215 = vld [vmem:[#allocation3 + $0xc0] sm:$0xff]
          %v3216 = vld [vmem:[#allocation3 + $0xc8] sm:$0xff]
          %v3217 = vld [vmem:[#allocation3 + $0xd0] sm:$0xff]
          %v3218 = vld [vmem:[#allocation3 + $0xd8] sm:$0xff]
          %v3219 = vld [vmem:[#allocation3 + $0xe0] sm:$0xff]
          %v3220 = vld [vmem:[#allocation3 + $0xe8] sm:$0xff]
          %s3221 = sadd.s32 %s2556, 2
          %s3222 = smul.u32 %s3221, 128
          %s3223 = scalar_lea.vmem [#allocation12], %s3222
          %v3224 = vld [vmem:[%s3223] sm:$0xff]
          %v3225 = vld [vmem:[%s3223 + $0x8] sm:$0xff]
          %v3226 = vld [vmem:[%s3223 + $0x10] sm:$0xff]
          %v3227 = vld [vmem:[%s3223 + $0x18] sm:$0xff]
          %v3228 = vld [vmem:[%s3223 + $0x20] sm:$0xff]
          %v3229 = vld [vmem:[%s3223 + $0x28] sm:$0xff]
          %v3230 = vld [vmem:[%s3223 + $0x30] sm:$0xff]
          %v3231 = vld [vmem:[%s3223 + $0x38] sm:$0xff]
          %v3232 = vld [vmem:[%s3223 + $0x40] sm:$0xff]
          %v3233 = vld [vmem:[%s3223 + $0x48] sm:$0xff]
          %v3234 = vld [vmem:[%s3223 + $0x50] sm:$0xff]
          %v3235 = vld [vmem:[%s3223 + $0x58] sm:$0xff]
          %v3236 = vld [vmem:[%s3223 + $0x60] sm:$0xff]
          %v3237 = vld [vmem:[%s3223 + $0x68] sm:$0xff]
          %v3238 = vld [vmem:[%s3223 + $0x70] sm:$0xff]
          %v3239 = vld [vmem:[%s3223 + $0x78] sm:$0xff]
          %3240 = vmatprep.subr.mxu0 0.0
          %3241 = vmatpush1.msra.mxu0 %v3239
          %3242 = vmatprep.subr.mxu0 0.0
          %3243 = vmatpush1.msra.mxu0 %v3238
          %3244 = vmatprep.subr.mxu0 0.0
          %3245 = vmatpush1.msra.mxu0 %v3237
          %3246 = vmatprep.subr.mxu0 0.0
          %3247 = vmatpush1.msra.mxu0 %v3236
          %3248 = vmatprep.subr.mxu0 0.0
          %3249 = vmatpush1.msra.mxu0 %v3235
          %3250 = vmatprep.subr.mxu0 0.0
          %3251 = vmatpush1.msra.mxu0 %v3234
          %3252 = vmatprep.subr.mxu0 0.0
          %3253 = vmatpush1.msra.mxu0 %v3233
          %3254 = vmatprep.subr.mxu0 0.0
          %3255 = vmatpush1.msra.mxu0 %v3232
          %3256 = vmatprep.subr.mxu0 0.0
          %3257 = vmatpush1.msra.mxu0 %v3231
          %3258 = vmatprep.subr.mxu0 0.0
          %3259 = vmatpush1.msra.mxu0 %v3230
          %3260 = vmatprep.subr.mxu0 0.0
          %3261 = vmatpush1.msra.mxu0 %v3229
          %3262 = vmatprep.subr.mxu0 0.0
          %3263 = vmatpush1.msra.mxu0 %v3228
          %3264 = vmatprep.subr.mxu0 0.0
          %3265 = vmatpush1.msra.mxu0 %v3227
          %3266 = vmatprep.subr.mxu0 0.0
          %3267 = vmatpush1.msra.mxu0 %v3226
          %3268 = vmatprep.subr.mxu0 0.0
          %3269 = vmatpush1.msra.mxu0 %v3225
          %3270 = vmatprep.subr.mxu0 0.0
          %3271 = vmatpush1.msra.mxu0 %v3224
          %3272 = vmatprep.subr.mxu0 0.0
          %3273 = vmatpush2.msra.mxu0 0.0
          %3274 = vmatprep.subr.mxu0 0.0
          %3275 = vmatpush2.msra.mxu0 0.0
          %3276 = vmatprep.subr.mxu0 0.0
          %3277 = vmatpush2.msra.mxu0 0.0
          %3278 = vmatprep.subr.mxu0 0.0
          %3279 = vmatpush2.msra.mxu0 0.0
          %3280 = vmatprep.subr.mxu0 0.0
          %3281 = vmatpush2.msra.mxu0 0.0
          %3282 = vmatprep.subr.mxu0 0.0
          %3283 = vmatpush2.msra.mxu0 0.0
          %3284 = vmatprep.subr.mxu0 0.0
          %3285 = vmatpush2.msra.mxu0 0.0
          %3286 = vmatprep.subr.mxu0 0.0
          %3287 = vmatpush2.msra.mxu0 0.0
          %3288 = vmatprep.subr.mxu0 0.0
          %3289 = vmatpush2.msra.mxu0 0.0
          %3290 = vmatprep.subr.mxu0 0.0
          %3291 = vmatpush2.msra.mxu0 0.0
          %3292 = vmatprep.subr.mxu0 0.0
          %3293 = vmatpush2.msra.mxu0 0.0
          %3294 = vmatprep.subr.mxu0 0.0
          %3295 = vmatpush2.msra.mxu0 0.0
          %3296 = vmatprep.subr.mxu0 0.0
          %3297 = vmatpush2.msra.mxu0 0.0
          %3298 = vmatprep.subr.mxu0 0.0
          %3299 = vmatpush2.msra.mxu0 0.0
          %3300 = vmatprep.subr.mxu0 0.0
          %3301 = vmatpush2.msra.mxu0 0.0
          %3302 = vmatprep.subr.mxu0 0.0
          %3303 = vmatpush2.msra.mxu0 0.0
          %3304 = vmatprep.mubr.f32.mxu0 0.0
          %3305 = vmatmul.mubr.f32.gmra.mxu0 %v3197
          %v3306 = vpop.f32.mrf.mxu0
          %v3307 = vadd.f32 0.0, %v3306
          %v3308 = vpop.f32.mrf.mxu0
          %3309 = vmatprep.mubr.f32.mxu0 0.0
          %3310 = vmatmul.mubr.f32.gmra.mxu0 %v3198
          %v3311 = vpop.f32.mrf.mxu0
          %v3312 = vadd.f32 0.0, %v3311
          %v3313 = vpop.f32.mrf.mxu0
          %3314 = vmatprep.mubr.f32.mxu0 0.0
          %3315 = vmatmul.mubr.f32.gmra.mxu0 %v3199
          %v3316 = vpop.f32.mrf.mxu0
          %v3317 = vadd.f32 0.0, %v3316
          %v3318 = vpop.f32.mrf.mxu0
          %3319 = vmatprep.mubr.f32.mxu0 0.0
          %3320 = vmatmul.mubr.f32.gmra.mxu0 %v3200
          %v3321 = vpop.f32.mrf.mxu0
          %v3322 = vadd.f32 0.0, %v3321
          %v3323 = vpop.f32.mrf.mxu0
          %3324 = vmatprep.mubr.f32.mxu0 0.0
          %3325 = vmatmul.mubr.f32.gmra.mxu0 %v3201
          %v3326 = vpop.f32.mrf.mxu0
          %v3327 = vadd.f32 0.0, %v3326
          %v3328 = vpop.f32.mrf.mxu0
          %3329 = vmatprep.mubr.f32.mxu0 0.0
          %3330 = vmatmul.mubr.f32.gmra.mxu0 %v3202
          %v3331 = vpop.f32.mrf.mxu0
          %v3332 = vadd.f32 0.0, %v3331
          %v3333 = vpop.f32.mrf.mxu0
          %3334 = vmatprep.mubr.f32.mxu0 0.0
          %3335 = vmatmul.mubr.f32.gmra.mxu0 %v3203
          %v3336 = vpop.f32.mrf.mxu0
          %v3337 = vadd.f32 0.0, %v3336
          %v3338 = vpop.f32.mrf.mxu0
          %3339 = vmatprep.mubr.f32.mxu0 0.0
          %3340 = vmatmul.mubr.f32.gmra.mxu0 %v3204
          %v3341 = vpop.f32.mrf.mxu0
          %v3342 = vadd.f32 0.0, %v3341
          %v3343 = vpop.f32.mrf.mxu0
          %3344 = vmatprep.mubr.f32.mxu0 0.0
          %3345 = vmatmul.mubr.f32.gmra.mxu0 %v3205
          %v3346 = vpop.f32.mrf.mxu0
          %v3347 = vadd.f32 0.0, %v3346
          %v3348 = vpop.f32.mrf.mxu0
          %3349 = vmatprep.mubr.f32.mxu0 0.0
          %3350 = vmatmul.mubr.f32.gmra.mxu0 %v3206
          %v3351 = vpop.f32.mrf.mxu0
          %v3352 = vadd.f32 0.0, %v3351
          %v3353 = vpop.f32.mrf.mxu0
          %3354 = vmatprep.mubr.f32.mxu0 0.0
          %3355 = vmatmul.mubr.f32.gmra.mxu0 %v3207
          %v3356 = vpop.f32.mrf.mxu0
          %v3357 = vadd.f32 0.0, %v3356
          %v3358 = vpop.f32.mrf.mxu0
          %3359 = vmatprep.mubr.f32.mxu0 0.0
          %3360 = vmatmul.mubr.f32.gmra.mxu0 %v3208
          %v3361 = vpop.f32.mrf.mxu0
          %v3362 = vadd.f32 0.0, %v3361
          %v3363 = vpop.f32.mrf.mxu0
          %3364 = vmatprep.mubr.f32.mxu0 0.0
          %3365 = vmatmul.mubr.f32.gmra.mxu0 %v3209
          %v3366 = vpop.f32.mrf.mxu0
          %v3367 = vadd.f32 0.0, %v3366
          %v3368 = vpop.f32.mrf.mxu0
          %3369 = vmatprep.mubr.f32.mxu0 0.0
          %3370 = vmatmul.mubr.f32.gmra.mxu0 %v3210
          %v3371 = vpop.f32.mrf.mxu0
          %v3372 = vadd.f32 0.0, %v3371
          %v3373 = vpop.f32.mrf.mxu0
          %3374 = vmatprep.mubr.f32.mxu0 0.0
          %3375 = vmatmul.mubr.f32.gmra.mxu0 %v3211
          %v3376 = vpop.f32.mrf.mxu0
          %v3377 = vadd.f32 0.0, %v3376
          %v3378 = vpop.f32.mrf.mxu0
          %3379 = vmatprep.mubr.f32.mxu0 0.0
          %3380 = vmatmul.mubr.f32.gmra.mxu0 %v3212
          %v3381 = vpop.f32.mrf.mxu0
          %v3382 = vadd.f32 0.0, %v3381
          %v3383 = vpop.f32.mrf.mxu0
          %3384 = vmatprep.mubr.f32.mxu0 0.0
          %3385 = vmatmul.mubr.f32.gmra.mxu0 %v3213
          %v3386 = vpop.f32.mrf.mxu0
          %v3387 = vadd.f32 0.0, %v3386
          %v3388 = vpop.f32.mrf.mxu0
          %3389 = vmatprep.mubr.f32.mxu0 0.0
          %3390 = vmatmul.mubr.f32.gmra.mxu0 %v3214
          %v3391 = vpop.f32.mrf.mxu0
          %v3392 = vadd.f32 0.0, %v3391
          %v3393 = vpop.f32.mrf.mxu0
          %3394 = vmatprep.mubr.f32.mxu0 0.0
          %3395 = vmatmul.mubr.f32.gmra.mxu0 %v3215
          %v3396 = vpop.f32.mrf.mxu0
          %v3397 = vadd.f32 0.0, %v3396
          %v3398 = vpop.f32.mrf.mxu0
          %3399 = vmatprep.mubr.f32.mxu0 0.0
          %3400 = vmatmul.mubr.f32.gmra.mxu0 %v3216
          %v3401 = vpop.f32.mrf.mxu0
          %v3402 = vadd.f32 0.0, %v3401
          %v3403 = vpop.f32.mrf.mxu0
          %3404 = vmatprep.mubr.f32.mxu0 0.0
          %3405 = vmatmul.mubr.f32.gmra.mxu0 %v3217
          %v3406 = vpop.f32.mrf.mxu0
          %v3407 = vadd.f32 0.0, %v3406
          %v3408 = vpop.f32.mrf.mxu0
          %3409 = vmatprep.mubr.f32.mxu0 0.0
          %3410 = vmatmul.mubr.f32.gmra.mxu0 %v3218
          %v3411 = vpop.f32.mrf.mxu0
          %v3412 = vadd.f32 0.0, %v3411
          %v3413 = vpop.f32.mrf.mxu0
          %3414 = vmatprep.mubr.f32.mxu0 0.0
          %3415 = vmatmul.mubr.f32.gmra.mxu0 %v3219
          %v3416 = vpop.f32.mrf.mxu0
          %v3417 = vadd.f32 0.0, %v3416
          %v3418 = vpop.f32.mrf.mxu0
          %3419 = vmatprep.mubr.f32.mxu0 0.0
          %3420 = vmatmul.mubr.f32.gmra.mxu0 %v3220
          %v3421 = vpop.f32.mrf.mxu0
          %v3422 = vadd.f32 0.0, %v3421
          %v3423 = vpop.f32.mrf.mxu0
          %3424 = vdwg.mxu0
          %v3425 = vadd.f32 %v3173, %v3307
          %v3426 = vadd.f32 %v3174, %v3312
          %v3427 = vadd.f32 %v3175, %v3317
          %v3428 = vadd.f32 %v3176, %v3322
          %v3429 = vadd.f32 %v3177, %v3327
          %v3430 = vadd.f32 %v3178, %v3332
          %v3431 = vadd.f32 %v3179, %v3337
          %v3432 = vadd.f32 %v3180, %v3342
          %v3433 = vadd.f32 %v3181, %v3347
          %v3434 = vadd.f32 %v3182, %v3352
          %v3435 = vadd.f32 %v3183, %v3357
          %v3436 = vadd.f32 %v3184, %v3362
          %v3437 = vadd.f32 %v3185, %v3367
          %v3438 = vadd.f32 %v3186, %v3372
          %v3439 = vadd.f32 %v3187, %v3377
          %v3440 = vadd.f32 %v3188, %v3382
          %v3441 = vadd.f32 %v3189, %v3387
          %v3442 = vadd.f32 %v3190, %v3392
          %v3443 = vadd.f32 %v3191, %v3397
          %v3444 = vadd.f32 %v3192, %v3402
          %v3445 = vadd.f32 %v3193, %v3407
          %v3446 = vadd.f32 %v3194, %v3412
          %v3447 = vadd.f32 %v3195, %v3417
          %v3448 = vadd.f32 %v3196, %v3422
          %v3449 = vld [vmem:[#allocation3 + $0x48] sm:$0xff]
          %v3450 = vld [vmem:[#allocation3 + $0x50] sm:$0xff]
          %v3451 = vld [vmem:[#allocation3 + $0x58] sm:$0xff]
          %v3452 = vld [vmem:[#allocation3 + $0x60] sm:$0xff]
          %v3453 = vld [vmem:[#allocation3 + $0x68] sm:$0xff]
          %v3454 = vld [vmem:[#allocation3 + $0x70] sm:$0xff]
          %v3455 = vld [vmem:[#allocation3 + $0x78] sm:$0xff]
          %v3456 = vld [vmem:[#allocation3 + $0x80] sm:$0xff]
          %v3457 = vld [vmem:[#allocation3 + $0x88] sm:$0xff]
          %v3458 = vld [vmem:[#allocation3 + $0x90] sm:$0xff]
          %v3459 = vld [vmem:[#allocation3 + $0x98] sm:$0xff]
          %v3460 = vld [vmem:[#allocation3 + $0xa0] sm:$0xff]
          %v3461 = vld [vmem:[#allocation3 + $0xa8] sm:$0xff]
          %v3462 = vld [vmem:[#allocation3 + $0xb0] sm:$0xff]
          %v3463 = vld [vmem:[#allocation3 + $0xb8] sm:$0xff]
          %v3464 = vld [vmem:[#allocation3 + $0xc0] sm:$0xff]
          %v3465 = vld [vmem:[#allocation3 + $0xc8] sm:$0xff]
          %v3466 = vld [vmem:[#allocation3 + $0xd0] sm:$0xff]
          %v3467 = vld [vmem:[#allocation3 + $0xd8] sm:$0xff]
          %v3468 = vld [vmem:[#allocation3 + $0xe0] sm:$0xff]
          %v3469 = vld [vmem:[#allocation3 + $0xe8] sm:$0xff]
          %v3470 = vld [vmem:[#allocation3 + $0xf0] sm:$0xff]
          %v3471 = vld [vmem:[#allocation3 + $0xf8] sm:$0xff]
          %v3472 = vld [vmem:[#allocation3 + $0x100] sm:$0xff]
          %s3473 = sadd.s32 %s2556, 3
          %s3474 = smul.u32 %s3473, 128
          %s3475 = scalar_lea.vmem [#allocation12], %s3474
          %v3476 = vld [vmem:[%s3475] sm:$0xff]
          %v3477 = vld [vmem:[%s3475 + $0x8] sm:$0xff]
          %v3478 = vld [vmem:[%s3475 + $0x10] sm:$0xff]
          %v3479 = vld [vmem:[%s3475 + $0x18] sm:$0xff]
          %v3480 = vld [vmem:[%s3475 + $0x20] sm:$0xff]
          %v3481 = vld [vmem:[%s3475 + $0x28] sm:$0xff]
          %v3482 = vld [vmem:[%s3475 + $0x30] sm:$0xff]
          %v3483 = vld [vmem:[%s3475 + $0x38] sm:$0xff]
          %v3484 = vld [vmem:[%s3475 + $0x40] sm:$0xff]
          %v3485 = vld [vmem:[%s3475 + $0x48] sm:$0xff]
          %v3486 = vld [vmem:[%s3475 + $0x50] sm:$0xff]
          %v3487 = vld [vmem:[%s3475 + $0x58] sm:$0xff]
          %v3488 = vld [vmem:[%s3475 + $0x60] sm:$0xff]
          %v3489 = vld [vmem:[%s3475 + $0x68] sm:$0xff]
          %v3490 = vld [vmem:[%s3475 + $0x70] sm:$0xff]
          %v3491 = vld [vmem:[%s3475 + $0x78] sm:$0xff]
          %3492 = vmatprep.subr.mxu0 0.0
          %3493 = vmatpush1.msra.mxu0 %v3491
          %3494 = vmatprep.subr.mxu0 0.0
          %3495 = vmatpush1.msra.mxu0 %v3490
          %3496 = vmatprep.subr.mxu0 0.0
          %3497 = vmatpush1.msra.mxu0 %v3489
          %3498 = vmatprep.subr.mxu0 0.0
          %3499 = vmatpush1.msra.mxu0 %v3488
          %3500 = vmatprep.subr.mxu0 0.0
          %3501 = vmatpush1.msra.mxu0 %v3487
          %3502 = vmatprep.subr.mxu0 0.0
          %3503 = vmatpush1.msra.mxu0 %v3486
          %3504 = vmatprep.subr.mxu0 0.0
          %3505 = vmatpush1.msra.mxu0 %v3485
          %3506 = vmatprep.subr.mxu0 0.0
          %3507 = vmatpush1.msra.mxu0 %v3484
          %3508 = vmatprep.subr.mxu0 0.0
          %3509 = vmatpush1.msra.mxu0 %v3483
          %3510 = vmatprep.subr.mxu0 0.0
          %3511 = vmatpush1.msra.mxu0 %v3482
          %3512 = vmatprep.subr.mxu0 0.0
          %3513 = vmatpush1.msra.mxu0 %v3481
          %3514 = vmatprep.subr.mxu0 0.0
          %3515 = vmatpush1.msra.mxu0 %v3480
          %3516 = vmatprep.subr.mxu0 0.0
          %3517 = vmatpush1.msra.mxu0 %v3479
          %3518 = vmatprep.subr.mxu0 0.0
          %3519 = vmatpush1.msra.mxu0 %v3478
          %3520 = vmatprep.subr.mxu0 0.0
          %3521 = vmatpush1.msra.mxu0 %v3477
          %3522 = vmatprep.subr.mxu0 0.0
          %3523 = vmatpush1.msra.mxu0 %v3476
          %3524 = vmatprep.subr.mxu0 0.0
          %3525 = vmatpush2.msra.mxu0 0.0
          %3526 = vmatprep.subr.mxu0 0.0
          %3527 = vmatpush2.msra.mxu0 0.0
          %3528 = vmatprep.subr.mxu0 0.0
          %3529 = vmatpush2.msra.mxu0 0.0
          %3530 = vmatprep.subr.mxu0 0.0
          %3531 = vmatpush2.msra.mxu0 0.0
          %3532 = vmatprep.subr.mxu0 0.0
          %3533 = vmatpush2.msra.mxu0 0.0
          %3534 = vmatprep.subr.mxu0 0.0
          %3535 = vmatpush2.msra.mxu0 0.0
          %3536 = vmatprep.subr.mxu0 0.0
          %3537 = vmatpush2.msra.mxu0 0.0
          %3538 = vmatprep.subr.mxu0 0.0
          %3539 = vmatpush2.msra.mxu0 0.0
          %3540 = vmatprep.subr.mxu0 0.0
          %3541 = vmatpush2.msra.mxu0 0.0
          %3542 = vmatprep.subr.mxu0 0.0
          %3543 = vmatpush2.msra.mxu0 0.0
          %3544 = vmatprep.subr.mxu0 0.0
          %3545 = vmatpush2.msra.mxu0 0.0
          %3546 = vmatprep.subr.mxu0 0.0
          %3547 = vmatpush2.msra.mxu0 0.0
          %3548 = vmatprep.subr.mxu0 0.0
          %3549 = vmatpush2.msra.mxu0 0.0
          %3550 = vmatprep.subr.mxu0 0.0
          %3551 = vmatpush2.msra.mxu0 0.0
          %3552 = vmatprep.subr.mxu0 0.0
          %3553 = vmatpush2.msra.mxu0 0.0
          %3554 = vmatprep.subr.mxu0 0.0
          %3555 = vmatpush2.msra.mxu0 0.0
          %3556 = vmatprep.mubr.f32.mxu0 0.0
          %3557 = vmatmul.mubr.f32.gmra.mxu0 %v3449
          %v3558 = vpop.f32.mrf.mxu0
          %v3559 = vadd.f32 0.0, %v3558
          %v3560 = vpop.f32.mrf.mxu0
          %3561 = vmatprep.mubr.f32.mxu0 0.0
          %3562 = vmatmul.mubr.f32.gmra.mxu0 %v3450
          %v3563 = vpop.f32.mrf.mxu0
          %v3564 = vadd.f32 0.0, %v3563
          %v3565 = vpop.f32.mrf.mxu0
          %3566 = vmatprep.mubr.f32.mxu0 0.0
          %3567 = vmatmul.mubr.f32.gmra.mxu0 %v3451
          %v3568 = vpop.f32.mrf.mxu0
          %v3569 = vadd.f32 0.0, %v3568
          %v3570 = vpop.f32.mrf.mxu0
          %3571 = vmatprep.mubr.f32.mxu0 0.0
          %3572 = vmatmul.mubr.f32.gmra.mxu0 %v3452
          %v3573 = vpop.f32.mrf.mxu0
          %v3574 = vadd.f32 0.0, %v3573
          %v3575 = vpop.f32.mrf.mxu0
          %3576 = vmatprep.mubr.f32.mxu0 0.0
          %3577 = vmatmul.mubr.f32.gmra.mxu0 %v3453
          %v3578 = vpop.f32.mrf.mxu0
          %v3579 = vadd.f32 0.0, %v3578
          %v3580 = vpop.f32.mrf.mxu0
          %3581 = vmatprep.mubr.f32.mxu0 0.0
          %3582 = vmatmul.mubr.f32.gmra.mxu0 %v3454
          %v3583 = vpop.f32.mrf.mxu0
          %v3584 = vadd.f32 0.0, %v3583
          %v3585 = vpop.f32.mrf.mxu0
          %3586 = vmatprep.mubr.f32.mxu0 0.0
          %3587 = vmatmul.mubr.f32.gmra.mxu0 %v3455
          %v3588 = vpop.f32.mrf.mxu0
          %v3589 = vadd.f32 0.0, %v3588
          %v3590 = vpop.f32.mrf.mxu0
          %3591 = vmatprep.mubr.f32.mxu0 0.0
          %3592 = vmatmul.mubr.f32.gmra.mxu0 %v3456
          %v3593 = vpop.f32.mrf.mxu0
          %v3594 = vadd.f32 0.0, %v3593
          %v3595 = vpop.f32.mrf.mxu0
          %3596 = vmatprep.mubr.f32.mxu0 0.0
          %3597 = vmatmul.mubr.f32.gmra.mxu0 %v3457
          %v3598 = vpop.f32.mrf.mxu0
          %v3599 = vadd.f32 0.0, %v3598
          %v3600 = vpop.f32.mrf.mxu0
          %3601 = vmatprep.mubr.f32.mxu0 0.0
          %3602 = vmatmul.mubr.f32.gmra.mxu0 %v3458
          %v3603 = vpop.f32.mrf.mxu0
          %v3604 = vadd.f32 0.0, %v3603
          %v3605 = vpop.f32.mrf.mxu0
          %3606 = vmatprep.mubr.f32.mxu0 0.0
          %3607 = vmatmul.mubr.f32.gmra.mxu0 %v3459
          %v3608 = vpop.f32.mrf.mxu0
          %v3609 = vadd.f32 0.0, %v3608
          %v3610 = vpop.f32.mrf.mxu0
          %3611 = vmatprep.mubr.f32.mxu0 0.0
          %3612 = vmatmul.mubr.f32.gmra.mxu0 %v3460
          %v3613 = vpop.f32.mrf.mxu0
          %v3614 = vadd.f32 0.0, %v3613
          %v3615 = vpop.f32.mrf.mxu0
          %3616 = vmatprep.mubr.f32.mxu0 0.0
          %3617 = vmatmul.mubr.f32.gmra.mxu0 %v3461
          %v3618 = vpop.f32.mrf.mxu0
          %v3619 = vadd.f32 0.0, %v3618
          %v3620 = vpop.f32.mrf.mxu0
          %3621 = vmatprep.mubr.f32.mxu0 0.0
          %3622 = vmatmul.mubr.f32.gmra.mxu0 %v3462
          %v3623 = vpop.f32.mrf.mxu0
          %v3624 = vadd.f32 0.0, %v3623
          %v3625 = vpop.f32.mrf.mxu0
          %3626 = vmatprep.mubr.f32.mxu0 0.0
          %3627 = vmatmul.mubr.f32.gmra.mxu0 %v3463
          %v3628 = vpop.f32.mrf.mxu0
          %v3629 = vadd.f32 0.0, %v3628
          %v3630 = vpop.f32.mrf.mxu0
          %3631 = vmatprep.mubr.f32.mxu0 0.0
          %3632 = vmatmul.mubr.f32.gmra.mxu0 %v3464
          %v3633 = vpop.f32.mrf.mxu0
          %v3634 = vadd.f32 0.0, %v3633
          %v3635 = vpop.f32.mrf.mxu0
          %3636 = vmatprep.mubr.f32.mxu0 0.0
          %3637 = vmatmul.mubr.f32.gmra.mxu0 %v3465
          %v3638 = vpop.f32.mrf.mxu0
          %v3639 = vadd.f32 0.0, %v3638
          %v3640 = vpop.f32.mrf.mxu0
          %3641 = vmatprep.mubr.f32.mxu0 0.0
          %3642 = vmatmul.mubr.f32.gmra.mxu0 %v3466
          %v3643 = vpop.f32.mrf.mxu0
          %v3644 = vadd.f32 0.0, %v3643
          %v3645 = vpop.f32.mrf.mxu0
          %3646 = vmatprep.mubr.f32.mxu0 0.0
          %3647 = vmatmul.mubr.f32.gmra.mxu0 %v3467
          %v3648 = vpop.f32.mrf.mxu0
          %v3649 = vadd.f32 0.0, %v3648
          %v3650 = vpop.f32.mrf.mxu0
          %3651 = vmatprep.mubr.f32.mxu0 0.0
          %3652 = vmatmul.mubr.f32.gmra.mxu0 %v3468
          %v3653 = vpop.f32.mrf.mxu0
          %v3654 = vadd.f32 0.0, %v3653
          %v3655 = vpop.f32.mrf.mxu0
          %3656 = vmatprep.mubr.f32.mxu0 0.0
          %3657 = vmatmul.mubr.f32.gmra.mxu0 %v3469
          %v3658 = vpop.f32.mrf.mxu0
          %v3659 = vadd.f32 0.0, %v3658
          %v3660 = vpop.f32.mrf.mxu0
          %3661 = vmatprep.mubr.f32.mxu0 0.0
          %3662 = vmatmul.mubr.f32.gmra.mxu0 %v3470
          %v3663 = vpop.f32.mrf.mxu0
          %v3664 = vadd.f32 0.0, %v3663
          %v3665 = vpop.f32.mrf.mxu0
          %3666 = vmatprep.mubr.f32.mxu0 0.0
          %3667 = vmatmul.mubr.f32.gmra.mxu0 %v3471
          %v3668 = vpop.f32.mrf.mxu0
          %v3669 = vadd.f32 0.0, %v3668
          %v3670 = vpop.f32.mrf.mxu0
          %3671 = vmatprep.mubr.f32.mxu0 0.0
          %3672 = vmatmul.mubr.f32.gmra.mxu0 %v3472
          %v3673 = vpop.f32.mrf.mxu0
          %v3674 = vadd.f32 0.0, %v3673
          %v3675 = vpop.f32.mrf.mxu0
          %3676 = vdwg.mxu0
          %v3677 = vadd.f32 %v3425, %v3559
          %v3678 = vadd.f32 %v3426, %v3564
          %v3679 = vadd.f32 %v3427, %v3569
          %v3680 = vadd.f32 %v3428, %v3574
          %v3681 = vadd.f32 %v3429, %v3579
          %v3682 = vadd.f32 %v3430, %v3584
          %v3683 = vadd.f32 %v3431, %v3589
          %v3684 = vadd.f32 %v3432, %v3594
          %v3685 = vadd.f32 %v3433, %v3599
          %v3686 = vadd.f32 %v3434, %v3604
          %v3687 = vadd.f32 %v3435, %v3609
          %v3688 = vadd.f32 %v3436, %v3614
          %v3689 = vadd.f32 %v3437, %v3619
          %v3690 = vadd.f32 %v3438, %v3624
          %v3691 = vadd.f32 %v3439, %v3629
          %v3692 = vadd.f32 %v3440, %v3634
          %v3693 = vadd.f32 %v3441, %v3639
          %v3694 = vadd.f32 %v3442, %v3644
          %v3695 = vadd.f32 %v3443, %v3649
          %v3696 = vadd.f32 %v3444, %v3654
          %v3697 = vadd.f32 %v3445, %v3659
          %v3698 = vadd.f32 %v3446, %v3664
          %v3699 = vadd.f32 %v3447, %v3669
          %v3700 = vadd.f32 %v3448, %v3674
          %v3701 = vld [vmem:[#allocation3 + $0x60] sm:$0xff]
          %v3702 = vld [vmem:[#allocation3 + $0x68] sm:$0xff]
          %v3703 = vld [vmem:[#allocation3 + $0x70] sm:$0xff]
          %v3704 = vld [vmem:[#allocation3 + $0x78] sm:$0xff]
          %v3705 = vld [vmem:[#allocation3 + $0x80] sm:$0xff]
          %v3706 = vld [vmem:[#allocation3 + $0x88] sm:$0xff]
          %v3707 = vld [vmem:[#allocation3 + $0x90] sm:$0xff]
          %v3708 = vld [vmem:[#allocation3 + $0x98] sm:$0xff]
          %v3709 = vld [vmem:[#allocation3 + $0xa0] sm:$0xff]
          %v3710 = vld [vmem:[#allocation3 + $0xa8] sm:$0xff]
          %v3711 = vld [vmem:[#allocation3 + $0xb0] sm:$0xff]
          %v3712 = vld [vmem:[#allocation3 + $0xb8] sm:$0xff]
          %v3713 = vld [vmem:[#allocation3 + $0xc0] sm:$0xff]
          %v3714 = vld [vmem:[#allocation3 + $0xc8] sm:$0xff]
          %v3715 = vld [vmem:[#allocation3 + $0xd0] sm:$0xff]
          %v3716 = vld [vmem:[#allocation3 + $0xd8] sm:$0xff]
          %v3717 = vld [vmem:[#allocation3 + $0xe0] sm:$0xff]
          %v3718 = vld [vmem:[#allocation3 + $0xe8] sm:$0xff]
          %v3719 = vld [vmem:[#allocation3 + $0xf0] sm:$0xff]
          %v3720 = vld [vmem:[#allocation3 + $0xf8] sm:$0xff]
          %v3721 = vld [vmem:[#allocation3 + $0x100] sm:$0xff]
          %v3722 = vld [vmem:[#allocation3 + $0x108] sm:$0xff]
          %v3723 = vld [vmem:[#allocation3 + $0x110] sm:$0xff]
          %v3724 = vld [vmem:[#allocation3 + $0x118] sm:$0xff]
          %s3725 = sadd.s32 %s2556, 4
          %s3726 = smul.u32 %s3725, 128
          %s3727 = scalar_lea.vmem [#allocation12], %s3726
          %v3728 = vld [vmem:[%s3727] sm:$0xff]
          %v3729 = vld [vmem:[%s3727 + $0x8] sm:$0xff]
          %v3730 = vld [vmem:[%s3727 + $0x10] sm:$0xff]
          %v3731 = vld [vmem:[%s3727 + $0x18] sm:$0xff]
          %v3732 = vld [vmem:[%s3727 + $0x20] sm:$0xff]
          %v3733 = vld [vmem:[%s3727 + $0x28] sm:$0xff]
          %v3734 = vld [vmem:[%s3727 + $0x30] sm:$0xff]
          %v3735 = vld [vmem:[%s3727 + $0x38] sm:$0xff]
          %v3736 = vld [vmem:[%s3727 + $0x40] sm:$0xff]
          %v3737 = vld [vmem:[%s3727 + $0x48] sm:$0xff]
          %v3738 = vld [vmem:[%s3727 + $0x50] sm:$0xff]
          %v3739 = vld [vmem:[%s3727 + $0x58] sm:$0xff]
          %v3740 = vld [vmem:[%s3727 + $0x60] sm:$0xff]
          %v3741 = vld [vmem:[%s3727 + $0x68] sm:$0xff]
          %v3742 = vld [vmem:[%s3727 + $0x70] sm:$0xff]
          %v3743 = vld [vmem:[%s3727 + $0x78] sm:$0xff]
          %3744 = vmatprep.subr.mxu0 0.0
          %3745 = vmatpush1.msra.mxu0 %v3743
          %3746 = vmatprep.subr.mxu0 0.0
          %3747 = vmatpush1.msra.mxu0 %v3742
          %3748 = vmatprep.subr.mxu0 0.0
          %3749 = vmatpush1.msra.mxu0 %v3741
          %3750 = vmatprep.subr.mxu0 0.0
          %3751 = vmatpush1.msra.mxu0 %v3740
          %3752 = vmatprep.subr.mxu0 0.0
          %3753 = vmatpush1.msra.mxu0 %v3739
          %3754 = vmatprep.subr.mxu0 0.0
          %3755 = vmatpush1.msra.mxu0 %v3738
          %3756 = vmatprep.subr.mxu0 0.0
          %3757 = vmatpush1.msra.mxu0 %v3737
          %3758 = vmatprep.subr.mxu0 0.0
          %3759 = vmatpush1.msra.mxu0 %v3736
          %3760 = vmatprep.subr.mxu0 0.0
          %3761 = vmatpush1.msra.mxu0 %v3735
          %3762 = vmatprep.subr.mxu0 0.0
          %3763 = vmatpush1.msra.mxu0 %v3734
          %3764 = vmatprep.subr.mxu0 0.0
          %3765 = vmatpush1.msra.mxu0 %v3733
          %3766 = vmatprep.subr.mxu0 0.0
          %3767 = vmatpush1.msra.mxu0 %v3732
          %3768 = vmatprep.subr.mxu0 0.0
          %3769 = vmatpush1.msra.mxu0 %v3731
          %3770 = vmatprep.subr.mxu0 0.0
          %3771 = vmatpush1.msra.mxu0 %v3730
          %3772 = vmatprep.subr.mxu0 0.0
          %3773 = vmatpush1.msra.mxu0 %v3729
          %3774 = vmatprep.subr.mxu0 0.0
          %3775 = vmatpush1.msra.mxu0 %v3728
          %3776 = vmatprep.subr.mxu0 0.0
          %3777 = vmatpush2.msra.mxu0 0.0
          %3778 = vmatprep.subr.mxu0 0.0
          %3779 = vmatpush2.msra.mxu0 0.0
          %3780 = vmatprep.subr.mxu0 0.0
          %3781 = vmatpush2.msra.mxu0 0.0
          %3782 = vmatprep.subr.mxu0 0.0
          %3783 = vmatpush2.msra.mxu0 0.0
          %3784 = vmatprep.subr.mxu0 0.0
          %3785 = vmatpush2.msra.mxu0 0.0
          %3786 = vmatprep.subr.mxu0 0.0
          %3787 = vmatpush2.msra.mxu0 0.0
          %3788 = vmatprep.subr.mxu0 0.0
          %3789 = vmatpush2.msra.mxu0 0.0
          %3790 = vmatprep.subr.mxu0 0.0
          %3791 = vmatpush2.msra.mxu0 0.0
          %3792 = vmatprep.subr.mxu0 0.0
          %3793 = vmatpush2.msra.mxu0 0.0
          %3794 = vmatprep.subr.mxu0 0.0
          %3795 = vmatpush2.msra.mxu0 0.0
          %3796 = vmatprep.subr.mxu0 0.0
          %3797 = vmatpush2.msra.mxu0 0.0
          %3798 = vmatprep.subr.mxu0 0.0
          %3799 = vmatpush2.msra.mxu0 0.0
          %3800 = vmatprep.subr.mxu0 0.0
          %3801 = vmatpush2.msra.mxu0 0.0
          %3802 = vmatprep.subr.mxu0 0.0
          %3803 = vmatpush2.msra.mxu0 0.0
          %3804 = vmatprep.subr.mxu0 0.0
          %3805 = vmatpush2.msra.mxu0 0.0
          %3806 = vmatprep.subr.mxu0 0.0
          %3807 = vmatpush2.msra.mxu0 0.0
          %3808 = vmatprep.mubr.f32.mxu0 0.0
          %3809 = vmatmul.mubr.f32.gmra.mxu0 %v3701
          %v3810 = vpop.f32.mrf.mxu0
          %v3811 = vadd.f32 0.0, %v3810
          %v3812 = vpop.f32.mrf.mxu0
          %3813 = vmatprep.mubr.f32.mxu0 0.0
          %3814 = vmatmul.mubr.f32.gmra.mxu0 %v3702
          %v3815 = vpop.f32.mrf.mxu0
          %v3816 = vadd.f32 0.0, %v3815
          %v3817 = vpop.f32.mrf.mxu0
          %3818 = vmatprep.mubr.f32.mxu0 0.0
          %3819 = vmatmul.mubr.f32.gmra.mxu0 %v3703
          %v3820 = vpop.f32.mrf.mxu0
          %v3821 = vadd.f32 0.0, %v3820
          %v3822 = vpop.f32.mrf.mxu0
          %3823 = vmatprep.mubr.f32.mxu0 0.0
          %3824 = vmatmul.mubr.f32.gmra.mxu0 %v3704
          %v3825 = vpop.f32.mrf.mxu0
          %v3826 = vadd.f32 0.0, %v3825
          %v3827 = vpop.f32.mrf.mxu0
          %3828 = vmatprep.mubr.f32.mxu0 0.0
          %3829 = vmatmul.mubr.f32.gmra.mxu0 %v3705
          %v3830 = vpop.f32.mrf.mxu0
          %v3831 = vadd.f32 0.0, %v3830
          %v3832 = vpop.f32.mrf.mxu0
          %3833 = vmatprep.mubr.f32.mxu0 0.0
          %3834 = vmatmul.mubr.f32.gmra.mxu0 %v3706
          %v3835 = vpop.f32.mrf.mxu0
          %v3836 = vadd.f32 0.0, %v3835
          %v3837 = vpop.f32.mrf.mxu0
          %3838 = vmatprep.mubr.f32.mxu0 0.0
          %3839 = vmatmul.mubr.f32.gmra.mxu0 %v3707
          %v3840 = vpop.f32.mrf.mxu0
          %v3841 = vadd.f32 0.0, %v3840
          %v3842 = vpop.f32.mrf.mxu0
          %3843 = vmatprep.mubr.f32.mxu0 0.0
          %3844 = vmatmul.mubr.f32.gmra.mxu0 %v3708
          %v3845 = vpop.f32.mrf.mxu0
          %v3846 = vadd.f32 0.0, %v3845
          %v3847 = vpop.f32.mrf.mxu0
          %3848 = vmatprep.mubr.f32.mxu0 0.0
          %3849 = vmatmul.mubr.f32.gmra.mxu0 %v3709
          %v3850 = vpop.f32.mrf.mxu0
          %v3851 = vadd.f32 0.0, %v3850
          %v3852 = vpop.f32.mrf.mxu0
          %3853 = vmatprep.mubr.f32.mxu0 0.0
          %3854 = vmatmul.mubr.f32.gmra.mxu0 %v3710
          %v3855 = vpop.f32.mrf.mxu0
          %v3856 = vadd.f32 0.0, %v3855
          %v3857 = vpop.f32.mrf.mxu0
          %3858 = vmatprep.mubr.f32.mxu0 0.0
          %3859 = vmatmul.mubr.f32.gmra.mxu0 %v3711
          %v3860 = vpop.f32.mrf.mxu0
          %v3861 = vadd.f32 0.0, %v3860
          %v3862 = vpop.f32.mrf.mxu0
          %3863 = vmatprep.mubr.f32.mxu0 0.0
          %3864 = vmatmul.mubr.f32.gmra.mxu0 %v3712
          %v3865 = vpop.f32.mrf.mxu0
          %v3866 = vadd.f32 0.0, %v3865
          %v3867 = vpop.f32.mrf.mxu0
          %3868 = vmatprep.mubr.f32.mxu0 0.0
          %3869 = vmatmul.mubr.f32.gmra.mxu0 %v3713
          %v3870 = vpop.f32.mrf.mxu0
          %v3871 = vadd.f32 0.0, %v3870
          %v3872 = vpop.f32.mrf.mxu0
          %3873 = vmatprep.mubr.f32.mxu0 0.0
          %3874 = vmatmul.mubr.f32.gmra.mxu0 %v3714
          %v3875 = vpop.f32.mrf.mxu0
          %v3876 = vadd.f32 0.0, %v3875
          %v3877 = vpop.f32.mrf.mxu0
          %3878 = vmatprep.mubr.f32.mxu0 0.0
          %3879 = vmatmul.mubr.f32.gmra.mxu0 %v3715
          %v3880 = vpop.f32.mrf.mxu0
          %v3881 = vadd.f32 0.0, %v3880
          %v3882 = vpop.f32.mrf.mxu0
          %3883 = vmatprep.mubr.f32.mxu0 0.0
          %3884 = vmatmul.mubr.f32.gmra.mxu0 %v3716
          %v3885 = vpop.f32.mrf.mxu0
          %v3886 = vadd.f32 0.0, %v3885
          %v3887 = vpop.f32.mrf.mxu0
          %3888 = vmatprep.mubr.f32.mxu0 0.0
          %3889 = vmatmul.mubr.f32.gmra.mxu0 %v3717
          %v3890 = vpop.f32.mrf.mxu0
          %v3891 = vadd.f32 0.0, %v3890
          %v3892 = vpop.f32.mrf.mxu0
          %3893 = vmatprep.mubr.f32.mxu0 0.0
          %3894 = vmatmul.mubr.f32.gmra.mxu0 %v3718
          %v3895 = vpop.f32.mrf.mxu0
          %v3896 = vadd.f32 0.0, %v3895
          %v3897 = vpop.f32.mrf.mxu0
          %3898 = vmatprep.mubr.f32.mxu0 0.0
          %3899 = vmatmul.mubr.f32.gmra.mxu0 %v3719
          %v3900 = vpop.f32.mrf.mxu0
          %v3901 = vadd.f32 0.0, %v3900
          %v3902 = vpop.f32.mrf.mxu0
          %3903 = vmatprep.mubr.f32.mxu0 0.0
          %3904 = vmatmul.mubr.f32.gmra.mxu0 %v3720
          %v3905 = vpop.f32.mrf.mxu0
          %v3906 = vadd.f32 0.0, %v3905
          %v3907 = vpop.f32.mrf.mxu0
          %3908 = vmatprep.mubr.f32.mxu0 0.0
          %3909 = vmatmul.mubr.f32.gmra.mxu0 %v3721
          %v3910 = vpop.f32.mrf.mxu0
          %v3911 = vadd.f32 0.0, %v3910
          %v3912 = vpop.f32.mrf.mxu0
          %3913 = vmatprep.mubr.f32.mxu0 0.0
          %3914 = vmatmul.mubr.f32.gmra.mxu0 %v3722
          %v3915 = vpop.f32.mrf.mxu0
          %v3916 = vadd.f32 0.0, %v3915
          %v3917 = vpop.f32.mrf.mxu0
          %3918 = vmatprep.mubr.f32.mxu0 0.0
          %3919 = vmatmul.mubr.f32.gmra.mxu0 %v3723
          %v3920 = vpop.f32.mrf.mxu0
          %v3921 = vadd.f32 0.0, %v3920
          %v3922 = vpop.f32.mrf.mxu0
          %3923 = vmatprep.mubr.f32.mxu0 0.0
          %3924 = vmatmul.mubr.f32.gmra.mxu0 %v3724
          %v3925 = vpop.f32.mrf.mxu0
          %v3926 = vadd.f32 0.0, %v3925
          %v3927 = vpop.f32.mrf.mxu0
          %3928 = vdwg.mxu0
          %v3929 = vadd.f32 %v3677, %v3811
          %v3930 = vadd.f32 %v3678, %v3816
          %v3931 = vadd.f32 %v3679, %v3821
          %v3932 = vadd.f32 %v3680, %v3826
          %v3933 = vadd.f32 %v3681, %v3831
          %v3934 = vadd.f32 %v3682, %v3836
          %v3935 = vadd.f32 %v3683, %v3841
          %v3936 = vadd.f32 %v3684, %v3846
          %v3937 = vadd.f32 %v3685, %v3851
          %v3938 = vadd.f32 %v3686, %v3856
          %v3939 = vadd.f32 %v3687, %v3861
          %v3940 = vadd.f32 %v3688, %v3866
          %v3941 = vadd.f32 %v3689, %v3871
          %v3942 = vadd.f32 %v3690, %v3876
          %v3943 = vadd.f32 %v3691, %v3881
          %v3944 = vadd.f32 %v3692, %v3886
          %v3945 = vadd.f32 %v3693, %v3891
          %v3946 = vadd.f32 %v3694, %v3896
          %v3947 = vadd.f32 %v3695, %v3901
          %v3948 = vadd.f32 %v3696, %v3906
          %v3949 = vadd.f32 %v3697, %v3911
          %v3950 = vadd.f32 %v3698, %v3916
          %v3951 = vadd.f32 %v3699, %v3921
          %v3952 = vadd.f32 %v3700, %v3926
          %v3953 = vld [vmem:[#allocation3 + $0x78] sm:$0xff]
          %v3954 = vld [vmem:[#allocation3 + $0x80] sm:$0xff]
          %v3955 = vld [vmem:[#allocation3 + $0x88] sm:$0xff]
          %v3956 = vld [vmem:[#allocation3 + $0x90] sm:$0xff]
          %v3957 = vld [vmem:[#allocation3 + $0x98] sm:$0xff]
          %v3958 = vld [vmem:[#allocation3 + $0xa0] sm:$0xff]
          %v3959 = vld [vmem:[#allocation3 + $0xa8] sm:$0xff]
          %v3960 = vld [vmem:[#allocation3 + $0xb0] sm:$0xff]
          %v3961 = vld [vmem:[#allocation3 + $0xb8] sm:$0xff]
          %v3962 = vld [vmem:[#allocation3 + $0xc0] sm:$0xff]
          %v3963 = vld [vmem:[#allocation3 + $0xc8] sm:$0xff]
          %v3964 = vld [vmem:[#allocation3 + $0xd0] sm:$0xff]
          %v3965 = vld [vmem:[#allocation3 + $0xd8] sm:$0xff]
          %v3966 = vld [vmem:[#allocation3 + $0xe0] sm:$0xff]
          %v3967 = vld [vmem:[#allocation3 + $0xe8] sm:$0xff]
          %v3968 = vld [vmem:[#allocation3 + $0xf0] sm:$0xff]
          %v3969 = vld [vmem:[#allocation3 + $0xf8] sm:$0xff]
          %v3970 = vld [vmem:[#allocation3 + $0x100] sm:$0xff]
          %v3971 = vld [vmem:[#allocation3 + $0x108] sm:$0xff]
          %v3972 = vld [vmem:[#allocation3 + $0x110] sm:$0xff]
          %v3973 = vld [vmem:[#allocation3 + $0x118] sm:$0xff]
          %v3974 = vld [vmem:[#allocation3 + $0x120] sm:$0xff]
          %v3975 = vld [vmem:[#allocation3 + $0x128] sm:$0xff]
          %v3976 = vld [vmem:[#allocation3 + $0x130] sm:$0xff]
          %s3977 = sadd.s32 %s2556, 5
          %s3978 = smul.u32 %s3977, 128
          %s3979 = scalar_lea.vmem [#allocation12], %s3978
          %v3980 = vld [vmem:[%s3979] sm:$0xff]
          %v3981 = vld [vmem:[%s3979 + $0x8] sm:$0xff]
          %v3982 = vld [vmem:[%s3979 + $0x10] sm:$0xff]
          %v3983 = vld [vmem:[%s3979 + $0x18] sm:$0xff]
          %v3984 = vld [vmem:[%s3979 + $0x20] sm:$0xff]
          %v3985 = vld [vmem:[%s3979 + $0x28] sm:$0xff]
          %v3986 = vld [vmem:[%s3979 + $0x30] sm:$0xff]
          %v3987 = vld [vmem:[%s3979 + $0x38] sm:$0xff]
          %v3988 = vld [vmem:[%s3979 + $0x40] sm:$0xff]
          %v3989 = vld [vmem:[%s3979 + $0x48] sm:$0xff]
          %v3990 = vld [vmem:[%s3979 + $0x50] sm:$0xff]
          %v3991 = vld [vmem:[%s3979 + $0x58] sm:$0xff]
          %v3992 = vld [vmem:[%s3979 + $0x60] sm:$0xff]
          %v3993 = vld [vmem:[%s3979 + $0x68] sm:$0xff]
          %v3994 = vld [vmem:[%s3979 + $0x70] sm:$0xff]
          %v3995 = vld [vmem:[%s3979 + $0x78] sm:$0xff]
          %3996 = vmatprep.subr.mxu0 0.0
          %3997 = vmatpush1.msra.mxu0 %v3995
          %3998 = vmatprep.subr.mxu0 0.0
          %3999 = vmatpush1.msra.mxu0 %v3994
          %4000 = vmatprep.subr.mxu0 0.0
          %4001 = vmatpush1.msra.mxu0 %v3993
          %4002 = vmatprep.subr.mxu0 0.0
          %4003 = vmatpush1.msra.mxu0 %v3992
          %4004 = vmatprep.subr.mxu0 0.0
          %4005 = vmatpush1.msra.mxu0 %v3991
          %4006 = vmatprep.subr.mxu0 0.0
          %4007 = vmatpush1.msra.mxu0 %v3990
          %4008 = vmatprep.subr.mxu0 0.0
          %4009 = vmatpush1.msra.mxu0 %v3989
          %4010 = vmatprep.subr.mxu0 0.0
          %4011 = vmatpush1.msra.mxu0 %v3988
          %4012 = vmatprep.subr.mxu0 0.0
          %4013 = vmatpush1.msra.mxu0 %v3987
          %4014 = vmatprep.subr.mxu0 0.0
          %4015 = vmatpush1.msra.mxu0 %v3986
          %4016 = vmatprep.subr.mxu0 0.0
          %4017 = vmatpush1.msra.mxu0 %v3985
          %4018 = vmatprep.subr.mxu0 0.0
          %4019 = vmatpush1.msra.mxu0 %v3984
          %4020 = vmatprep.subr.mxu0 0.0
          %4021 = vmatpush1.msra.mxu0 %v3983
          %4022 = vmatprep.subr.mxu0 0.0
          %4023 = vmatpush1.msra.mxu0 %v3982
          %4024 = vmatprep.subr.mxu0 0.0
          %4025 = vmatpush1.msra.mxu0 %v3981
          %4026 = vmatprep.subr.mxu0 0.0
          %4027 = vmatpush1.msra.mxu0 %v3980
          %4028 = vmatprep.subr.mxu0 0.0
          %4029 = vmatpush2.msra.mxu0 0.0
          %4030 = vmatprep.subr.mxu0 0.0
          %4031 = vmatpush2.msra.mxu0 0.0
          %4032 = vmatprep.subr.mxu0 0.0
          %4033 = vmatpush2.msra.mxu0 0.0
          %4034 = vmatprep.subr.mxu0 0.0
          %4035 = vmatpush2.msra.mxu0 0.0
          %4036 = vmatprep.subr.mxu0 0.0
          %4037 = vmatpush2.msra.mxu0 0.0
          %4038 = vmatprep.subr.mxu0 0.0
          %4039 = vmatpush2.msra.mxu0 0.0
          %4040 = vmatprep.subr.mxu0 0.0
          %4041 = vmatpush2.msra.mxu0 0.0
          %4042 = vmatprep.subr.mxu0 0.0
          %4043 = vmatpush2.msra.mxu0 0.0
          %4044 = vmatprep.subr.mxu0 0.0
          %4045 = vmatpush2.msra.mxu0 0.0
          %4046 = vmatprep.subr.mxu0 0.0
          %4047 = vmatpush2.msra.mxu0 0.0
          %4048 = vmatprep.subr.mxu0 0.0
          %4049 = vmatpush2.msra.mxu0 0.0
          %4050 = vmatprep.subr.mxu0 0.0
          %4051 = vmatpush2.msra.mxu0 0.0
          %4052 = vmatprep.subr.mxu0 0.0
          %4053 = vmatpush2.msra.mxu0 0.0
          %4054 = vmatprep.subr.mxu0 0.0
          %4055 = vmatpush2.msra.mxu0 0.0
          %4056 = vmatprep.subr.mxu0 0.0
          %4057 = vmatpush2.msra.mxu0 0.0
          %4058 = vmatprep.subr.mxu0 0.0
          %4059 = vmatpush2.msra.mxu0 0.0
          %4060 = vmatprep.mubr.f32.mxu0 0.0
          %4061 = vmatmul.mubr.f32.gmra.mxu0 %v3953
          %v4062 = vpop.f32.mrf.mxu0
          %v4063 = vadd.f32 0.0, %v4062
          %v4064 = vpop.f32.mrf.mxu0
          %4065 = vmatprep.mubr.f32.mxu0 0.0
          %4066 = vmatmul.mubr.f32.gmra.mxu0 %v3954
          %v4067 = vpop.f32.mrf.mxu0
          %v4068 = vadd.f32 0.0, %v4067
          %v4069 = vpop.f32.mrf.mxu0
          %4070 = vmatprep.mubr.f32.mxu0 0.0
          %4071 = vmatmul.mubr.f32.gmra.mxu0 %v3955
          %v4072 = vpop.f32.mrf.mxu0
          %v4073 = vadd.f32 0.0, %v4072
          %v4074 = vpop.f32.mrf.mxu0
          %4075 = vmatprep.mubr.f32.mxu0 0.0
          %4076 = vmatmul.mubr.f32.gmra.mxu0 %v3956
          %v4077 = vpop.f32.mrf.mxu0
          %v4078 = vadd.f32 0.0, %v4077
          %v4079 = vpop.f32.mrf.mxu0
          %4080 = vmatprep.mubr.f32.mxu0 0.0
          %4081 = vmatmul.mubr.f32.gmra.mxu0 %v3957
          %v4082 = vpop.f32.mrf.mxu0
          %v4083 = vadd.f32 0.0, %v4082
          %v4084 = vpop.f32.mrf.mxu0
          %4085 = vmatprep.mubr.f32.mxu0 0.0
          %4086 = vmatmul.mubr.f32.gmra.mxu0 %v3958
          %v4087 = vpop.f32.mrf.mxu0
          %v4088 = vadd.f32 0.0, %v4087
          %v4089 = vpop.f32.mrf.mxu0
          %4090 = vmatprep.mubr.f32.mxu0 0.0
          %4091 = vmatmul.mubr.f32.gmra.mxu0 %v3959
          %v4092 = vpop.f32.mrf.mxu0
          %v4093 = vadd.f32 0.0, %v4092
          %v4094 = vpop.f32.mrf.mxu0
          %4095 = vmatprep.mubr.f32.mxu0 0.0
          %4096 = vmatmul.mubr.f32.gmra.mxu0 %v3960
          %v4097 = vpop.f32.mrf.mxu0
          %v4098 = vadd.f32 0.0, %v4097
          %v4099 = vpop.f32.mrf.mxu0
          %4100 = vmatprep.mubr.f32.mxu0 0.0
          %4101 = vmatmul.mubr.f32.gmra.mxu0 %v3961
          %v4102 = vpop.f32.mrf.mxu0
          %v4103 = vadd.f32 0.0, %v4102
          %v4104 = vpop.f32.mrf.mxu0
          %4105 = vmatprep.mubr.f32.mxu0 0.0
          %4106 = vmatmul.mubr.f32.gmra.mxu0 %v3962
          %v4107 = vpop.f32.mrf.mxu0
          %v4108 = vadd.f32 0.0, %v4107
          %v4109 = vpop.f32.mrf.mxu0
          %4110 = vmatprep.mubr.f32.mxu0 0.0
          %4111 = vmatmul.mubr.f32.gmra.mxu0 %v3963
          %v4112 = vpop.f32.mrf.mxu0
          %v4113 = vadd.f32 0.0, %v4112
          %v4114 = vpop.f32.mrf.mxu0
          %4115 = vmatprep.mubr.f32.mxu0 0.0
          %4116 = vmatmul.mubr.f32.gmra.mxu0 %v3964
          %v4117 = vpop.f32.mrf.mxu0
          %v4118 = vadd.f32 0.0, %v4117
          %v4119 = vpop.f32.mrf.mxu0
          %4120 = vmatprep.mubr.f32.mxu0 0.0
          %4121 = vmatmul.mubr.f32.gmra.mxu0 %v3965
          %v4122 = vpop.f32.mrf.mxu0
          %v4123 = vadd.f32 0.0, %v4122
          %v4124 = vpop.f32.mrf.mxu0
          %4125 = vmatprep.mubr.f32.mxu0 0.0
          %4126 = vmatmul.mubr.f32.gmra.mxu0 %v3966
          %v4127 = vpop.f32.mrf.mxu0
          %v4128 = vadd.f32 0.0, %v4127
          %v4129 = vpop.f32.mrf.mxu0
          %4130 = vmatprep.mubr.f32.mxu0 0.0
          %4131 = vmatmul.mubr.f32.gmra.mxu0 %v3967
          %v4132 = vpop.f32.mrf.mxu0
          %v4133 = vadd.f32 0.0, %v4132
          %v4134 = vpop.f32.mrf.mxu0
          %4135 = vmatprep.mubr.f32.mxu0 0.0
          %4136 = vmatmul.mubr.f32.gmra.mxu0 %v3968
          %v4137 = vpop.f32.mrf.mxu0
          %v4138 = vadd.f32 0.0, %v4137
          %v4139 = vpop.f32.mrf.mxu0
          %4140 = vmatprep.mubr.f32.mxu0 0.0
          %4141 = vmatmul.mubr.f32.gmra.mxu0 %v3969
          %v4142 = vpop.f32.mrf.mxu0
          %v4143 = vadd.f32 0.0, %v4142
          %v4144 = vpop.f32.mrf.mxu0
          %4145 = vmatprep.mubr.f32.mxu0 0.0
          %4146 = vmatmul.mubr.f32.gmra.mxu0 %v3970
          %v4147 = vpop.f32.mrf.mxu0
          %v4148 = vadd.f32 0.0, %v4147
          %v4149 = vpop.f32.mrf.mxu0
          %4150 = vmatprep.mubr.f32.mxu0 0.0
          %4151 = vmatmul.mubr.f32.gmra.mxu0 %v3971
          %v4152 = vpop.f32.mrf.mxu0
          %v4153 = vadd.f32 0.0, %v4152
          %v4154 = vpop.f32.mrf.mxu0
          %4155 = vmatprep.mubr.f32.mxu0 0.0
          %4156 = vmatmul.mubr.f32.gmra.mxu0 %v3972
          %v4157 = vpop.f32.mrf.mxu0
          %v4158 = vadd.f32 0.0, %v4157
          %v4159 = vpop.f32.mrf.mxu0
          %4160 = vmatprep.mubr.f32.mxu0 0.0
          %4161 = vmatmul.mubr.f32.gmra.mxu0 %v3973
          %v4162 = vpop.f32.mrf.mxu0
          %v4163 = vadd.f32 0.0, %v4162
          %v4164 = vpop.f32.mrf.mxu0
          %4165 = vmatprep.mubr.f32.mxu0 0.0
          %4166 = vmatmul.mubr.f32.gmra.mxu0 %v3974
          %v4167 = vpop.f32.mrf.mxu0
          %v4168 = vadd.f32 0.0, %v4167
          %v4169 = vpop.f32.mrf.mxu0
          %4170 = vmatprep.mubr.f32.mxu0 0.0
          %4171 = vmatmul.mubr.f32.gmra.mxu0 %v3975
          %v4172 = vpop.f32.mrf.mxu0
          %v4173 = vadd.f32 0.0, %v4172
          %v4174 = vpop.f32.mrf.mxu0
          %4175 = vmatprep.mubr.f32.mxu0 0.0
          %4176 = vmatmul.mubr.f32.gmra.mxu0 %v3976
          %v4177 = vpop.f32.mrf.mxu0
          %v4178 = vadd.f32 0.0, %v4177
          %v4179 = vpop.f32.mrf.mxu0
          %4180 = vdwg.mxu0
          %v4181 = vadd.f32 %v3929, %v4063
          %v4182 = vadd.f32 %v3930, %v4068
          %v4183 = vadd.f32 %v3931, %v4073
          %v4184 = vadd.f32 %v3932, %v4078
          %v4185 = vadd.f32 %v3933, %v4083
          %v4186 = vadd.f32 %v3934, %v4088
          %v4187 = vadd.f32 %v3935, %v4093
          %v4188 = vadd.f32 %v3936, %v4098
          %v4189 = vadd.f32 %v3937, %v4103
          %v4190 = vadd.f32 %v3938, %v4108
          %v4191 = vadd.f32 %v3939, %v4113
          %v4192 = vadd.f32 %v3940, %v4118
          %v4193 = vadd.f32 %v3941, %v4123
          %v4194 = vadd.f32 %v3942, %v4128
          %v4195 = vadd.f32 %v3943, %v4133
          %v4196 = vadd.f32 %v3944, %v4138
          %v4197 = vadd.f32 %v3945, %v4143
          %v4198 = vadd.f32 %v3946, %v4148
          %v4199 = vadd.f32 %v3947, %v4153
          %v4200 = vadd.f32 %v3948, %v4158
          %v4201 = vadd.f32 %v3949, %v4163
          %v4202 = vadd.f32 %v3950, %v4168
          %v4203 = vadd.f32 %v3951, %v4173
          %v4204 = vadd.f32 %v3952, %v4178
          %v4205 = vld [vmem:[#allocation3 + $0x90] sm:$0xff]
          %v4206 = vld [vmem:[#allocation3 + $0x98] sm:$0xff]
          %v4207 = vld [vmem:[#allocation3 + $0xa0] sm:$0xff]
          %v4208 = vld [vmem:[#allocation3 + $0xa8] sm:$0xff]
          %v4209 = vld [vmem:[#allocation3 + $0xb0] sm:$0xff]
          %v4210 = vld [vmem:[#allocation3 + $0xb8] sm:$0xff]
          %v4211 = vld [vmem:[#allocation3 + $0xc0] sm:$0xff]
          %v4212 = vld [vmem:[#allocation3 + $0xc8] sm:$0xff]
          %v4213 = vld [vmem:[#allocation3 + $0xd0] sm:$0xff]
          %v4214 = vld [vmem:[#allocation3 + $0xd8] sm:$0xff]
          %v4215 = vld [vmem:[#allocation3 + $0xe0] sm:$0xff]
          %v4216 = vld [vmem:[#allocation3 + $0xe8] sm:$0xff]
          %v4217 = vld [vmem:[#allocation3 + $0xf0] sm:$0xff]
          %v4218 = vld [vmem:[#allocation3 + $0xf8] sm:$0xff]
          %v4219 = vld [vmem:[#allocation3 + $0x100] sm:$0xff]
          %v4220 = vld [vmem:[#allocation3 + $0x108] sm:$0xff]
          %v4221 = vld [vmem:[#allocation3 + $0x110] sm:$0xff]
          %v4222 = vld [vmem:[#allocation3 + $0x118] sm:$0xff]
          %v4223 = vld [vmem:[#allocation3 + $0x120] sm:$0xff]
          %v4224 = vld [vmem:[#allocation3 + $0x128] sm:$0xff]
          %v4225 = vld [vmem:[#allocation3 + $0x130] sm:$0xff]
          %v4226 = vld [vmem:[#allocation3 + $0x138] sm:$0xff]
          %v4227 = vld [vmem:[#allocation3 + $0x140] sm:$0xff]
          %v4228 = vld [vmem:[#allocation3 + $0x148] sm:$0xff]
          %s4229 = sadd.s32 %s2556, 6
          %s4230 = smul.u32 %s4229, 128
          %s4231 = scalar_lea.vmem [#allocation12], %s4230
          %v4232 = vld [vmem:[%s4231] sm:$0xff]
          %v4233 = vld [vmem:[%s4231 + $0x8] sm:$0xff]
          %v4234 = vld [vmem:[%s4231 + $0x10] sm:$0xff]
          %v4235 = vld [vmem:[%s4231 + $0x18] sm:$0xff]
          %v4236 = vld [vmem:[%s4231 + $0x20] sm:$0xff]
          %v4237 = vld [vmem:[%s4231 + $0x28] sm:$0xff]
          %v4238 = vld [vmem:[%s4231 + $0x30] sm:$0xff]
          %v4239 = vld [vmem:[%s4231 + $0x38] sm:$0xff]
          %v4240 = vld [vmem:[%s4231 + $0x40] sm:$0xff]
          %v4241 = vld [vmem:[%s4231 + $0x48] sm:$0xff]
          %v4242 = vld [vmem:[%s4231 + $0x50] sm:$0xff]
          %v4243 = vld [vmem:[%s4231 + $0x58] sm:$0xff]
          %v4244 = vld [vmem:[%s4231 + $0x60] sm:$0xff]
          %v4245 = vld [vmem:[%s4231 + $0x68] sm:$0xff]
          %v4246 = vld [vmem:[%s4231 + $0x70] sm:$0xff]
          %v4247 = vld [vmem:[%s4231 + $0x78] sm:$0xff]
          %4248 = vmatprep.subr.mxu0 0.0
          %4249 = vmatpush1.msra.mxu0 %v4247
          %4250 = vmatprep.subr.mxu0 0.0
          %4251 = vmatpush1.msra.mxu0 %v4246
          %4252 = vmatprep.subr.mxu0 0.0
          %4253 = vmatpush1.msra.mxu0 %v4245
          %4254 = vmatprep.subr.mxu0 0.0
          %4255 = vmatpush1.msra.mxu0 %v4244
          %4256 = vmatprep.subr.mxu0 0.0
          %4257 = vmatpush1.msra.mxu0 %v4243
          %4258 = vmatprep.subr.mxu0 0.0
          %4259 = vmatpush1.msra.mxu0 %v4242
          %4260 = vmatprep.subr.mxu0 0.0
          %4261 = vmatpush1.msra.mxu0 %v4241
          %4262 = vmatprep.subr.mxu0 0.0
          %4263 = vmatpush1.msra.mxu0 %v4240
          %4264 = vmatprep.subr.mxu0 0.0
          %4265 = vmatpush1.msra.mxu0 %v4239
          %4266 = vmatprep.subr.mxu0 0.0
          %4267 = vmatpush1.msra.mxu0 %v4238
          %4268 = vmatprep.subr.mxu0 0.0
          %4269 = vmatpush1.msra.mxu0 %v4237
          %4270 = vmatprep.subr.mxu0 0.0
          %4271 = vmatpush1.msra.mxu0 %v4236
          %4272 = vmatprep.subr.mxu0 0.0
          %4273 = vmatpush1.msra.mxu0 %v4235
          %4274 = vmatprep.subr.mxu0 0.0
          %4275 = vmatpush1.msra.mxu0 %v4234
          %4276 = vmatprep.subr.mxu0 0.0
          %4277 = vmatpush1.msra.mxu0 %v4233
          %4278 = vmatprep.subr.mxu0 0.0
          %4279 = vmatpush1.msra.mxu0 %v4232
          %4280 = vmatprep.subr.mxu0 0.0
          %4281 = vmatpush2.msra.mxu0 0.0
          %4282 = vmatprep.subr.mxu0 0.0
          %4283 = vmatpush2.msra.mxu0 0.0
          %4284 = vmatprep.subr.mxu0 0.0
          %4285 = vmatpush2.msra.mxu0 0.0
          %4286 = vmatprep.subr.mxu0 0.0
          %4287 = vmatpush2.msra.mxu0 0.0
          %4288 = vmatprep.subr.mxu0 0.0
          %4289 = vmatpush2.msra.mxu0 0.0
          %4290 = vmatprep.subr.mxu0 0.0
          %4291 = vmatpush2.msra.mxu0 0.0
          %4292 = vmatprep.subr.mxu0 0.0
          %4293 = vmatpush2.msra.mxu0 0.0
          %4294 = vmatprep.subr.mxu0 0.0
          %4295 = vmatpush2.msra.mxu0 0.0
          %4296 = vmatprep.subr.mxu0 0.0
          %4297 = vmatpush2.msra.mxu0 0.0
          %4298 = vmatprep.subr.mxu0 0.0
          %4299 = vmatpush2.msra.mxu0 0.0
          %4300 = vmatprep.subr.mxu0 0.0
          %4301 = vmatpush2.msra.mxu0 0.0
          %4302 = vmatprep.subr.mxu0 0.0
          %4303 = vmatpush2.msra.mxu0 0.0
          %4304 = vmatprep.subr.mxu0 0.0
          %4305 = vmatpush2.msra.mxu0 0.0
          %4306 = vmatprep.subr.mxu0 0.0
          %4307 = vmatpush2.msra.mxu0 0.0
          %4308 = vmatprep.subr.mxu0 0.0
          %4309 = vmatpush2.msra.mxu0 0.0
          %4310 = vmatprep.subr.mxu0 0.0
          %4311 = vmatpush2.msra.mxu0 0.0
          %4312 = vmatprep.mubr.f32.mxu0 0.0
          %4313 = vmatmul.mubr.f32.gmra.mxu0 %v4205
          %v4314 = vpop.f32.mrf.mxu0
          %v4315 = vadd.f32 0.0, %v4314
          %v4316 = vpop.f32.mrf.mxu0
          %4317 = vmatprep.mubr.f32.mxu0 0.0
          %4318 = vmatmul.mubr.f32.gmra.mxu0 %v4206
          %v4319 = vpop.f32.mrf.mxu0
          %v4320 = vadd.f32 0.0, %v4319
          %v4321 = vpop.f32.mrf.mxu0
          %4322 = vmatprep.mubr.f32.mxu0 0.0
          %4323 = vmatmul.mubr.f32.gmra.mxu0 %v4207
          %v4324 = vpop.f32.mrf.mxu0
          %v4325 = vadd.f32 0.0, %v4324
          %v4326 = vpop.f32.mrf.mxu0
          %4327 = vmatprep.mubr.f32.mxu0 0.0
          %4328 = vmatmul.mubr.f32.gmra.mxu0 %v4208
          %v4329 = vpop.f32.mrf.mxu0
          %v4330 = vadd.f32 0.0, %v4329
          %v4331 = vpop.f32.mrf.mxu0
          %4332 = vmatprep.mubr.f32.mxu0 0.0
          %4333 = vmatmul.mubr.f32.gmra.mxu0 %v4209
          %v4334 = vpop.f32.mrf.mxu0
          %v4335 = vadd.f32 0.0, %v4334
          %v4336 = vpop.f32.mrf.mxu0
          %4337 = vmatprep.mubr.f32.mxu0 0.0
          %4338 = vmatmul.mubr.f32.gmra.mxu0 %v4210
          %v4339 = vpop.f32.mrf.mxu0
          %v4340 = vadd.f32 0.0, %v4339
          %v4341 = vpop.f32.mrf.mxu0
          %4342 = vmatprep.mubr.f32.mxu0 0.0
          %4343 = vmatmul.mubr.f32.gmra.mxu0 %v4211
          %v4344 = vpop.f32.mrf.mxu0
          %v4345 = vadd.f32 0.0, %v4344
          %v4346 = vpop.f32.mrf.mxu0
          %4347 = vmatprep.mubr.f32.mxu0 0.0
          %4348 = vmatmul.mubr.f32.gmra.mxu0 %v4212
          %v4349 = vpop.f32.mrf.mxu0
          %v4350 = vadd.f32 0.0, %v4349
          %v4351 = vpop.f32.mrf.mxu0
          %4352 = vmatprep.mubr.f32.mxu0 0.0
          %4353 = vmatmul.mubr.f32.gmra.mxu0 %v4213
          %v4354 = vpop.f32.mrf.mxu0
          %v4355 = vadd.f32 0.0, %v4354
          %v4356 = vpop.f32.mrf.mxu0
          %4357 = vmatprep.mubr.f32.mxu0 0.0
          %4358 = vmatmul.mubr.f32.gmra.mxu0 %v4214
          %v4359 = vpop.f32.mrf.mxu0
          %v4360 = vadd.f32 0.0, %v4359
          %v4361 = vpop.f32.mrf.mxu0
          %4362 = vmatprep.mubr.f32.mxu0 0.0
          %4363 = vmatmul.mubr.f32.gmra.mxu0 %v4215
          %v4364 = vpop.f32.mrf.mxu0
          %v4365 = vadd.f32 0.0, %v4364
          %v4366 = vpop.f32.mrf.mxu0
          %4367 = vmatprep.mubr.f32.mxu0 0.0
          %4368 = vmatmul.mubr.f32.gmra.mxu0 %v4216
          %v4369 = vpop.f32.mrf.mxu0
          %v4370 = vadd.f32 0.0, %v4369
          %v4371 = vpop.f32.mrf.mxu0
          %4372 = vmatprep.mubr.f32.mxu0 0.0
          %4373 = vmatmul.mubr.f32.gmra.mxu0 %v4217
          %v4374 = vpop.f32.mrf.mxu0
          %v4375 = vadd.f32 0.0, %v4374
          %v4376 = vpop.f32.mrf.mxu0
          %4377 = vmatprep.mubr.f32.mxu0 0.0
          %4378 = vmatmul.mubr.f32.gmra.mxu0 %v4218
          %v4379 = vpop.f32.mrf.mxu0
          %v4380 = vadd.f32 0.0, %v4379
          %v4381 = vpop.f32.mrf.mxu0
          %4382 = vmatprep.mubr.f32.mxu0 0.0
          %4383 = vmatmul.mubr.f32.gmra.mxu0 %v4219
          %v4384 = vpop.f32.mrf.mxu0
          %v4385 = vadd.f32 0.0, %v4384
          %v4386 = vpop.f32.mrf.mxu0
          %4387 = vmatprep.mubr.f32.mxu0 0.0
          %4388 = vmatmul.mubr.f32.gmra.mxu0 %v4220
          %v4389 = vpop.f32.mrf.mxu0
          %v4390 = vadd.f32 0.0, %v4389
          %v4391 = vpop.f32.mrf.mxu0
          %4392 = vmatprep.mubr.f32.mxu0 0.0
          %4393 = vmatmul.mubr.f32.gmra.mxu0 %v4221
          %v4394 = vpop.f32.mrf.mxu0
          %v4395 = vadd.f32 0.0, %v4394
          %v4396 = vpop.f32.mrf.mxu0
          %4397 = vmatprep.mubr.f32.mxu0 0.0
          %4398 = vmatmul.mubr.f32.gmra.mxu0 %v4222
          %v4399 = vpop.f32.mrf.mxu0
          %v4400 = vadd.f32 0.0, %v4399
          %v4401 = vpop.f32.mrf.mxu0
          %4402 = vmatprep.mubr.f32.mxu0 0.0
          %4403 = vmatmul.mubr.f32.gmra.mxu0 %v4223
          %v4404 = vpop.f32.mrf.mxu0
          %v4405 = vadd.f32 0.0, %v4404
          %v4406 = vpop.f32.mrf.mxu0
          %4407 = vmatprep.mubr.f32.mxu0 0.0
          %4408 = vmatmul.mubr.f32.gmra.mxu0 %v4224
          %v4409 = vpop.f32.mrf.mxu0
          %v4410 = vadd.f32 0.0, %v4409
          %v4411 = vpop.f32.mrf.mxu0
          %4412 = vmatprep.mubr.f32.mxu0 0.0
          %4413 = vmatmul.mubr.f32.gmra.mxu0 %v4225
          %v4414 = vpop.f32.mrf.mxu0
          %v4415 = vadd.f32 0.0, %v4414
          %v4416 = vpop.f32.mrf.mxu0
          %4417 = vmatprep.mubr.f32.mxu0 0.0
          %4418 = vmatmul.mubr.f32.gmra.mxu0 %v4226
          %v4419 = vpop.f32.mrf.mxu0
          %v4420 = vadd.f32 0.0, %v4419
          %v4421 = vpop.f32.mrf.mxu0
          %4422 = vmatprep.mubr.f32.mxu0 0.0
          %4423 = vmatmul.mubr.f32.gmra.mxu0 %v4227
          %v4424 = vpop.f32.mrf.mxu0
          %v4425 = vadd.f32 0.0, %v4424
          %v4426 = vpop.f32.mrf.mxu0
          %4427 = vmatprep.mubr.f32.mxu0 0.0
          %4428 = vmatmul.mubr.f32.gmra.mxu0 %v4228
          %v4429 = vpop.f32.mrf.mxu0
          %v4430 = vadd.f32 0.0, %v4429
          %v4431 = vpop.f32.mrf.mxu0
          %4432 = vdwg.mxu0
          %v4433 = vadd.f32 %v4181, %v4315
          %v4434 = vadd.f32 %v4182, %v4320
          %v4435 = vadd.f32 %v4183, %v4325
          %v4436 = vadd.f32 %v4184, %v4330
          %v4437 = vadd.f32 %v4185, %v4335
          %v4438 = vadd.f32 %v4186, %v4340
          %v4439 = vadd.f32 %v4187, %v4345
          %v4440 = vadd.f32 %v4188, %v4350
          %v4441 = vadd.f32 %v4189, %v4355
          %v4442 = vadd.f32 %v4190, %v4360
          %v4443 = vadd.f32 %v4191, %v4365
          %v4444 = vadd.f32 %v4192, %v4370
          %v4445 = vadd.f32 %v4193, %v4375
          %v4446 = vadd.f32 %v4194, %v4380
          %v4447 = vadd.f32 %v4195, %v4385
          %v4448 = vadd.f32 %v4196, %v4390
          %v4449 = vadd.f32 %v4197, %v4395
          %v4450 = vadd.f32 %v4198, %v4400
          %v4451 = vadd.f32 %v4199, %v4405
          %v4452 = vadd.f32 %v4200, %v4410
          %v4453 = vadd.f32 %v4201, %v4415
          %v4454 = vadd.f32 %v4202, %v4420
          %v4455 = vadd.f32 %v4203, %v4425
          %v4456 = vadd.f32 %v4204, %v4430
          %v4457 = vld [vmem:[#allocation3 + $0xa8] sm:$0xff]
          %v4458 = vld [vmem:[#allocation3 + $0xb0] sm:$0xff]
          %v4459 = vld [vmem:[#allocation3 + $0xb8] sm:$0xff]
          %v4460 = vld [vmem:[#allocation3 + $0xc0] sm:$0xff]
          %v4461 = vld [vmem:[#allocation3 + $0xc8] sm:$0xff]
          %v4462 = vld [vmem:[#allocation3 + $0xd0] sm:$0xff]
          %v4463 = vld [vmem:[#allocation3 + $0xd8] sm:$0xff]
          %v4464 = vld [vmem:[#allocation3 + $0xe0] sm:$0xff]
          %v4465 = vld [vmem:[#allocation3 + $0xe8] sm:$0xff]
          %v4466 = vld [vmem:[#allocation3 + $0xf0] sm:$0xff]
          %v4467 = vld [vmem:[#allocation3 + $0xf8] sm:$0xff]
          %v4468 = vld [vmem:[#allocation3 + $0x100] sm:$0xff]
          %v4469 = vld [vmem:[#allocation3 + $0x108] sm:$0xff]
          %v4470 = vld [vmem:[#allocation3 + $0x110] sm:$0xff]
          %v4471 = vld [vmem:[#allocation3 + $0x118] sm:$0xff]
          %v4472 = vld [vmem:[#allocation3 + $0x120] sm:$0xff]
          %v4473 = vld [vmem:[#allocation3 + $0x128] sm:$0xff]
          %v4474 = vld [vmem:[#allocation3 + $0x130] sm:$0xff]
          %v4475 = vld [vmem:[#allocation3 + $0x138] sm:$0xff]
          %v4476 = vld [vmem:[#allocation3 + $0x140] sm:$0xff]
          %v4477 = vld [vmem:[#allocation3 + $0x148] sm:$0xff]
          %v4478 = vld [vmem:[#allocation3 + $0x150] sm:$0xff]
          %v4479 = vld [vmem:[#allocation3 + $0x158] sm:$0xff]
          %v4480 = vld [vmem:[#allocation3 + $0x160] sm:$0xff]
          %s4481 = sadd.s32 %s2556, 7
          %s4482 = smul.u32 %s4481, 128
          %s4483 = scalar_lea.vmem [#allocation12], %s4482
          %v4484 = vld [vmem:[%s4483] sm:$0xff]
          %v4485 = vld [vmem:[%s4483 + $0x8] sm:$0xff]
          %v4486 = vld [vmem:[%s4483 + $0x10] sm:$0xff]
          %v4487 = vld [vmem:[%s4483 + $0x18] sm:$0xff]
          %v4488 = vld [vmem:[%s4483 + $0x20] sm:$0xff]
          %v4489 = vld [vmem:[%s4483 + $0x28] sm:$0xff]
          %v4490 = vld [vmem:[%s4483 + $0x30] sm:$0xff]
          %v4491 = vld [vmem:[%s4483 + $0x38] sm:$0xff]
          %v4492 = vld [vmem:[%s4483 + $0x40] sm:$0xff]
          %v4493 = vld [vmem:[%s4483 + $0x48] sm:$0xff]
          %v4494 = vld [vmem:[%s4483 + $0x50] sm:$0xff]
          %v4495 = vld [vmem:[%s4483 + $0x58] sm:$0xff]
          %v4496 = vld [vmem:[%s4483 + $0x60] sm:$0xff]
          %v4497 = vld [vmem:[%s4483 + $0x68] sm:$0xff]
          %v4498 = vld [vmem:[%s4483 + $0x70] sm:$0xff]
          %v4499 = vld [vmem:[%s4483 + $0x78] sm:$0xff]
          %4500 = vmatprep.subr.mxu0 0.0
          %4501 = vmatpush1.msra.mxu0 %v4499
          %4502 = vmatprep.subr.mxu0 0.0
          %4503 = vmatpush1.msra.mxu0 %v4498
          %4504 = vmatprep.subr.mxu0 0.0
          %4505 = vmatpush1.msra.mxu0 %v4497
          %4506 = vmatprep.subr.mxu0 0.0
          %4507 = vmatpush1.msra.mxu0 %v4496
          %4508 = vmatprep.subr.mxu0 0.0
          %4509 = vmatpush1.msra.mxu0 %v4495
          %4510 = vmatprep.subr.mxu0 0.0
          %4511 = vmatpush1.msra.mxu0 %v4494
          %4512 = vmatprep.subr.mxu0 0.0
          %4513 = vmatpush1.msra.mxu0 %v4493
          %4514 = vmatprep.subr.mxu0 0.0
          %4515 = vmatpush1.msra.mxu0 %v4492
          %4516 = vmatprep.subr.mxu0 0.0
          %4517 = vmatpush1.msra.mxu0 %v4491
          %4518 = vmatprep.subr.mxu0 0.0
          %4519 = vmatpush1.msra.mxu0 %v4490
          %4520 = vmatprep.subr.mxu0 0.0
          %4521 = vmatpush1.msra.mxu0 %v4489
          %4522 = vmatprep.subr.mxu0 0.0
          %4523 = vmatpush1.msra.mxu0 %v4488
          %4524 = vmatprep.subr.mxu0 0.0
          %4525 = vmatpush1.msra.mxu0 %v4487
          %4526 = vmatprep.subr.mxu0 0.0
          %4527 = vmatpush1.msra.mxu0 %v4486
          %4528 = vmatprep.subr.mxu0 0.0
          %4529 = vmatpush1.msra.mxu0 %v4485
          %4530 = vmatprep.subr.mxu0 0.0
          %4531 = vmatpush1.msra.mxu0 %v4484
          %4532 = vmatprep.subr.mxu0 0.0
          %4533 = vmatpush2.msra.mxu0 0.0
          %4534 = vmatprep.subr.mxu0 0.0
          %4535 = vmatpush2.msra.mxu0 0.0
          %4536 = vmatprep.subr.mxu0 0.0
          %4537 = vmatpush2.msra.mxu0 0.0
          %4538 = vmatprep.subr.mxu0 0.0
          %4539 = vmatpush2.msra.mxu0 0.0
          %4540 = vmatprep.subr.mxu0 0.0
          %4541 = vmatpush2.msra.mxu0 0.0
          %4542 = vmatprep.subr.mxu0 0.0
          %4543 = vmatpush2.msra.mxu0 0.0
          %4544 = vmatprep.subr.mxu0 0.0
          %4545 = vmatpush2.msra.mxu0 0.0
          %4546 = vmatprep.subr.mxu0 0.0
          %4547 = vmatpush2.msra.mxu0 0.0
          %4548 = vmatprep.subr.mxu0 0.0
          %4549 = vmatpush2.msra.mxu0 0.0
          %4550 = vmatprep.subr.mxu0 0.0
          %4551 = vmatpush2.msra.mxu0 0.0
          %4552 = vmatprep.subr.mxu0 0.0
          %4553 = vmatpush2.msra.mxu0 0.0
          %4554 = vmatprep.subr.mxu0 0.0
          %4555 = vmatpush2.msra.mxu0 0.0
          %4556 = vmatprep.subr.mxu0 0.0
          %4557 = vmatpush2.msra.mxu0 0.0
          %4558 = vmatprep.subr.mxu0 0.0
          %4559 = vmatpush2.msra.mxu0 0.0
          %4560 = vmatprep.subr.mxu0 0.0
          %4561 = vmatpush2.msra.mxu0 0.0
          %4562 = vmatprep.subr.mxu0 0.0
          %4563 = vmatpush2.msra.mxu0 0.0
          %4564 = vmatprep.mubr.f32.mxu0 0.0
          %4565 = vmatmul.mubr.f32.gmra.mxu0 %v4457
          %v4566 = vpop.f32.mrf.mxu0
          %v4567 = vadd.f32 0.0, %v4566
          %v4568 = vpop.f32.mrf.mxu0
          %4569 = vmatprep.mubr.f32.mxu0 0.0
          %4570 = vmatmul.mubr.f32.gmra.mxu0 %v4458
          %v4571 = vpop.f32.mrf.mxu0
          %v4572 = vadd.f32 0.0, %v4571
          %v4573 = vpop.f32.mrf.mxu0
          %4574 = vmatprep.mubr.f32.mxu0 0.0
          %4575 = vmatmul.mubr.f32.gmra.mxu0 %v4459
          %v4576 = vpop.f32.mrf.mxu0
          %v4577 = vadd.f32 0.0, %v4576
          %v4578 = vpop.f32.mrf.mxu0
          %4579 = vmatprep.mubr.f32.mxu0 0.0
          %4580 = vmatmul.mubr.f32.gmra.mxu0 %v4460
          %v4581 = vpop.f32.mrf.mxu0
          %v4582 = vadd.f32 0.0, %v4581
          %v4583 = vpop.f32.mrf.mxu0
          %4584 = vmatprep.mubr.f32.mxu0 0.0
          %4585 = vmatmul.mubr.f32.gmra.mxu0 %v4461
          %v4586 = vpop.f32.mrf.mxu0
          %v4587 = vadd.f32 0.0, %v4586
          %v4588 = vpop.f32.mrf.mxu0
          %4589 = vmatprep.mubr.f32.mxu0 0.0
          %4590 = vmatmul.mubr.f32.gmra.mxu0 %v4462
          %v4591 = vpop.f32.mrf.mxu0
          %v4592 = vadd.f32 0.0, %v4591
          %v4593 = vpop.f32.mrf.mxu0
          %4594 = vmatprep.mubr.f32.mxu0 0.0
          %4595 = vmatmul.mubr.f32.gmra.mxu0 %v4463
          %v4596 = vpop.f32.mrf.mxu0
          %v4597 = vadd.f32 0.0, %v4596
          %v4598 = vpop.f32.mrf.mxu0
          %4599 = vmatprep.mubr.f32.mxu0 0.0
          %4600 = vmatmul.mubr.f32.gmra.mxu0 %v4464
          %v4601 = vpop.f32.mrf.mxu0
          %v4602 = vadd.f32 0.0, %v4601
          %v4603 = vpop.f32.mrf.mxu0
          %4604 = vmatprep.mubr.f32.mxu0 0.0
          %4605 = vmatmul.mubr.f32.gmra.mxu0 %v4465
          %v4606 = vpop.f32.mrf.mxu0
          %v4607 = vadd.f32 0.0, %v4606
          %v4608 = vpop.f32.mrf.mxu0
          %4609 = vmatprep.mubr.f32.mxu0 0.0
          %4610 = vmatmul.mubr.f32.gmra.mxu0 %v4466
          %v4611 = vpop.f32.mrf.mxu0
          %v4612 = vadd.f32 0.0, %v4611
          %v4613 = vpop.f32.mrf.mxu0
          %4614 = vmatprep.mubr.f32.mxu0 0.0
          %4615 = vmatmul.mubr.f32.gmra.mxu0 %v4467
          %v4616 = vpop.f32.mrf.mxu0
          %v4617 = vadd.f32 0.0, %v4616
          %v4618 = vpop.f32.mrf.mxu0
          %4619 = vmatprep.mubr.f32.mxu0 0.0
          %4620 = vmatmul.mubr.f32.gmra.mxu0 %v4468
          %v4621 = vpop.f32.mrf.mxu0
          %v4622 = vadd.f32 0.0, %v4621
          %v4623 = vpop.f32.mrf.mxu0
          %4624 = vmatprep.mubr.f32.mxu0 0.0
          %4625 = vmatmul.mubr.f32.gmra.mxu0 %v4469
          %v4626 = vpop.f32.mrf.mxu0
          %v4627 = vadd.f32 0.0, %v4626
          %v4628 = vpop.f32.mrf.mxu0
          %4629 = vmatprep.mubr.f32.mxu0 0.0
          %4630 = vmatmul.mubr.f32.gmra.mxu0 %v4470
          %v4631 = vpop.f32.mrf.mxu0
          %v4632 = vadd.f32 0.0, %v4631
          %v4633 = vpop.f32.mrf.mxu0
          %4634 = vmatprep.mubr.f32.mxu0 0.0
          %4635 = vmatmul.mubr.f32.gmra.mxu0 %v4471
          %v4636 = vpop.f32.mrf.mxu0
          %v4637 = vadd.f32 0.0, %v4636
          %v4638 = vpop.f32.mrf.mxu0
          %4639 = vmatprep.mubr.f32.mxu0 0.0
          %4640 = vmatmul.mubr.f32.gmra.mxu0 %v4472
          %v4641 = vpop.f32.mrf.mxu0
          %v4642 = vadd.f32 0.0, %v4641
          %v4643 = vpop.f32.mrf.mxu0
          %4644 = vmatprep.mubr.f32.mxu0 0.0
          %4645 = vmatmul.mubr.f32.gmra.mxu0 %v4473
          %v4646 = vpop.f32.mrf.mxu0
          %v4647 = vadd.f32 0.0, %v4646
          %v4648 = vpop.f32.mrf.mxu0
          %4649 = vmatprep.mubr.f32.mxu0 0.0
          %4650 = vmatmul.mubr.f32.gmra.mxu0 %v4474
          %v4651 = vpop.f32.mrf.mxu0
          %v4652 = vadd.f32 0.0, %v4651
          %v4653 = vpop.f32.mrf.mxu0
          %4654 = vmatprep.mubr.f32.mxu0 0.0
          %4655 = vmatmul.mubr.f32.gmra.mxu0 %v4475
          %v4656 = vpop.f32.mrf.mxu0
          %v4657 = vadd.f32 0.0, %v4656
          %v4658 = vpop.f32.mrf.mxu0
          %4659 = vmatprep.mubr.f32.mxu0 0.0
          %4660 = vmatmul.mubr.f32.gmra.mxu0 %v4476
          %v4661 = vpop.f32.mrf.mxu0
          %v4662 = vadd.f32 0.0, %v4661
          %v4663 = vpop.f32.mrf.mxu0
          %4664 = vmatprep.mubr.f32.mxu0 0.0
          %4665 = vmatmul.mubr.f32.gmra.mxu0 %v4477
          %v4666 = vpop.f32.mrf.mxu0
          %v4667 = vadd.f32 0.0, %v4666
          %v4668 = vpop.f32.mrf.mxu0
          %4669 = vmatprep.mubr.f32.mxu0 0.0
          %4670 = vmatmul.mubr.f32.gmra.mxu0 %v4478
          %v4671 = vpop.f32.mrf.mxu0
          %v4672 = vadd.f32 0.0, %v4671
          %v4673 = vpop.f32.mrf.mxu0
          %4674 = vmatprep.mubr.f32.mxu0 0.0
          %4675 = vmatmul.mubr.f32.gmra.mxu0 %v4479
          %v4676 = vpop.f32.mrf.mxu0
          %v4677 = vadd.f32 0.0, %v4676
          %v4678 = vpop.f32.mrf.mxu0
          %4679 = vmatprep.mubr.f32.mxu0 0.0
          %4680 = vmatmul.mubr.f32.gmra.mxu0 %v4480
          %v4681 = vpop.f32.mrf.mxu0
          %v4682 = vadd.f32 0.0, %v4681
          %v4683 = vpop.f32.mrf.mxu0
          %4684 = vdwg.mxu0
          %v4685 = vadd.f32 %v4433, %v4567
          %v4686 = vadd.f32 %v4434, %v4572
          %v4687 = vadd.f32 %v4435, %v4577
          %v4688 = vadd.f32 %v4436, %v4582
          %v4689 = vadd.f32 %v4437, %v4587
          %v4690 = vadd.f32 %v4438, %v4592
          %v4691 = vadd.f32 %v4439, %v4597
          %v4692 = vadd.f32 %v4440, %v4602
          %v4693 = vadd.f32 %v4441, %v4607
          %v4694 = vadd.f32 %v4442, %v4612
          %v4695 = vadd.f32 %v4443, %v4617
          %v4696 = vadd.f32 %v4444, %v4622
          %v4697 = vadd.f32 %v4445, %v4627
          %v4698 = vadd.f32 %v4446, %v4632
          %v4699 = vadd.f32 %v4447, %v4637
          %v4700 = vadd.f32 %v4448, %v4642
          %v4701 = vadd.f32 %v4449, %v4647
          %v4702 = vadd.f32 %v4450, %v4652
          %v4703 = vadd.f32 %v4451, %v4657
          %v4704 = vadd.f32 %v4452, %v4662
          %v4705 = vadd.f32 %v4453, %v4667
          %v4706 = vadd.f32 %v4454, %v4672
          %v4707 = vadd.f32 %v4455, %v4677
          %v4708 = vadd.f32 %v4456, %v4682
          %v4709 = vld [vmem:[#allocation3 + $0xc0] sm:$0xff]
          %v4710 = vld [vmem:[#allocation3 + $0xc8] sm:$0xff]
          %v4711 = vld [vmem:[#allocation3 + $0xd0] sm:$0xff]
          %v4712 = vld [vmem:[#allocation3 + $0xd8] sm:$0xff]
          %v4713 = vld [vmem:[#allocation3 + $0xe0] sm:$0xff]
          %v4714 = vld [vmem:[#allocation3 + $0xe8] sm:$0xff]
          %v4715 = vld [vmem:[#allocation3 + $0xf0] sm:$0xff]
          %v4716 = vld [vmem:[#allocation3 + $0xf8] sm:$0xff]
          %v4717 = vld [vmem:[#allocation3 + $0x100] sm:$0xff]
          %v4718 = vld [vmem:[#allocation3 + $0x108] sm:$0xff]
          %v4719 = vld [vmem:[#allocation3 + $0x110] sm:$0xff]
          %v4720 = vld [vmem:[#allocation3 + $0x118] sm:$0xff]
          %v4721 = vld [vmem:[#allocation3 + $0x120] sm:$0xff]
          %v4722 = vld [vmem:[#allocation3 + $0x128] sm:$0xff]
          %v4723 = vld [vmem:[#allocation3 + $0x130] sm:$0xff]
          %v4724 = vld [vmem:[#allocation3 + $0x138] sm:$0xff]
          %v4725 = vld [vmem:[#allocation3 + $0x140] sm:$0xff]
          %v4726 = vld [vmem:[#allocation3 + $0x148] sm:$0xff]
          %v4727 = vld [vmem:[#allocation3 + $0x150] sm:$0xff]
          %v4728 = vld [vmem:[#allocation3 + $0x158] sm:$0xff]
          %v4729 = vld [vmem:[#allocation3 + $0x160] sm:$0xff]
          %v4730 = vld [vmem:[#allocation3 + $0x168] sm:$0xff]
          %v4731 = vld [vmem:[#allocation3 + $0x170] sm:$0xff]
          %v4732 = vld [vmem:[#allocation3 + $0x178] sm:$0xff]
          %s4733 = sadd.s32 %s2556, 8
          %s4734 = smul.u32 %s4733, 128
          %s4735 = scalar_lea.vmem [#allocation12], %s4734
          %v4736 = vld [vmem:[%s4735] sm:$0xff]
          %v4737 = vld [vmem:[%s4735 + $0x8] sm:$0xff]
          %v4738 = vld [vmem:[%s4735 + $0x10] sm:$0xff]
          %v4739 = vld [vmem:[%s4735 + $0x18] sm:$0xff]
          %v4740 = vld [vmem:[%s4735 + $0x20] sm:$0xff]
          %v4741 = vld [vmem:[%s4735 + $0x28] sm:$0xff]
          %v4742 = vld [vmem:[%s4735 + $0x30] sm:$0xff]
          %v4743 = vld [vmem:[%s4735 + $0x38] sm:$0xff]
          %v4744 = vld [vmem:[%s4735 + $0x40] sm:$0xff]
          %v4745 = vld [vmem:[%s4735 + $0x48] sm:$0xff]
          %v4746 = vld [vmem:[%s4735 + $0x50] sm:$0xff]
          %v4747 = vld [vmem:[%s4735 + $0x58] sm:$0xff]
          %v4748 = vld [vmem:[%s4735 + $0x60] sm:$0xff]
          %v4749 = vld [vmem:[%s4735 + $0x68] sm:$0xff]
          %v4750 = vld [vmem:[%s4735 + $0x70] sm:$0xff]
          %v4751 = vld [vmem:[%s4735 + $0x78] sm:$0xff]
          %4752 = vmatprep.subr.mxu0 0.0
          %4753 = vmatpush1.msra.mxu0 %v4751
          %4754 = vmatprep.subr.mxu0 0.0
          %4755 = vmatpush1.msra.mxu0 %v4750
          %4756 = vmatprep.subr.mxu0 0.0
          %4757 = vmatpush1.msra.mxu0 %v4749
          %4758 = vmatprep.subr.mxu0 0.0
          %4759 = vmatpush1.msra.mxu0 %v4748
          %4760 = vmatprep.subr.mxu0 0.0
          %4761 = vmatpush1.msra.mxu0 %v4747
          %4762 = vmatprep.subr.mxu0 0.0
          %4763 = vmatpush1.msra.mxu0 %v4746
          %4764 = vmatprep.subr.mxu0 0.0
          %4765 = vmatpush1.msra.mxu0 %v4745
          %4766 = vmatprep.subr.mxu0 0.0
          %4767 = vmatpush1.msra.mxu0 %v4744
          %4768 = vmatprep.subr.mxu0 0.0
          %4769 = vmatpush1.msra.mxu0 %v4743
          %4770 = vmatprep.subr.mxu0 0.0
          %4771 = vmatpush1.msra.mxu0 %v4742
          %4772 = vmatprep.subr.mxu0 0.0
          %4773 = vmatpush1.msra.mxu0 %v4741
          %4774 = vmatprep.subr.mxu0 0.0
          %4775 = vmatpush1.msra.mxu0 %v4740
          %4776 = vmatprep.subr.mxu0 0.0
          %4777 = vmatpush1.msra.mxu0 %v4739
          %4778 = vmatprep.subr.mxu0 0.0
          %4779 = vmatpush1.msra.mxu0 %v4738
          %4780 = vmatprep.subr.mxu0 0.0
          %4781 = vmatpush1.msra.mxu0 %v4737
          %4782 = vmatprep.subr.mxu0 0.0
          %4783 = vmatpush1.msra.mxu0 %v4736
          %4784 = vmatprep.subr.mxu0 0.0
          %4785 = vmatpush2.msra.mxu0 0.0
          %4786 = vmatprep.subr.mxu0 0.0
          %4787 = vmatpush2.msra.mxu0 0.0
          %4788 = vmatprep.subr.mxu0 0.0
          %4789 = vmatpush2.msra.mxu0 0.0
          %4790 = vmatprep.subr.mxu0 0.0
          %4791 = vmatpush2.msra.mxu0 0.0
          %4792 = vmatprep.subr.mxu0 0.0
          %4793 = vmatpush2.msra.mxu0 0.0
          %4794 = vmatprep.subr.mxu0 0.0
          %4795 = vmatpush2.msra.mxu0 0.0
          %4796 = vmatprep.subr.mxu0 0.0
          %4797 = vmatpush2.msra.mxu0 0.0
          %4798 = vmatprep.subr.mxu0 0.0
          %4799 = vmatpush2.msra.mxu0 0.0
          %4800 = vmatprep.subr.mxu0 0.0
          %4801 = vmatpush2.msra.mxu0 0.0
          %4802 = vmatprep.subr.mxu0 0.0
          %4803 = vmatpush2.msra.mxu0 0.0
          %4804 = vmatprep.subr.mxu0 0.0
          %4805 = vmatpush2.msra.mxu0 0.0
          %4806 = vmatprep.subr.mxu0 0.0
          %4807 = vmatpush2.msra.mxu0 0.0
          %4808 = vmatprep.subr.mxu0 0.0
          %4809 = vmatpush2.msra.mxu0 0.0
          %4810 = vmatprep.subr.mxu0 0.0
          %4811 = vmatpush2.msra.mxu0 0.0
          %4812 = vmatprep.subr.mxu0 0.0
          %4813 = vmatpush2.msra.mxu0 0.0
          %4814 = vmatprep.subr.mxu0 0.0
          %4815 = vmatpush2.msra.mxu0 0.0
          %4816 = vmatprep.mubr.f32.mxu0 0.0
          %4817 = vmatmul.mubr.f32.gmra.mxu0 %v4709
          %v4818 = vpop.f32.mrf.mxu0
          %v4819 = vadd.f32 0.0, %v4818
          %v4820 = vpop.f32.mrf.mxu0
          %4821 = vmatprep.mubr.f32.mxu0 0.0
          %4822 = vmatmul.mubr.f32.gmra.mxu0 %v4710
          %v4823 = vpop.f32.mrf.mxu0
          %v4824 = vadd.f32 0.0, %v4823
          %v4825 = vpop.f32.mrf.mxu0
          %4826 = vmatprep.mubr.f32.mxu0 0.0
          %4827 = vmatmul.mubr.f32.gmra.mxu0 %v4711
          %v4828 = vpop.f32.mrf.mxu0
          %v4829 = vadd.f32 0.0, %v4828
          %v4830 = vpop.f32.mrf.mxu0
          %4831 = vmatprep.mubr.f32.mxu0 0.0
          %4832 = vmatmul.mubr.f32.gmra.mxu0 %v4712
          %v4833 = vpop.f32.mrf.mxu0
          %v4834 = vadd.f32 0.0, %v4833
          %v4835 = vpop.f32.mrf.mxu0
          %4836 = vmatprep.mubr.f32.mxu0 0.0
          %4837 = vmatmul.mubr.f32.gmra.mxu0 %v4713
          %v4838 = vpop.f32.mrf.mxu0
          %v4839 = vadd.f32 0.0, %v4838
          %v4840 = vpop.f32.mrf.mxu0
          %4841 = vmatprep.mubr.f32.mxu0 0.0
          %4842 = vmatmul.mubr.f32.gmra.mxu0 %v4714
          %v4843 = vpop.f32.mrf.mxu0
          %v4844 = vadd.f32 0.0, %v4843
          %v4845 = vpop.f32.mrf.mxu0
          %4846 = vmatprep.mubr.f32.mxu0 0.0
          %4847 = vmatmul.mubr.f32.gmra.mxu0 %v4715
          %v4848 = vpop.f32.mrf.mxu0
          %v4849 = vadd.f32 0.0, %v4848
          %v4850 = vpop.f32.mrf.mxu0
          %4851 = vmatprep.mubr.f32.mxu0 0.0
          %4852 = vmatmul.mubr.f32.gmra.mxu0 %v4716
          %v4853 = vpop.f32.mrf.mxu0
          %v4854 = vadd.f32 0.0, %v4853
          %v4855 = vpop.f32.mrf.mxu0
          %4856 = vmatprep.mubr.f32.mxu0 0.0
          %4857 = vmatmul.mubr.f32.gmra.mxu0 %v4717
          %v4858 = vpop.f32.mrf.mxu0
          %v4859 = vadd.f32 0.0, %v4858
          %v4860 = vpop.f32.mrf.mxu0
          %4861 = vmatprep.mubr.f32.mxu0 0.0
          %4862 = vmatmul.mubr.f32.gmra.mxu0 %v4718
          %v4863 = vpop.f32.mrf.mxu0
          %v4864 = vadd.f32 0.0, %v4863
          %v4865 = vpop.f32.mrf.mxu0
          %4866 = vmatprep.mubr.f32.mxu0 0.0
          %4867 = vmatmul.mubr.f32.gmra.mxu0 %v4719
          %v4868 = vpop.f32.mrf.mxu0
          %v4869 = vadd.f32 0.0, %v4868
          %v4870 = vpop.f32.mrf.mxu0
          %4871 = vmatprep.mubr.f32.mxu0 0.0
          %4872 = vmatmul.mubr.f32.gmra.mxu0 %v4720
          %v4873 = vpop.f32.mrf.mxu0
          %v4874 = vadd.f32 0.0, %v4873
          %v4875 = vpop.f32.mrf.mxu0
          %4876 = vmatprep.mubr.f32.mxu0 0.0
          %4877 = vmatmul.mubr.f32.gmra.mxu0 %v4721
          %v4878 = vpop.f32.mrf.mxu0
          %v4879 = vadd.f32 0.0, %v4878
          %v4880 = vpop.f32.mrf.mxu0
          %4881 = vmatprep.mubr.f32.mxu0 0.0
          %4882 = vmatmul.mubr.f32.gmra.mxu0 %v4722
          %v4883 = vpop.f32.mrf.mxu0
          %v4884 = vadd.f32 0.0, %v4883
          %v4885 = vpop.f32.mrf.mxu0
          %4886 = vmatprep.mubr.f32.mxu0 0.0
          %4887 = vmatmul.mubr.f32.gmra.mxu0 %v4723
          %v4888 = vpop.f32.mrf.mxu0
          %v4889 = vadd.f32 0.0, %v4888
          %v4890 = vpop.f32.mrf.mxu0
          %4891 = vmatprep.mubr.f32.mxu0 0.0
          %4892 = vmatmul.mubr.f32.gmra.mxu0 %v4724
          %v4893 = vpop.f32.mrf.mxu0
          %v4894 = vadd.f32 0.0, %v4893
          %v4895 = vpop.f32.mrf.mxu0
          %4896 = vmatprep.mubr.f32.mxu0 0.0
          %4897 = vmatmul.mubr.f32.gmra.mxu0 %v4725
          %v4898 = vpop.f32.mrf.mxu0
          %v4899 = vadd.f32 0.0, %v4898
          %v4900 = vpop.f32.mrf.mxu0
          %4901 = vmatprep.mubr.f32.mxu0 0.0
          %4902 = vmatmul.mubr.f32.gmra.mxu0 %v4726
          %v4903 = vpop.f32.mrf.mxu0
          %v4904 = vadd.f32 0.0, %v4903
          %v4905 = vpop.f32.mrf.mxu0
          %4906 = vmatprep.mubr.f32.mxu0 0.0
          %4907 = vmatmul.mubr.f32.gmra.mxu0 %v4727
          %v4908 = vpop.f32.mrf.mxu0
          %v4909 = vadd.f32 0.0, %v4908
          %v4910 = vpop.f32.mrf.mxu0
          %4911 = vmatprep.mubr.f32.mxu0 0.0
          %4912 = vmatmul.mubr.f32.gmra.mxu0 %v4728
          %v4913 = vpop.f32.mrf.mxu0
          %v4914 = vadd.f32 0.0, %v4913
          %v4915 = vpop.f32.mrf.mxu0
          %4916 = vmatprep.mubr.f32.mxu0 0.0
          %4917 = vmatmul.mubr.f32.gmra.mxu0 %v4729
          %v4918 = vpop.f32.mrf.mxu0
          %v4919 = vadd.f32 0.0, %v4918
          %v4920 = vpop.f32.mrf.mxu0
          %4921 = vmatprep.mubr.f32.mxu0 0.0
          %4922 = vmatmul.mubr.f32.gmra.mxu0 %v4730
          %v4923 = vpop.f32.mrf.mxu0
          %v4924 = vadd.f32 0.0, %v4923
          %v4925 = vpop.f32.mrf.mxu0
          %4926 = vmatprep.mubr.f32.mxu0 0.0
          %4927 = vmatmul.mubr.f32.gmra.mxu0 %v4731
          %v4928 = vpop.f32.mrf.mxu0
          %v4929 = vadd.f32 0.0, %v4928
          %v4930 = vpop.f32.mrf.mxu0
          %4931 = vmatprep.mubr.f32.mxu0 0.0
          %4932 = vmatmul.mubr.f32.gmra.mxu0 %v4732
          %v4933 = vpop.f32.mrf.mxu0
          %v4934 = vadd.f32 0.0, %v4933
          %v4935 = vpop.f32.mrf.mxu0
          %4936 = vdwg.mxu0
          %v4937 = vadd.f32 %v4685, %v4819
          %v4938 = vadd.f32 %v4686, %v4824
          %v4939 = vadd.f32 %v4687, %v4829
          %v4940 = vadd.f32 %v4688, %v4834
          %v4941 = vadd.f32 %v4689, %v4839
          %v4942 = vadd.f32 %v4690, %v4844
          %v4943 = vadd.f32 %v4691, %v4849
          %v4944 = vadd.f32 %v4692, %v4854
          %v4945 = vadd.f32 %v4693, %v4859
          %v4946 = vadd.f32 %v4694, %v4864
          %v4947 = vadd.f32 %v4695, %v4869
          %v4948 = vadd.f32 %v4696, %v4874
          %v4949 = vadd.f32 %v4697, %v4879
          %v4950 = vadd.f32 %v4698, %v4884
          %v4951 = vadd.f32 %v4699, %v4889
          %v4952 = vadd.f32 %v4700, %v4894
          %v4953 = vadd.f32 %v4701, %v4899
          %v4954 = vadd.f32 %v4702, %v4904
          %v4955 = vadd.f32 %v4703, %v4909
          %v4956 = vadd.f32 %v4704, %v4914
          %v4957 = vadd.f32 %v4705, %v4919
          %v4958 = vadd.f32 %v4706, %v4924
          %v4959 = vadd.f32 %v4707, %v4929
          %v4960 = vadd.f32 %v4708, %v4934
          %s4961 = scalar_lea.vmem [#allocation14], %s913
          %v4962 = vld [vmem:[%s4961] sm:$0xff]
          %v4963 = vld [vmem:[%s4961 + $0x8] sm:$0xff]
          %v4964 = vld [vmem:[%s4961 + $0x10] sm:$0xff]
          %s4965 = scalar_lea.vmem [#allocation17], %s913
          %v4966 = vld [vmem:[%s4965] sm:$0xff]
          %v4967 = vld [vmem:[%s4965 + $0x8] sm:$0xff]
          %v4968 = vld [vmem:[%s4965 + $0x10] sm:$0xff]
          %v4969 = vadd.f32 %v4962, %v4966
          %v4970 = vadd.f32 %v4963, %v4967
          %v4971 = vadd.f32 %v4964, %v4968
          %v4972 = vadd.f32 %v4937, %v4969
          %v4973 = vadd.f32 %v4938, %v4970
          %v4974 = vadd.f32 %v4939, %v4971
          %v4975 = vadd.f32 %v4940, %v4969
          %v4976 = vadd.f32 %v4941, %v4970
          %v4977 = vadd.f32 %v4942, %v4971
          %v4978 = vadd.f32 %v4943, %v4969
          %v4979 = vadd.f32 %v4944, %v4970
          %v4980 = vadd.f32 %v4945, %v4971
          %v4981 = vadd.f32 %v4946, %v4969
          %v4982 = vadd.f32 %v4947, %v4970
          %v4983 = vadd.f32 %v4948, %v4971
          %v4984 = vadd.f32 %v4949, %v4969
          %v4985 = vadd.f32 %v4950, %v4970
          %v4986 = vadd.f32 %v4951, %v4971
          %v4987 = vadd.f32 %v4952, %v4969
          %v4988 = vadd.f32 %v4953, %v4970
          %v4989 = vadd.f32 %v4954, %v4971
          %v4990 = vadd.f32 %v4955, %v4969
          %v4991 = vadd.f32 %v4956, %v4970
          %v4992 = vadd.f32 %v4957, %v4971
          %v4993 = vadd.f32 %v4958, %v4969
          %v4994 = vadd.f32 %v4959, %v4970
          %v4995 = vadd.f32 %v4960, %v4971
          %v4996 = vmax.f32 %v4972, 0.0
          %v4997 = vmax.f32 %v4973, 0.0
          %v4998 = vmax.f32 %v4974, 0.0
          %v4999 = vmax.f32 %v4975, 0.0
          %v5000 = vmax.f32 %v4976, 0.0
          %v5001 = vmax.f32 %v4977, 0.0
          %v5002 = vmax.f32 %v4978, 0.0
          %v5003 = vmax.f32 %v4979, 0.0
          %v5004 = vmax.f32 %v4980, 0.0
          %v5005 = vmax.f32 %v4981, 0.0
          %v5006 = vmax.f32 %v4982, 0.0
          %v5007 = vmax.f32 %v4983, 0.0
          %v5008 = vmax.f32 %v4984, 0.0
          %v5009 = vmax.f32 %v4985, 0.0
          %v5010 = vmax.f32 %v4986, 0.0
          %v5011 = vmax.f32 %v4987, 0.0
          %v5012 = vmax.f32 %v4988, 0.0
          %v5013 = vmax.f32 %v4989, 0.0
          %v5014 = vmax.f32 %v4990, 0.0
          %v5015 = vmax.f32 %v4991, 0.0
          %v5016 = vmax.f32 %v4992, 0.0
          %v5017 = vmax.f32 %v4993, 0.0
          %v5018 = vmax.f32 %v4994, 0.0
          %v5019 = vmax.f32 %v4995, 0.0
          %5020 = vst [vmem:[#allocation2] sm:$0xff] %v4996
          %5021 = vst [vmem:[#allocation2 + $0x8] sm:$0xff] %v4997
          %5022 = vst [vmem:[#allocation2 + $0x10] sm:$0xff] %v4998
          %5023 = vst [vmem:[#allocation2 + $0x18] sm:$0xff] %v4999
          %5024 = vst [vmem:[#allocation2 + $0x20] sm:$0xff] %v5000
          %5025 = vst [vmem:[#allocation2 + $0x28] sm:$0xff] %v5001
          %5026 = vst [vmem:[#allocation2 + $0x30] sm:$0xff] %v5002
          %5027 = vst [vmem:[#allocation2 + $0x38] sm:$0xff] %v5003
          %5028 = vst [vmem:[#allocation2 + $0x40] sm:$0xff] %v5004
          %5029 = vst [vmem:[#allocation2 + $0x48] sm:$0xff] %v5005
          %5030 = vst [vmem:[#allocation2 + $0x50] sm:$0xff] %v5006
          %5031 = vst [vmem:[#allocation2 + $0x58] sm:$0xff] %v5007
          %5032 = vst [vmem:[#allocation2 + $0x60] sm:$0xff] %v5008
          %5033 = vst [vmem:[#allocation2 + $0x68] sm:$0xff] %v5009
          %5034 = vst [vmem:[#allocation2 + $0x70] sm:$0xff] %v5010
          %5035 = vst [vmem:[#allocation2 + $0x78] sm:$0xff] %v5011
          %5036 = vst [vmem:[#allocation2 + $0x80] sm:$0xff] %v5012
          %5037 = vst [vmem:[#allocation2 + $0x88] sm:$0xff] %v5013
          %5038 = vst [vmem:[#allocation2 + $0x90] sm:$0xff] %v5014
          %5039 = vst [vmem:[#allocation2 + $0x98] sm:$0xff] %v5015
          %5040 = vst [vmem:[#allocation2 + $0xa0] sm:$0xff] %v5016
          %5041 = vst [vmem:[#allocation2 + $0xa8] sm:$0xff] %v5017
          %5042 = vst [vmem:[#allocation2 + $0xb0] sm:$0xff] %v5018
          %5043 = vst [vmem:[#allocation2 + $0xb8] sm:$0xff] %v5019
        $region101: #{model_forward_pallas.1} parent=59 // loop_footer
          %s644 = sadd.s32 1, %s640
        $region102: #{model_forward_pallas.1} parent=59 // loop_footer_branch
          %639 = sbr.rel target = $region98
        $region103: #{model_forward_pallas.1} parent=59 // loop_exit
          _
        %v5044 = vld [vmem:[#allocation2] sm:$0xff]
        %v5045 = vld [vmem:[#allocation2 + $0x8] sm:$0xff]
        %v5046 = vld [vmem:[#allocation2 + $0x10] sm:$0xff]
        %v5047 = vld [vmem:[#allocation2 + $0x18] sm:$0xff]
        %v5048 = vld [vmem:[#allocation2 + $0x20] sm:$0xff]
        %v5049 = vld [vmem:[#allocation2 + $0x28] sm:$0xff]
        %v5050 = vld [vmem:[#allocation2 + $0x30] sm:$0xff]
        %v5051 = vld [vmem:[#allocation2 + $0x38] sm:$0xff]
        %v5052 = vld [vmem:[#allocation2 + $0x40] sm:$0xff]
        %v5053 = vld [vmem:[#allocation2 + $0x48] sm:$0xff]
        %v5054 = vld [vmem:[#allocation2 + $0x50] sm:$0xff]
        %v5055 = vld [vmem:[#allocation2 + $0x58] sm:$0xff]
        %v5056 = vld [vmem:[#allocation2 + $0x60] sm:$0xff]
        %v5057 = vld [vmem:[#allocation2 + $0x68] sm:$0xff]
        %v5058 = vld [vmem:[#allocation2 + $0x70] sm:$0xff]
        %v5059 = vld [vmem:[#allocation2 + $0x78] sm:$0xff]
        %v5060 = vld [vmem:[#allocation2 + $0x80] sm:$0xff]
        %v5061 = vld [vmem:[#allocation2 + $0x88] sm:$0xff]
        %v5062 = vld [vmem:[#allocation2 + $0x90] sm:$0xff]
        %v5063 = vld [vmem:[#allocation2 + $0x98] sm:$0xff]
        %v5064 = vld [vmem:[#allocation2 + $0xa0] sm:$0xff]
        %v5065 = vld [vmem:[#allocation2 + $0xa8] sm:$0xff]
        %v5066 = vld [vmem:[#allocation2 + $0xb0] sm:$0xff]
        %v5067 = vld [vmem:[#allocation2 + $0xb8] sm:$0xff]
        %v5068 = vadd.f32 %v5044, %v5045
        %v5069 = vadd.f32 %v5068, %v5046
        %v5070 = vrot.slane %v5069, 4
        %v5071 = vadd.f32 %v5069, %v5070
        %v5072 = vrot.slane %v5071, 2
        %v5073 = vadd.f32 %v5071, %v5072
        %v5074 = vrot.slane %v5073, 1
        %v5075 = vadd.f32 %v5073, %v5074
        %v5076 = vadd.f32 %v5047, %v5048
        %v5077 = vadd.f32 %v5076, %v5049
        %v5078 = vrot.slane %v5077, 4
        %v5079 = vadd.f32 %v5077, %v5078
        %v5080 = vrot.slane %v5079, 2
        %v5081 = vadd.f32 %v5079, %v5080
        %v5082 = vrot.slane %v5081, 1
        %v5083 = vadd.f32 %v5081, %v5082
        %v5084 = vadd.f32 %v5050, %v5051
        %v5085 = vadd.f32 %v5084, %v5052
        %v5086 = vrot.slane %v5085, 4
        %v5087 = vadd.f32 %v5085, %v5086
        %v5088 = vrot.slane %v5087, 2
        %v5089 = vadd.f32 %v5087, %v5088
        %v5090 = vrot.slane %v5089, 1
        %v5091 = vadd.f32 %v5089, %v5090
        %v5092 = vadd.f32 %v5053, %v5054
        %v5093 = vadd.f32 %v5092, %v5055
        %v5094 = vrot.slane %v5093, 4
        %v5095 = vadd.f32 %v5093, %v5094
        %v5096 = vrot.slane %v5095, 2
        %v5097 = vadd.f32 %v5095, %v5096
        %v5098 = vrot.slane %v5097, 1
        %v5099 = vadd.f32 %v5097, %v5098
        %v5100 = vadd.f32 %v5056, %v5057
        %v5101 = vadd.f32 %v5100, %v5058
        %v5102 = vrot.slane %v5101, 4
        %v5103 = vadd.f32 %v5101, %v5102
        %v5104 = vrot.slane %v5103, 2
        %v5105 = vadd.f32 %v5103, %v5104
        %v5106 = vrot.slane %v5105, 1
        %v5107 = vadd.f32 %v5105, %v5106
        %v5108 = vadd.f32 %v5059, %v5060
        %v5109 = vadd.f32 %v5108, %v5061
        %v5110 = vrot.slane %v5109, 4
        %v5111 = vadd.f32 %v5109, %v5110
        %v5112 = vrot.slane %v5111, 2
        %v5113 = vadd.f32 %v5111, %v5112
        %v5114 = vrot.slane %v5113, 1
        %v5115 = vadd.f32 %v5113, %v5114
        %v5116 = vadd.f32 %v5062, %v5063
        %v5117 = vadd.f32 %v5116, %v5064
        %v5118 = vrot.slane %v5117, 4
        %v5119 = vadd.f32 %v5117, %v5118
        %v5120 = vrot.slane %v5119, 2
        %v5121 = vadd.f32 %v5119, %v5120
        %v5122 = vrot.slane %v5121, 1
        %v5123 = vadd.f32 %v5121, %v5122
        %v5124 = vadd.f32 %v5065, %v5066
        %v5125 = vadd.f32 %v5124, %v5067
        %v5126 = vrot.slane %v5125, 4
        %v5127 = vadd.f32 %v5125, %v5126
        %v5128 = vrot.slane %v5127, 2
        %v5129 = vadd.f32 %v5127, %v5128
        %v5130 = vrot.slane %v5129, 1
        %v5131 = vadd.f32 %v5129, %v5130
        %v5132 = vmul.f32 %v5075, 0.05882353
        %v5133 = vmul.f32 %v5083, 0.05882353
        %v5134 = vmul.f32 %v5091, 0.05882353
        %v5135 = vmul.f32 %v5099, 0.05882353
        %v5136 = vmul.f32 %v5107, 0.05882353
        %v5137 = vmul.f32 %v5115, 0.05882353
        %v5138 = vmul.f32 %v5123, 0.05882353
        %v5139 = vmul.f32 %v5131, 0.05882353
        %vm5148 = vcmask 1041409
        %v5149 = vsel %vm5148, %v5133, %v5132
        %vm5150 = vcmask 1042434
        %v5151 = vsel %vm5150, %v5134, %v5149
        %vm5152 = vcmask 1043459
        %v5153 = vsel %vm5152, %v5135, %v5151
        %vm5154 = vcmask 1044484
        %v5155 = vsel %vm5154, %v5136, %v5153
        %vm5156 = vcmask 1045509
        %v5157 = vsel %vm5156, %v5137, %v5155
        %vm5158 = vcmask 1046534
        %v5159 = vsel %vm5158, %v5138, %v5157
        %vm5160 = vcmask 1047559
        %v5161 = vsel %vm5160, %v5139, %v5159
        %5163 = vst [vmem:[%s488] sm:$0xff] %v5161
        %p5164 = scmp.lt.s32.totalorder %s26, 1
        %s5165 = scalar_select %p5164, %s26, 1
        %s5166 = smul.addr %s5165, 8
        %s5167 = scalar_lea.vmem %s10, %s5166
        // Predicated region
        $region104: #{model_forward_pallas.1} parent=59 // pred_check
          %p5168 = pneg %p259
        $region105: #{model_forward_pallas.1} parent=59 // pred_check_branch
          %5170 = sbr.rel (%p5168) target = $region107
        $region106: #{model_forward_pallas.1} parent=59 // pred_region
          _
        $region107: #{model_forward_pallas.1} parent=59 // pred_fallthru
          _
      $region60: #{model_forward_pallas.1} parent=5 // pred_fallthru
        _
      %p5171 = scmp.le.s32.totalorder 2, %s21
      // Predicated region
      $region108: #{model_forward_pallas.1} parent=5 // pred_check
        %p5172 = pneg %p5171
      $region109: #{model_forward_pallas.1} parent=5 // pred_check_branch
        %5174 = sbr.rel (%p5172) target = $region111
      $region110: #{model_forward_pallas.1} parent=5 // pred_region
        %s5175 = ssub.s32 %s21, 2
        // Predicated region
        $region112: #{model_forward_pallas.1} parent=110 // pred_check
          %p5176 = pneg %p265
        $region113: #{model_forward_pallas.1} parent=110 // pred_check_branch
          %5178 = sbr.rel (%p5176) target = $region115
        $region114: #{model_forward_pallas.1} parent=110 // pred_region
          %p5179 = scmp.lt.s32.totalorder %s27, 1
          %s5180 = scalar_select %p5179, %s27, 1
          %s5181 = smul.addr %s5180, 8
          %s5182 = scalar_lea.vmem %s10, %s5181
        $region115: #{model_forward_pallas.1} parent=110 // pred_fallthru
          _
      $region111: #{model_forward_pallas.1} parent=5 // pred_fallthru
        _
    $region6: #{model_forward_pallas.1} parent=1 // loop_footer
      %s25 = sadd.s32 1, %s21
    $region7: #{model_forward_pallas.1} parent=1 // loop_footer_branch
      %20 = sbr.rel target = $region3
    $region8: #{model_forward_pallas.1} parent=1 // loop_exit
      _
    %5183 = vsyncpa [#allocation5], 1
    %s5184 = scalar_lea.sflag [#allocation5], 1
    %5185 = vsyncpa %s5184, 1
    %5186 = vsyncpa [#allocation7], 1
    %5187 = vsyncpa [#allocation10], 1
    %5188 = vsyncpa [#allocation13], 1
    %5189 = vsyncpa [#allocation16], 1

</llo_original>
